<compile_context>
chip_gen: v7x
topology: tpu7x:2x2x1
jax: 0.10.0
libtpu: 0.0.40
codegen_flags: <defaults>
</compile_context>

<pallas_src>
import jax
import jax.numpy as jnp
from jax import lax
from jax.experimental import pallas as pl
from jax.experimental.pallas import tpu as pltpu


# ---------------------------------------------------------------------------
# Helpers
# ---------------------------------------------------------------------------
def _fold_bn(gamma, beta, mean, var, eps=1e-5):
    s = gamma / jnp.sqrt(var + eps)
    return s.reshape(1, -1), (beta - mean * s).reshape(1, -1)


def _phase_meta(length, stride):
    """Per phase p (padded coordinate == p mod stride, padding = 1):
       (q0, n, src0) -- real pixels occupy phase-grid rows [q0, q0+n) and come from
       original coordinates src0, src0+stride, ..."""
    metas = []
    for p in range(stride):
        q0 = max(0, -((p - 1) // stride))          # ceil((1 - p) / stride), clamped at 0
        n = (length - p) // stride - q0 + 1
        metas.append((q0, n, q0 * stride + p - 1))
    return metas


def _vmem_limit_bytes():
    """~3/4 of physical VMEM, capped at 100 MiB (=> ~96 MiB on v5e/v6e, ~48 MiB on v7x)."""
    cap = 128 * 1024 * 1024
    try:
        cap = int(pltpu.get_tpu_info().vmem_capacity_bytes)
    except Exception:
        pass
    return int(min((cap * 3) // 4, 100 * 1024 * 1024))


# ---------------------------------------------------------------------------
# Fused XBlock forward
# ---------------------------------------------------------------------------
def xblock_forward(x_nchw, p, Ni, No, Fr, Fc, Sr, Sc, G):
    conv0_present = (Ni != No) or Sr > 1 or Sc > 1
    groups = No // G
    Cg = No // groups                               # channels per group (== G)
    N, _, H, W = x_nchw.shape
    Hp, Wp = H + 2, W + 2                           # module hard-codes padding=(1, 1)
    Ho = (Hp - Fr) // Sr + 1
    Wo = (Wp - Fc) // Sc + 1
    NPH = Sr * Sc
    Hph = max(-(-Hp // Sr), Ho + (Fr - 1) // Sr)    # phase-grid rows (incl. halo)
    Wph = max(-(-Wp // Sc), Wo + (Fc - 1) // Sc)    # phase-grid cols (incl. halo)
    Wpp = -(-Wph // 8) * 8                          # scratch width padded to 8 sublanes
    row_meta = _phase_meta(H, Sr)
    col_meta = _phase_meta(W, Sc)
    Hg = max(m[1] for m in row_meta)                # halo-free input phase-slab rows
    Wg = max(m[1] for m in col_meta)                # halo-free input phase-slab cols

    # Grouped-conv chunking: pack up to ~128 output channels of whole groups per matmul.
    cap = max(1, 128 // Cg)
    gpc = 1
    for d in range(1, groups + 1):                  # largest divisor of `groups` <= cap
        if d <= cap and groups % d == 0:
            gpc = d
    Cchunk = gpc * Cg
    n_chunks = groups // gpc

    x = jnp.transpose(x_nchw, (0, 2, 3, 1)).astype(jnp.float32)       # NHWC, f32

    # ---- folded BatchNorm (inference mode, running stats) ----
    s1, b1 = _fold_bn(p["bn1_g"], p["bn1_b"], p["bn1_m"], p["bn1_v"])
    s2, b2 = _fold_bn(p["bn2_g"], p["bn2_b"], p["bn2_m"], p["bn2_v"])
    s3, b3 = _fold_bn(p["bn3_g"], p["bn3_b"], p["bn3_m"], p["bn3_v"])

    # conv1 with bn2's scale folded into its columns; conv3 plain.  bf16 MXU operands.
    w1 = (p["conv1_w"][:, :, 0, 0].T * s2).astype(jnp.bfloat16)       # (Ni, No)
    w3 = p["conv3_w"][:, :, 0, 0].T.astype(jnp.bfloat16)              # (No, No)

    # conv2: per-tap, per-chunk block-diagonal weights with bn3's scale folded in.
    # (Fr*Fc, n_chunks, Cchunk_in, Cchunk_out); chunk c covers groups [c*gpc, (c+1)*gpc).
    w2p = jnp.zeros((Fr * Fc, n_chunks, Cchunk, Cchunk), jnp.float32)
    for fr in range(Fr):
        for fc in range(Fc):
            t = fr * Fc + fc
            for c in range(n_chunks):
                for gi in range(gpc):
                    g = c * gpc + gi
                    blk = p["conv2_w"][g * Cg:(g + 1) * Cg, :, fr, fc].T   # (Cg_in, Cg_out)
                    w2p = w2p.at[t, c, gi * Cg:(gi + 1) * Cg,
                                 gi * Cg:(gi + 1) * Cg].set(blk)
    w2p = w2p * s3[0].reshape(n_chunks, Cchunk)[None, :, None, :]
    w2p = w2p.astype(jnp.bfloat16)

    # ---- phase-major, halo-free, offset-0 repack of x (streamed in bf16) ----
    xb = x.astype(jnp.bfloat16)
    xg = jnp.zeros((N, NPH * Hg, Wg, Ni), jnp.bfloat16)
    for pr in range(Sr):
        _, nh, hs = row_meta[pr]
        for pc in range(Sc):
            _, nw, ws = col_meta[pc]
            ph = pr * Sc + pc
            sub = xb[:, hs:hs + (nh - 1) * Sr + 1:Sr,
                     ws:ws + (nw - 1) * Sc + 1:Sc, :]
            xg = xg.at[:, ph * Hg: ph * Hg + nh, 0:nw, :].set(sub)

    # ---- residual-path input ----
    if conv0_present:
        xr = (x[:, ::Sr, ::Sc, :][:, :Ho, :Wo, :]
              .reshape(N, Ho * Wo, Ni).astype(jnp.bfloat16))
        w0 = p["conv0_w"][:, :, 0, 0].T.astype(jnp.bfloat16)          # (Ni, No)
    else:
        xr = x.reshape(N, H * W, No)                                   # keep skip path f32
        w0 = None
    PR, Cr = xr.shape[1], xr.shape[2]

    # ------------------------------------------------------------------
    # Kernel: one image per grid step.
    # ------------------------------------------------------------------
    def kernel(*refs):
        if conv0_present:
            (xg_ref, xr_ref, s1_ref, b1_ref, w1_ref, b2_ref,
             w2_ref, b3_ref, w3_ref, w0_ref, o_ref, apad_ref) = refs
        else:
            (xg_ref, xr_ref, s1_ref, b1_ref, w1_ref, b2_ref,
             w2_ref, b3_ref, w3_ref, o_ref, apad_ref) = refs
            w0_ref = None

        # Hoisted grid-invariant loads (JAX does not CSE these per phase).
        s1v = s1_ref[...]
        b1v = b1_ref[...]
        w1v = w1_ref[...]
        b2v = b2_ref[...]

        # ---- Stage 1 (+ halo maintenance), one pass per stride phase ----
        for pr in range(Sr):
            r0, nh, _ = row_meta[pr]
            for pc in range(Sc):
                c0, nw, _ = col_meta[pc]
                ph = pr * Sc + pc
                base = ph * Hph

                # Zero only the thin halo strips of this phase block (not the whole
                # scratch).  The interior is fully rewritten below; strips are re-zeroed
                # every step so this stays correct under megacore "parallel" sharding
                # (a program_id == 0 guard would not).
                if r0 > 0:
                    apad_ref[base:base + r0, :, :] = (
                        jnp.zeros((r0, Wpp, No), jnp.float32))
                if r0 + nh < Hph:
                    apad_ref[base + r0 + nh:base + Hph, :, :] = (
                        jnp.zeros((Hph - r0 - nh, Wpp, No), jnp.float32))
                if c0 > 0:
                    apad_ref[base + r0:base + r0 + nh, 0:c0, :] = (
                        jnp.zeros((nh, c0, No), jnp.float32))
                if c0 + nw < Wpp:
                    apad_ref[base + r0:base + r0 + nh, c0 + nw:Wpp, :] = (
                        jnp.zeros((nh, Wpp - c0 - nw, No), jnp.float32))

                # a = relu(relu(bn1(x)) @ (w1 * s2) + b2)
                xp = xg_ref[0, ph * Hg: ph * Hg + nh, 0:nw, :]          # (nh, nw, Ni) bf16
                h1 = xp.reshape(nh * nw, Ni).astype(jnp.float32) * s1v + b1v
                h1 = jnp.maximum(h1, 0.0)
                a = jnp.dot(h1.astype(jnp.bfloat16), w1v,
                            preferred_element_type=jnp.float32)
                a = jnp.maximum(a + b2v, 0.0)
                apad_ref[base + r0:base + r0 + nh, c0:c0 + nw, :] = (
                    a.reshape(nh, nw, No))

        # ---- Stage 2: grouped 3x3 conv as per-chunk, per-tap block-diagonal matmuls ----
        acc_chunks = []
        for c in range(n_chunks):
            ch0 = c * Cchunk
            acc = jnp.zeros((Ho * Wo, Cchunk), jnp.float32)
            for fr in range(Fr):
                for fc in range(Fc):
                    t = fr * Fc + fc
                    base = ((fr % Sr) * Sc + (fc % Sc)) * Hph
                    qr, qc = fr // Sr, fc // Sc
                    win = apad_ref[base + qr:base + qr + Ho,
                                   qc:qc + Wo, ch0:ch0 + Cchunk]
                    acc = acc + jnp.dot(
                        win.reshape(Ho * Wo, Cchunk).astype(jnp.bfloat16),
                        w2_ref[t, c], preferred_element_type=jnp.float32)
            acc_chunks.append(acc)
        acc = acc_chunks[0] if n_chunks == 1 else jnp.concatenate(acc_chunks, axis=-1)

        y3 = jnp.maximum(acc + b3_ref[...], 0.0)                        # bn3 shift + relu3
        z = jnp.dot(y3.astype(jnp.bfloat16), w3_ref[...],
                    preferred_element_type=jnp.float32)                 # conv3 (1x1)

        if conv0_present:
            r = jnp.dot(xr_ref[0], w0_ref[...],
                        preferred_element_type=jnp.float32)             # conv0 (1x1, strided)
        else:
            r = xr_ref[0]                                               # identity (f32)

        o_ref[0] = (r + z).astype(o_ref.dtype)

    vec2 = lambda n: (0, 0)
    in_specs = [
        pl.BlockSpec((1, NPH * Hg, Wg, Ni), lambda n: (n, 0, 0, 0)),
        pl.BlockSpec((1, PR, Cr), lambda n: (n, 0, 0)),
        pl.BlockSpec((1, Ni), vec2),
        pl.BlockSpec((1, Ni), vec2),
        pl.BlockSpec((Ni, No), vec2),
        pl.BlockSpec((1, No), vec2),
        pl.BlockSpec((Fr * Fc, n_chunks, Cchunk, Cchunk), lambda n: (0, 0, 0, 0)),
        pl.BlockSpec((1, No), vec2),
        pl.BlockSpec((No, No), vec2),
    ]
    inputs = [xg, xr, s1, b1, w1, b2, w2p, b3, w3]
    if conv0_present:
        in_specs.append(pl.BlockSpec((Ni, No), vec2))
        inputs.append(w0)

    out = pl.pallas_call(
        kernel,
        out_shape=jax.ShapeDtypeStruct((N, Ho * Wo, No), jnp.float32),
        grid_spec=pltpu.PrefetchScalarGridSpec(
            num_scalar_prefetch=0,
            grid=(N,),
            in_specs=in_specs,
            out_specs=pl.BlockSpec((1, Ho * Wo, No), lambda n: (n, 0, 0)),
            scratch_shapes=[pltpu.VMEM((NPH * Hph, Wpp, No), jnp.float32)],
        ),
        compiler_params=pltpu.CompilerParams(
            dimension_semantics=("parallel",),
            vmem_limit_bytes=_vmem_limit_bytes()),
    )(*inputs)

    out = out.reshape(N, Ho, Wo, No)
    return jnp.transpose(out, (0, 3, 1, 2))                            # back to NCHW


# ---------------------------------------------------------------------------
# Pure-JAX reference (lax.conv, f32) for validation
# ---------------------------------------------------------------------------
def xblock_reference(x_nchw, p, Ni, No, Fr, Fc, Sr, Sc, G):
    conv0_present = (Ni != No) or Sr > 1 or Sc > 1
    groups = No // G
    dn = ("NHWC", "HWIO", "NHWC")
    x = jnp.transpose(x_nchw, (0, 2, 3, 1)).astype(jnp.float32)

    s1, b1 = _fold_bn(p["bn1_g"], p["bn1_b"], p["bn1_m"], p["bn1_v"])
    s2, b2 = _fold_bn(p["bn2_g"], p["bn2_b"], p["bn2_m"], p["bn2_v"])
    s3, b3 = _fold_bn(p["bn3_g"], p["bn3_b"], p["bn3_m"], p["bn3_v"])

    w1 = jnp.transpose(p["conv1_w"], (2, 3, 1, 0))
    w2 = jnp.transpose(p["conv2_w"], (2, 3, 1, 0))
    w3 = jnp.transpose(p["conv3_w"], (2, 3, 1, 0))

    h = jnp.maximum(x * s1[0] + b1[0], 0.0)
    h = lax.conv_general_dilated(h, w1, (1, 1), "VALID", dimension_numbers=dn)
    h = jnp.maximum(h * s2[0] + b2[0], 0.0)
    h = lax.conv_general_dilated(h, w2, (Sr, Sc), ((1, 1), (1, 1)),
                                 dimension_numbers=dn, feature_group_count=groups)
    h = jnp.maximum(h * s3[0] + b3[0], 0.0)
    h = lax.conv_general_dilated(h, w3, (1, 1), "VALID", dimension_numbers=dn)

    if conv0_present:
        w0 = jnp.transpose(p["conv0_w"], (2, 3, 1, 0))
        r = lax.conv_general_dilated(x, w0, (Sr, Sc), "VALID", dimension_numbers=dn)
    else:
        r = x
    return jnp.transpose(r + h, (0, 3, 1, 2))


# ---------------------------------------------------------------------------
if __name__ == "__main__":
    key = jax.random.PRNGKey(0)

    def make_params(k, Ni, No, Fr, Fc, groups, conv0_present):
        ks = jax.random.split(k, 20)
        nrm = lambda kk, shape, s: s * jax.random.normal(kk, shape, jnp.float32)
        prm = {
            "conv1_w": nrm(ks[1], (No, Ni, 1, 1), 0.25),
            "conv2_w": nrm(ks[2], (No, No // groups, Fr, Fc), 0.25),
            "conv3_w": nrm(ks[3], (No, No, 1, 1), 0.25),
            "bn1_g": 1.0 + nrm(ks[4], (Ni,), 0.1), "bn1_b": nrm(ks[5], (Ni,), 0.1),
            "bn1_m": nrm(ks[6], (Ni,), 0.1),
            "bn1_v": jax.random.uniform(ks[7], (Ni,), jnp.float32, 0.5, 1.5),
            "bn2_g": 1.0 + nrm(ks[8], (No,), 0.1), "bn2_b": nrm(ks[9], (No,), 0.1),
            "bn2_m": nrm(ks[10], (No,), 0.1),
            "bn2_v": jax.random.uniform(ks[11], (No,), jnp.float32, 0.5, 1.5),
            "bn3_g": 1.0 + nrm(ks[12], (No,), 0.1), "bn3_b": nrm(ks[13], (No,), 0.1),
            "bn3_m": nrm(ks[14], (No,), 0.1),
            "bn3_v": jax.random.uniform(ks[15], (No,), jnp.float32, 0.5, 1.5),
        }
        if conv0_present:
            prm["conv0_w"] = nrm(ks[0], (No, Ni, 1, 1), 0.25)
        return prm

    configs = [
        # (Ni, No, Fr, Fc, Sr, Sc, G, N, H, W)  -- downsampling block (conv0 present)
        (8, 16, 3, 3, 2, 2, 8, 2, 16, 16),
        # identity-shortcut block (Ni == No, stride 1) -- conv0 absent
        (16, 16, 3, 3, 1, 1, 8, 2, 16, 16),
    ]
    for i, (Ni, No, Fr, Fc, Sr, Sc, G, N, H, W) in enumerate(configs):
        conv0_present = (Ni != No) or Sr > 1 or Sc > 1
        kp, kx, key = jax.random.split(key, 3)
        params = make_params(kp, Ni, No, Fr, Fc, No // G, conv0_present)
        x = jax.random.normal(kx, (N, Ni, H, W), jnp.float32)

        y = jax.block_until_ready(xblock_forward(x, params, Ni, No, Fr, Fc, Sr, Sc, G))
        y_ref = xblock_reference(x, params, Ni, No, Fr, Fc, Sr, Sc, G)
        assert y.shape == y_ref.shape, (i, y.shape, y_ref.shape)
        err = float(jnp.max(jnp.abs(y - y_ref)))
        # bf16 inputs/MXU operands vs. pure-f32 reference -> loose-but-discriminating tolerance
        assert jnp.allclose(y, y_ref, atol=5e-2, rtol=5e-2), (i, err)

    print("KERNEL_OK")
</pallas_src>

<mosaic_0001>
module attributes {stable_mosaic.version = 11 : i64} {
  func.func @kernel(%arg0: i32, %arg1: memref<1x32x8x8xbf16, #tpu.memory_space<vmem>>, %arg2: memref<1x64x8xbf16, #tpu.memory_space<vmem>>, %arg3: memref<1x8xf32, #tpu.memory_space<vmem>>, %arg4: memref<1x8xf32, #tpu.memory_space<vmem>>, %arg5: memref<8x16xbf16, #tpu.memory_space<vmem>>, %arg6: memref<1x16xf32, #tpu.memory_space<vmem>>, %arg7: memref<9x1x16x16xbf16, #tpu.memory_space<vmem>>, %arg8: memref<1x16xf32, #tpu.memory_space<vmem>>, %arg9: memref<16x16xbf16, #tpu.memory_space<vmem>>, %arg10: memref<8x16xbf16, #tpu.memory_space<vmem>>, %arg11: memref<1x64x16xf32, #tpu.memory_space<vmem>>, %arg12: memref<36x16x16xf32, #tpu.memory_space<vmem>>) attributes {dimension_semantics = [#tpu.dimension_semantics<parallel>], iteration_bounds = array<i64: 2>, scalar_prefetch = 0 : i64, scratch_operands = 1 : i64, tpu.core_type = #tpu.core_type<tc>, window_params = [{transform_indices = @transform_0, window_bounds = array<i64: 1, 32, 8, 8>}, {transform_indices = @transform_1, window_bounds = array<i64: 1, 64, 8>}, {pipeline_mode = #tpu.pipeline_mode<synchronous>, transform_indices = @transform_2, window_bounds = array<i64: 1, 8>}, {pipeline_mode = #tpu.pipeline_mode<synchronous>, transform_indices = @transform_3, window_bounds = array<i64: 1, 8>}, {pipeline_mode = #tpu.pipeline_mode<synchronous>, transform_indices = @transform_4, window_bounds = array<i64: 8, 16>}, {pipeline_mode = #tpu.pipeline_mode<synchronous>, transform_indices = @transform_5, window_bounds = array<i64: 1, 16>}, {pipeline_mode = #tpu.pipeline_mode<synchronous>, transform_indices = @transform_6, window_bounds = array<i64: 9, 1, 16, 16>}, {pipeline_mode = #tpu.pipeline_mode<synchronous>, transform_indices = @transform_7, window_bounds = array<i64: 1, 16>}, {pipeline_mode = #tpu.pipeline_mode<synchronous>, transform_indices = @transform_8, window_bounds = array<i64: 16, 16>}, {pipeline_mode = #tpu.pipeline_mode<synchronous>, transform_indices = @transform_9, window_bounds = array<i64: 8, 16>}, {transform_indices = @transform_10, window_bounds = array<i64: 1, 64, 16>}]} {
    %c0 = arith.constant 0 : index
    %c0_0 = arith.constant 0 : index
    %0 = vector.load %arg3[%c0, %c0_0] : memref<1x8xf32, #tpu.memory_space<vmem>>, vector<1x8xf32>
    %c0_1 = arith.constant 0 : index
    %c0_2 = arith.constant 0 : index
    %1 = vector.load %arg4[%c0_1, %c0_2] : memref<1x8xf32, #tpu.memory_space<vmem>>, vector<1x8xf32>
    %c0_3 = arith.constant 0 : index
    %c0_4 = arith.constant 0 : index
    %2 = vector.load %arg5[%c0_3, %c0_4] : memref<8x16xbf16, #tpu.memory_space<vmem>>, vector<8x16xbf16>
    %c0_5 = arith.constant 0 : index
    %c0_6 = arith.constant 0 : index
    %3 = vector.load %arg6[%c0_5, %c0_6] : memref<1x16xf32, #tpu.memory_space<vmem>>, vector<1x16xf32>
    %cst = arith.constant 0.000000e+00 : f32
    %4 = vector.broadcast %cst : f32 to vector<1x16x16xf32>
    %c0_7 = arith.constant 0 : index
    %c0_8 = arith.constant 0 : index
    %c0_9 = arith.constant 0 : index
    %5 = vector.load %arg12[%c0_7, %c0_8, %c0_9] : memref<36x16x16xf32, #tpu.memory_space<vmem>>, vector<1x16x16xf32>
    tpu.vector_store %arg12[%c0_7, %c0_8, %c0_9], %4 {strides = array<i32>} : memref<36x16x16xf32, #tpu.memory_space<vmem>>, vector<1x16x16xf32>,
    %cst_10 = arith.constant 0.000000e+00 : f32
    %6 = vector.broadcast %cst_10 : f32 to vector<8x1x16xf32>
    %c1 = arith.constant 1 : index
    %c0_11 = arith.constant 0 : index
    %c0_12 = arith.constant 0 : index
    %7 = vector.load %arg12[%c1, %c0_11, %c0_12] : memref<36x16x16xf32, #tpu.memory_space<vmem>>, vector<8x1x16xf32>
    tpu.vector_store %arg12[%c1, %c0_11, %c0_12], %6 {strides = array<i32>} : memref<36x16x16xf32, #tpu.memory_space<vmem>>, vector<8x1x16xf32>,
    %cst_13 = arith.constant 0.000000e+00 : f32
    %8 = vector.broadcast %cst_13 : f32 to vector<8x7x16xf32>
    %c1_14 = arith.constant 1 : index
    %c9 = arith.constant 9 : index
    %c0_15 = arith.constant 0 : index
    %9 = vector.load %arg12[%c1_14, %c9, %c0_15] : memref<36x16x16xf32, #tpu.memory_space<vmem>>, vector<8x7x16xf32>
    tpu.vector_store %arg12[%c1_14, %c9, %c0_15], %8 {strides = array<i32>} : memref<36x16x16xf32, #tpu.memory_space<vmem>>, vector<8x7x16xf32>,
    %c0_16 = arith.constant 0 : index
    %c0_17 = arith.constant 0 : index
    %c0_18 = arith.constant 0 : index
    %c0_19 = arith.constant 0 : index
    %10 = vector.load %arg1[%c0_16, %c0_17, %c0_18, %c0_19] : memref<1x32x8x8xbf16, #tpu.memory_space<vmem>>, vector<1x8x8x8xbf16>
    %11 = vector.shape_cast %10 : vector<1x8x8x8xbf16> to vector<8x8x8xbf16>
    %12 = vector.shape_cast %11 : vector<8x8x8xbf16> to vector<64x8xbf16>
    %13 = arith.extf %12 : vector<64x8xbf16> to vector<64x8xf32>
    %14 = vector.broadcast %0 : vector<1x8xf32> to vector<64x8xf32>
    %15 = arith.mulf %13, %14 : vector<64x8xf32>
    %16 = vector.broadcast %1 : vector<1x8xf32> to vector<64x8xf32>
    %17 = arith.addf %15, %16 : vector<64x8xf32>
    %cst_20 = arith.constant 0.000000e+00 : f32
    %18 = vector.broadcast %cst_20 : f32 to vector<64x8xf32>
    %19 = arith.maximumf %17, %18 : vector<64x8xf32>
    %20 = arith.truncf %19 : vector<64x8xf32> to vector<64x8xbf16>
    %cst_21 = arith.constant dense<0.000000e+00> : vector<64x16xf32>
    %21 = tpu.matmul %20, %2, %cst_21 {dimension_numbers = #tpu.dot_dimension_numbers<[1], [0], [0], [1], [0, 0, 1, 1], [], []>} : vector<64x8xbf16>, vector<8x16xbf16>, vector<64x16xf32> -> vector<64x16xf32>
    %22 = vector.broadcast %3 : vector<1x16xf32> to vector<64x16xf32>
    %23 = arith.addf %21, %22 : vector<64x16xf32>
    %cst_22 = arith.constant 0.000000e+00 : f32
    %24 = vector.broadcast %cst_22 : f32 to vector<64x16xf32>
    %25 = arith.maximumf %23, %24 : vector<64x16xf32>
    %26 = vector.shape_cast %25 : vector<64x16xf32> to vector<8x8x16xf32>
    %c1_23 = arith.constant 1 : index
    %c1_24 = arith.constant 1 : index
    %c0_25 = arith.constant 0 : index
    %27 = vector.load %arg12[%c1_23, %c1_24, %c0_25] : memref<36x16x16xf32, #tpu.memory_space<vmem>>, vector<8x8x16xf32>
    tpu.vector_store %arg12[%c1_23, %c1_24, %c0_25], %26 {strides = array<i32>} : memref<36x16x16xf32, #tpu.memory_space<vmem>>, vector<8x8x16xf32>,
    %cst_26 = arith.constant 0.000000e+00 : f32
    %28 = vector.broadcast %cst_26 : f32 to vector<1x16x16xf32>
    %c9_27 = arith.constant 9 : index
    %c0_28 = arith.constant 0 : index
    %c0_29 = arith.constant 0 : index
    %29 = vector.load %arg12[%c9_27, %c0_28, %c0_29] : memref<36x16x16xf32, #tpu.memory_space<vmem>>, vector<1x16x16xf32>
    tpu.vector_store %arg12[%c9_27, %c0_28, %c0_29], %28 {strides = array<i32>} : memref<36x16x16xf32, #tpu.memory_space<vmem>>, vector<1x16x16xf32>,
    %cst_30 = arith.constant 0.000000e+00 : f32
    %30 = vector.broadcast %cst_30 : f32 to vector<8x8x16xf32>
    %c10 = arith.constant 10 : index
    %c8 = arith.constant 8 : index
    %c0_31 = arith.constant 0 : index
    %31 = vector.load %arg12[%c10, %c8, %c0_31] : memref<36x16x16xf32, #tpu.memory_space<vmem>>, vector<8x8x16xf32>
    tpu.vector_store %arg12[%c10, %c8, %c0_31], %30 {strides = array<i32>} : memref<36x16x16xf32, #tpu.memory_space<vmem>>, vector<8x8x16xf32>,
    %c0_32 = arith.constant 0 : index
    %c8_33 = arith.constant 8 : index
    %c0_34 = arith.constant 0 : index
    %c0_35 = arith.constant 0 : index
    %32 = vector.load %arg1[%c0_32, %c8_33, %c0_34, %c0_35] : memref<1x32x8x8xbf16, #tpu.memory_space<vmem>>, vector<1x8x8x8xbf16>
    %33 = vector.shape_cast %32 : vector<1x8x8x8xbf16> to vector<8x8x8xbf16>
    %34 = vector.shape_cast %33 : vector<8x8x8xbf16> to vector<64x8xbf16>
    %35 = arith.extf %34 : vector<64x8xbf16> to vector<64x8xf32>
    %36 = vector.broadcast %0 : vector<1x8xf32> to vector<64x8xf32>
    %37 = arith.mulf %35, %36 : vector<64x8xf32>
    %38 = vector.broadcast %1 : vector<1x8xf32> to vector<64x8xf32>
    %39 = arith.addf %37, %38 : vector<64x8xf32>
    %cst_36 = arith.constant 0.000000e+00 : f32
    %40 = vector.broadcast %cst_36 : f32 to vector<64x8xf32>
    %41 = arith.maximumf %39, %40 : vector<64x8xf32>
    %42 = arith.truncf %41 : vector<64x8xf32> to vector<64x8xbf16>
    %cst_37 = arith.constant dense<0.000000e+00> : vector<64x16xf32>
    %43 = tpu.matmul %42, %2, %cst_37 {dimension_numbers = #tpu.dot_dimension_numbers<[1], [0], [0], [1], [0, 0, 1, 1], [], []>} : vector<64x8xbf16>, vector<8x16xbf16>, vector<64x16xf32> -> vector<64x16xf32>
    %44 = vector.broadcast %3 : vector<1x16xf32> to vector<64x16xf32>
    %45 = arith.addf %43, %44 : vector<64x16xf32>
    %cst_38 = arith.constant 0.000000e+00 : f32
    %46 = vector.broadcast %cst_38 : f32 to vector<64x16xf32>
    %47 = arith.maximumf %45, %46 : vector<64x16xf32>
    %48 = vector.shape_cast %47 : vector<64x16xf32> to vector<8x8x16xf32>
    %c10_39 = arith.constant 10 : index
    %c0_40 = arith.constant 0 : index
    %c0_41 = arith.constant 0 : index
    %49 = vector.load %arg12[%c10_39, %c0_40, %c0_41] : memref<36x16x16xf32, #tpu.memory_space<vmem>>, vector<8x8x16xf32>
    tpu.vector_store %arg12[%c10_39, %c0_40, %c0_41], %48 {strides = array<i32>} : memref<36x16x16xf32, #tpu.memory_space<vmem>>, vector<8x8x16xf32>,
    %cst_42 = arith.constant 0.000000e+00 : f32
    %50 = vector.broadcast %cst_42 : f32 to vector<1x16x16xf32>
    %c26 = arith.constant 26 : index
    %c0_43 = arith.constant 0 : index
    %c0_44 = arith.constant 0 : index
    %51 = vector.load %arg12[%c26, %c0_43, %c0_44] : memref<36x16x16xf32, #tpu.memory_space<vmem>>, vector<1x16x16xf32>
    tpu.vector_store %arg12[%c26, %c0_43, %c0_44], %50 {strides = array<i32>} : memref<36x16x16xf32, #tpu.memory_space<vmem>>, vector<1x16x16xf32>,
    %cst_45 = arith.constant 0.000000e+00 : f32
    %52 = vector.broadcast %cst_45 : f32 to vector<8x1x16xf32>
    %c18 = arith.constant 18 : index
    %c0_46 = arith.constant 0 : index
    %c0_47 = arith.constant 0 : index
    %53 = vector.load %arg12[%c18, %c0_46, %c0_47] : memref<36x16x16xf32, #tpu.memory_space<vmem>>, vector<8x1x16xf32>
    tpu.vector_store %arg12[%c18, %c0_46, %c0_47], %52 {strides = array<i32>} : memref<36x16x16xf32, #tpu.memory_space<vmem>>, vector<8x1x16xf32>,
    %cst_48 = arith.constant 0.000000e+00 : f32
    %54 = vector.broadcast %cst_48 : f32 to vector<8x7x16xf32>
    %c18_49 = arith.constant 18 : index
    %c9_50 = arith.constant 9 : index
    %c0_51 = arith.constant 0 : index
    %55 = vector.load %arg12[%c18_49, %c9_50, %c0_51] : memref<36x16x16xf32, #tpu.memory_space<vmem>>, vector<8x7x16xf32>
    tpu.vector_store %arg12[%c18_49, %c9_50, %c0_51], %54 {strides = array<i32>} : memref<36x16x16xf32, #tpu.memory_space<vmem>>, vector<8x7x16xf32>,
    %c0_52 = arith.constant 0 : index
    %c16 = arith.constant 16 : index
    %c0_53 = arith.constant 0 : index
    %c0_54 = arith.constant 0 : index
    %56 = vector.load %arg1[%c0_52, %c16, %c0_53, %c0_54] : memref<1x32x8x8xbf16, #tpu.memory_space<vmem>>, vector<1x8x8x8xbf16>
    %57 = vector.shape_cast %56 : vector<1x8x8x8xbf16> to vector<8x8x8xbf16>
    %58 = vector.shape_cast %57 : vector<8x8x8xbf16> to vector<64x8xbf16>
    %59 = arith.extf %58 : vector<64x8xbf16> to vector<64x8xf32>
    %60 = vector.broadcast %0 : vector<1x8xf32> to vector<64x8xf32>
    %61 = arith.mulf %59, %60 : vector<64x8xf32>
    %62 = vector.broadcast %1 : vector<1x8xf32> to vector<64x8xf32>
    %63 = arith.addf %61, %62 : vector<64x8xf32>
    %cst_55 = arith.constant 0.000000e+00 : f32
    %64 = vector.broadcast %cst_55 : f32 to vector<64x8xf32>
    %65 = arith.maximumf %63, %64 : vector<64x8xf32>
    %66 = arith.truncf %65 : vector<64x8xf32> to vector<64x8xbf16>
    %cst_56 = arith.constant dense<0.000000e+00> : vector<64x16xf32>
    %67 = tpu.matmul %66, %2, %cst_56 {dimension_numbers = #tpu.dot_dimension_numbers<[1], [0], [0], [1], [0, 0, 1, 1], [], []>} : vector<64x8xbf16>, vector<8x16xbf16>, vector<64x16xf32> -> vector<64x16xf32>
    %68 = vector.broadcast %3 : vector<1x16xf32> to vector<64x16xf32>
    %69 = arith.addf %67, %68 : vector<64x16xf32>
    %cst_57 = arith.constant 0.000000e+00 : f32
    %70 = vector.broadcast %cst_57 : f32 to vector<64x16xf32>
    %71 = arith.maximumf %69, %70 : vector<64x16xf32>
    %72 = vector.shape_cast %71 : vector<64x16xf32> to vector<8x8x16xf32>
    %c18_58 = arith.constant 18 : index
    %c1_59 = arith.constant 1 : index
    %c0_60 = arith.constant 0 : index
    %73 = vector.load %arg12[%c18_58, %c1_59, %c0_60] : memref<36x16x16xf32, #tpu.memory_space<vmem>>, vector<8x8x16xf32>
    tpu.vector_store %arg12[%c18_58, %c1_59, %c0_60], %72 {strides = array<i32>} : memref<36x16x16xf32, #tpu.memory_space<vmem>>, vector<8x8x16xf32>,
    %cst_61 = arith.constant 0.000000e+00 : f32
    %74 = vector.broadcast %cst_61 : f32 to vector<1x16x16xf32>
    %c35 = arith.constant 35 : index
    %c0_62 = arith.constant 0 : index
    %c0_63 = arith.constant 0 : index
    %75 = vector.load %arg12[%c35, %c0_62, %c0_63] : memref<36x16x16xf32, #tpu.memory_space<vmem>>, vector<1x16x16xf32>
    tpu.vector_store %arg12[%c35, %c0_62, %c0_63], %74 {strides = array<i32>} : memref<36x16x16xf32, #tpu.memory_space<vmem>>, vector<1x16x16xf32>,
    %cst_64 = arith.constant 0.000000e+00 : f32
    %76 = vector.broadcast %cst_64 : f32 to vector<8x8x16xf32>
    %c27 = arith.constant 27 : index
    %c8_65 = arith.constant 8 : index
    %c0_66 = arith.constant 0 : index
    %77 = vector.load %arg12[%c27, %c8_65, %c0_66] : memref<36x16x16xf32, #tpu.memory_space<vmem>>, vector<8x8x16xf32>
    tpu.vector_store %arg12[%c27, %c8_65, %c0_66], %76 {strides = array<i32>} : memref<36x16x16xf32, #tpu.memory_space<vmem>>, vector<8x8x16xf32>,
    %c0_67 = arith.constant 0 : index
    %c24 = arith.constant 24 : index
    %c0_68 = arith.constant 0 : index
    %c0_69 = arith.constant 0 : index
    %78 = vector.load %arg1[%c0_67, %c24, %c0_68, %c0_69] : memref<1x32x8x8xbf16, #tpu.memory_space<vmem>>, vector<1x8x8x8xbf16>
    %79 = vector.shape_cast %78 : vector<1x8x8x8xbf16> to vector<8x8x8xbf16>
    %80 = vector.shape_cast %79 : vector<8x8x8xbf16> to vector<64x8xbf16>
    %81 = arith.extf %80 : vector<64x8xbf16> to vector<64x8xf32>
    %82 = vector.broadcast %0 : vector<1x8xf32> to vector<64x8xf32>
    %83 = arith.mulf %81, %82 : vector<64x8xf32>
    %84 = vector.broadcast %1 : vector<1x8xf32> to vector<64x8xf32>
    %85 = arith.addf %83, %84 : vector<64x8xf32>
    %cst_70 = arith.constant 0.000000e+00 : f32
    %86 = vector.broadcast %cst_70 : f32 to vector<64x8xf32>
    %87 = arith.maximumf %85, %86 : vector<64x8xf32>
    %88 = arith.truncf %87 : vector<64x8xf32> to vector<64x8xbf16>
    %cst_71 = arith.constant dense<0.000000e+00> : vector<64x16xf32>
    %89 = tpu.matmul %88, %2, %cst_71 {dimension_numbers = #tpu.dot_dimension_numbers<[1], [0], [0], [1], [0, 0, 1, 1], [], []>} : vector<64x8xbf16>, vector<8x16xbf16>, vector<64x16xf32> -> vector<64x16xf32>
    %90 = vector.broadcast %3 : vector<1x16xf32> to vector<64x16xf32>
    %91 = arith.addf %89, %90 : vector<64x16xf32>
    %cst_72 = arith.constant 0.000000e+00 : f32
    %92 = vector.broadcast %cst_72 : f32 to vector<64x16xf32>
    %93 = arith.maximumf %91, %92 : vector<64x16xf32>
    %94 = vector.shape_cast %93 : vector<64x16xf32> to vector<8x8x16xf32>
    %c27_73 = arith.constant 27 : index
    %c0_74 = arith.constant 0 : index
    %c0_75 = arith.constant 0 : index
    %95 = vector.load %arg12[%c27_73, %c0_74, %c0_75] : memref<36x16x16xf32, #tpu.memory_space<vmem>>, vector<8x8x16xf32>
    tpu.vector_store %arg12[%c27_73, %c0_74, %c0_75], %94 {strides = array<i32>} : memref<36x16x16xf32, #tpu.memory_space<vmem>>, vector<8x8x16xf32>,
    %cst_76 = arith.constant 0.000000e+00 : f32
    %96 = vector.broadcast %cst_76 : f32 to vector<64x16xf32>
    %c0_77 = arith.constant 0 : index
    %c0_78 = arith.constant 0 : index
    %c0_79 = arith.constant 0 : index
    %97 = vector.load %arg12[%c0_77, %c0_78, %c0_79] : memref<36x16x16xf32, #tpu.memory_space<vmem>>, vector<8x8x16xf32>
    %98 = vector.shape_cast %97 : vector<8x8x16xf32> to vector<64x16xf32>
    %99 = arith.truncf %98 : vector<64x16xf32> to vector<64x16xbf16>
    %c0_80 = arith.constant 0 : index
    %c0_81 = arith.constant 0 : index
    %c0_82 = arith.constant 0 : index
    %c0_83 = arith.constant 0 : index
    %100 = vector.load %arg7[%c0_80, %c0_81, %c0_82, %c0_83] : memref<9x1x16x16xbf16, #tpu.memory_space<vmem>>, vector<1x1x16x16xbf16>
    %101 = vector.shape_cast %100 : vector<1x1x16x16xbf16> to vector<16x16xbf16>
    %cst_84 = arith.constant dense<0.000000e+00> : vector<64x16xf32>
    %102 = tpu.matmul %99, %101, %cst_84 {dimension_numbers = #tpu.dot_dimension_numbers<[1], [0], [0], [1], [0, 0, 1, 1], [], []>} : vector<64x16xbf16>, vector<16x16xbf16>, vector<64x16xf32> -> vector<64x16xf32>
    %103 = arith.addf %96, %102 : vector<64x16xf32>
    %c9_85 = arith.constant 9 : index
    %c0_86 = arith.constant 0 : index
    %c0_87 = arith.constant 0 : index
    %104 = vector.load %arg12[%c9_85, %c0_86, %c0_87] : memref<36x16x16xf32, #tpu.memory_space<vmem>>, vector<8x8x16xf32>
    %105 = vector.shape_cast %104 : vector<8x8x16xf32> to vector<64x16xf32>
    %106 = arith.truncf %105 : vector<64x16xf32> to vector<64x16xbf16>
    %c1_88 = arith.constant 1 : index
    %c0_89 = arith.constant 0 : index
    %c0_90 = arith.constant 0 : index
    %c0_91 = arith.constant 0 : index
    %107 = vector.load %arg7[%c1_88, %c0_89, %c0_90, %c0_91] : memref<9x1x16x16xbf16, #tpu.memory_space<vmem>>, vector<1x1x16x16xbf16>
    %108 = vector.shape_cast %107 : vector<1x1x16x16xbf16> to vector<16x16xbf16>
    %cst_92 = arith.constant dense<0.000000e+00> : vector<64x16xf32>
    %109 = tpu.matmul %106, %108, %cst_92 {dimension_numbers = #tpu.dot_dimension_numbers<[1], [0], [0], [1], [0, 0, 1, 1], [], []>} : vector<64x16xbf16>, vector<16x16xbf16>, vector<64x16xf32> -> vector<64x16xf32>
    %110 = arith.addf %103, %109 : vector<64x16xf32>
    %c0_93 = arith.constant 0 : index
    %c1_94 = arith.constant 1 : index
    %c0_95 = arith.constant 0 : index
    %111 = vector.load %arg12[%c0_93, %c1_94, %c0_95] : memref<36x16x16xf32, #tpu.memory_space<vmem>>, vector<8x8x16xf32>
    %112 = vector.shape_cast %111 : vector<8x8x16xf32> to vector<64x16xf32>
    %113 = arith.truncf %112 : vector<64x16xf32> to vector<64x16xbf16>
    %c2 = arith.constant 2 : index
    %c0_96 = arith.constant 0 : index
    %c0_97 = arith.constant 0 : index
    %c0_98 = arith.constant 0 : index
    %114 = vector.load %arg7[%c2, %c0_96, %c0_97, %c0_98] : memref<9x1x16x16xbf16, #tpu.memory_space<vmem>>, vector<1x1x16x16xbf16>
    %115 = vector.shape_cast %114 : vector<1x1x16x16xbf16> to vector<16x16xbf16>
    %cst_99 = arith.constant dense<0.000000e+00> : vector<64x16xf32>
    %116 = tpu.matmul %113, %115, %cst_99 {dimension_numbers = #tpu.dot_dimension_numbers<[1], [0], [0], [1], [0, 0, 1, 1], [], []>} : vector<64x16xbf16>, vector<16x16xbf16>, vector<64x16xf32> -> vector<64x16xf32>
    %117 = arith.addf %110, %116 : vector<64x16xf32>
    %c18_100 = arith.constant 18 : index
    %c0_101 = arith.constant 0 : index
    %c0_102 = arith.constant 0 : index
    %118 = vector.load %arg12[%c18_100, %c0_101, %c0_102] : memref<36x16x16xf32, #tpu.memory_space<vmem>>, vector<8x8x16xf32>
    %119 = vector.shape_cast %118 : vector<8x8x16xf32> to vector<64x16xf32>
    %120 = arith.truncf %119 : vector<64x16xf32> to vector<64x16xbf16>
    %c3 = arith.constant 3 : index
    %c0_103 = arith.constant 0 : index
    %c0_104 = arith.constant 0 : index
    %c0_105 = arith.constant 0 : index
    %121 = vector.load %arg7[%c3, %c0_103, %c0_104, %c0_105] : memref<9x1x16x16xbf16, #tpu.memory_space<vmem>>, vector<1x1x16x16xbf16>
    %122 = vector.shape_cast %121 : vector<1x1x16x16xbf16> to vector<16x16xbf16>
    %cst_106 = arith.constant dense<0.000000e+00> : vector<64x16xf32>
    %123 = tpu.matmul %120, %122, %cst_106 {dimension_numbers = #tpu.dot_dimension_numbers<[1], [0], [0], [1], [0, 0, 1, 1], [], []>} : vector<64x16xbf16>, vector<16x16xbf16>, vector<64x16xf32> -> vector<64x16xf32>
    %124 = arith.addf %117, %123 : vector<64x16xf32>
    %c27_107 = arith.constant 27 : index
    %c0_108 = arith.constant 0 : index
    %c0_109 = arith.constant 0 : index
    %125 = vector.load %arg12[%c27_107, %c0_108, %c0_109] : memref<36x16x16xf32, #tpu.memory_space<vmem>>, vector<8x8x16xf32>
    %126 = vector.shape_cast %125 : vector<8x8x16xf32> to vector<64x16xf32>
    %127 = arith.truncf %126 : vector<64x16xf32> to vector<64x16xbf16>
    %c4 = arith.constant 4 : index
    %c0_110 = arith.constant 0 : index
    %c0_111 = arith.constant 0 : index
    %c0_112 = arith.constant 0 : index
    %128 = vector.load %arg7[%c4, %c0_110, %c0_111, %c0_112] : memref<9x1x16x16xbf16, #tpu.memory_space<vmem>>, vector<1x1x16x16xbf16>
    %129 = vector.shape_cast %128 : vector<1x1x16x16xbf16> to vector<16x16xbf16>
    %cst_113 = arith.constant dense<0.000000e+00> : vector<64x16xf32>
    %130 = tpu.matmul %127, %129, %cst_113 {dimension_numbers = #tpu.dot_dimension_numbers<[1], [0], [0], [1], [0, 0, 1, 1], [], []>} : vector<64x16xbf16>, vector<16x16xbf16>, vector<64x16xf32> -> vector<64x16xf32>
    %131 = arith.addf %124, %130 : vector<64x16xf32>
    %c18_114 = arith.constant 18 : index
    %c1_115 = arith.constant 1 : index
    %c0_116 = arith.constant 0 : index
    %132 = vector.load %arg12[%c18_114, %c1_115, %c0_116] : memref<36x16x16xf32, #tpu.memory_space<vmem>>, vector<8x8x16xf32>
    %133 = vector.shape_cast %132 : vector<8x8x16xf32> to vector<64x16xf32>
    %134 = arith.truncf %133 : vector<64x16xf32> to vector<64x16xbf16>
    %c5 = arith.constant 5 : index
    %c0_117 = arith.constant 0 : index
    %c0_118 = arith.constant 0 : index
    %c0_119 = arith.constant 0 : index
    %135 = vector.load %arg7[%c5, %c0_117, %c0_118, %c0_119] : memref<9x1x16x16xbf16, #tpu.memory_space<vmem>>, vector<1x1x16x16xbf16>
    %136 = vector.shape_cast %135 : vector<1x1x16x16xbf16> to vector<16x16xbf16>
    %cst_120 = arith.constant dense<0.000000e+00> : vector<64x16xf32>
    %137 = tpu.matmul %134, %136, %cst_120 {dimension_numbers = #tpu.dot_dimension_numbers<[1], [0], [0], [1], [0, 0, 1, 1], [], []>} : vector<64x16xbf16>, vector<16x16xbf16>, vector<64x16xf32> -> vector<64x16xf32>
    %138 = arith.addf %131, %137 : vector<64x16xf32>
    %c1_121 = arith.constant 1 : index
    %c0_122 = arith.constant 0 : index
    %c0_123 = arith.constant 0 : index
    %139 = vector.load %arg12[%c1_121, %c0_122, %c0_123] : memref<36x16x16xf32, #tpu.memory_space<vmem>>, vector<8x8x16xf32>
    %140 = vector.shape_cast %139 : vector<8x8x16xf32> to vector<64x16xf32>
    %141 = arith.truncf %140 : vector<64x16xf32> to vector<64x16xbf16>
    %c6 = arith.constant 6 : index
    %c0_124 = arith.constant 0 : index
    %c0_125 = arith.constant 0 : index
    %c0_126 = arith.constant 0 : index
    %142 = vector.load %arg7[%c6, %c0_124, %c0_125, %c0_126] : memref<9x1x16x16xbf16, #tpu.memory_space<vmem>>, vector<1x1x16x16xbf16>
    %143 = vector.shape_cast %142 : vector<1x1x16x16xbf16> to vector<16x16xbf16>
    %cst_127 = arith.constant dense<0.000000e+00> : vector<64x16xf32>
    %144 = tpu.matmul %141, %143, %cst_127 {dimension_numbers = #tpu.dot_dimension_numbers<[1], [0], [0], [1], [0, 0, 1, 1], [], []>} : vector<64x16xbf16>, vector<16x16xbf16>, vector<64x16xf32> -> vector<64x16xf32>
    %145 = arith.addf %138, %144 : vector<64x16xf32>
    %c10_128 = arith.constant 10 : index
    %c0_129 = arith.constant 0 : index
    %c0_130 = arith.constant 0 : index
    %146 = vector.load %arg12[%c10_128, %c0_129, %c0_130] : memref<36x16x16xf32, #tpu.memory_space<vmem>>, vector<8x8x16xf32>
    %147 = vector.shape_cast %146 : vector<8x8x16xf32> to vector<64x16xf32>
    %148 = arith.truncf %147 : vector<64x16xf32> to vector<64x16xbf16>
    %c7 = arith.constant 7 : index
    %c0_131 = arith.constant 0 : index
    %c0_132 = arith.constant 0 : index
    %c0_133 = arith.constant 0 : index
    %149 = vector.load %arg7[%c7, %c0_131, %c0_132, %c0_133] : memref<9x1x16x16xbf16, #tpu.memory_space<vmem>>, vector<1x1x16x16xbf16>
    %150 = vector.shape_cast %149 : vector<1x1x16x16xbf16> to vector<16x16xbf16>
    %cst_134 = arith.constant dense<0.000000e+00> : vector<64x16xf32>
    %151 = tpu.matmul %148, %150, %cst_134 {dimension_numbers = #tpu.dot_dimension_numbers<[1], [0], [0], [1], [0, 0, 1, 1], [], []>} : vector<64x16xbf16>, vector<16x16xbf16>, vector<64x16xf32> -> vector<64x16xf32>
    %152 = arith.addf %145, %151 : vector<64x16xf32>
    %c1_135 = arith.constant 1 : index
    %c1_136 = arith.constant 1 : index
    %c0_137 = arith.constant 0 : index
    %153 = vector.load %arg12[%c1_135, %c1_136, %c0_137] : memref<36x16x16xf32, #tpu.memory_space<vmem>>, vector<8x8x16xf32>
    %154 = vector.shape_cast %153 : vector<8x8x16xf32> to vector<64x16xf32>
    %155 = arith.truncf %154 : vector<64x16xf32> to vector<64x16xbf16>
    %c8_138 = arith.constant 8 : index
    %c0_139 = arith.constant 0 : index
    %c0_140 = arith.constant 0 : index
    %c0_141 = arith.constant 0 : index
    %156 = vector.load %arg7[%c8_138, %c0_139, %c0_140, %c0_141] : memref<9x1x16x16xbf16, #tpu.memory_space<vmem>>, vector<1x1x16x16xbf16>
    %157 = vector.shape_cast %156 : vector<1x1x16x16xbf16> to vector<16x16xbf16>
    %cst_142 = arith.constant dense<0.000000e+00> : vector<64x16xf32>
    %158 = tpu.matmul %155, %157, %cst_142 {dimension_numbers = #tpu.dot_dimension_numbers<[1], [0], [0], [1], [0, 0, 1, 1], [], []>} : vector<64x16xbf16>, vector<16x16xbf16>, vector<64x16xf32> -> vector<64x16xf32>
    %159 = arith.addf %152, %158 : vector<64x16xf32>
    %c0_143 = arith.constant 0 : index
    %c0_144 = arith.constant 0 : index
    %160 = vector.load %arg8[%c0_143, %c0_144] : memref<1x16xf32, #tpu.memory_space<vmem>>, vector<1x16xf32>
    %161 = vector.broadcast %160 : vector<1x16xf32> to vector<64x16xf32>
    %162 = arith.addf %159, %161 : vector<64x16xf32>
    %cst_145 = arith.constant 0.000000e+00 : f32
    %163 = vector.broadcast %cst_145 : f32 to vector<64x16xf32>
    %164 = arith.maximumf %162, %163 : vector<64x16xf32>
    %165 = arith.truncf %164 : vector<64x16xf32> to vector<64x16xbf16>
    %c0_146 = arith.constant 0 : index
    %c0_147 = arith.constant 0 : index
    %166 = vector.load %arg9[%c0_146, %c0_147] : memref<16x16xbf16, #tpu.memory_space<vmem>>, vector<16x16xbf16>
    %cst_148 = arith.constant dense<0.000000e+00> : vector<64x16xf32>
    %167 = tpu.matmul %165, %166, %cst_148 {dimension_numbers = #tpu.dot_dimension_numbers<[1], [0], [0], [1], [0, 0, 1, 1], [], []>} : vector<64x16xbf16>, vector<16x16xbf16>, vector<64x16xf32> -> vector<64x16xf32>
    %c0_149 = arith.constant 0 : index
    %c0_150 = arith.constant 0 : index
    %c0_151 = arith.constant 0 : index
    %168 = vector.load %arg2[%c0_149, %c0_150, %c0_151] : memref<1x64x8xbf16, #tpu.memory_space<vmem>>, vector<1x64x8xbf16>
    %169 = vector.shape_cast %168 : vector<1x64x8xbf16> to vector<64x8xbf16>
    %c0_152 = arith.constant 0 : index
    %c0_153 = arith.constant 0 : index
    %170 = vector.load %arg10[%c0_152, %c0_153] : memref<8x16xbf16, #tpu.memory_space<vmem>>, vector<8x16xbf16>
    %cst_154 = arith.constant dense<0.000000e+00> : vector<64x16xf32>
    %171 = tpu.matmul %169, %170, %cst_154 {dimension_numbers = #tpu.dot_dimension_numbers<[1], [0], [0], [1], [0, 0, 1, 1], [], []>} : vector<64x8xbf16>, vector<8x16xbf16>, vector<64x16xf32> -> vector<64x16xf32>
    %172 = arith.addf %171, %167 : vector<64x16xf32>
    %c0_155 = arith.constant 0 : index
    %c0_156 = arith.constant 0 : index
    %c0_157 = arith.constant 0 : index
    %173 = vector.load %arg11[%c0_155, %c0_156, %c0_157] : memref<1x64x16xf32, #tpu.memory_space<vmem>>, vector<1x64x16xf32>
    %174 = vector.shape_cast %173 : vector<1x64x16xf32> to vector<64x16xf32>
    %175 = vector.shape_cast %172 : vector<64x16xf32> to vector<1x64x16xf32>
    tpu.vector_store %arg11[%c0_155, %c0_156, %c0_157], %175 {strides = array<i32>} : memref<1x64x16xf32, #tpu.memory_space<vmem>>, vector<1x64x16xf32>,
    return
  }
  func.func @transform_0(%arg0: i32) -> (i32, i32, i32, i32) {
    %c0_i32 = arith.constant 0 : i32
    %c0_i32_0 = arith.constant 0 : i32
    %c0_i32_1 = arith.constant 0 : i32
    %c0_i32_2 = arith.constant 0 : i32
    return %arg0, %c0_i32, %c0_i32_0, %c0_i32_1 : i32, i32, i32, i32
  }
  func.func @transform_1(%arg0: i32) -> (i32, i32, i32) {
    %c0_i32 = arith.constant 0 : i32
    %c0_i32_0 = arith.constant 0 : i32
    %c0_i32_1 = arith.constant 0 : i32
    return %arg0, %c0_i32, %c0_i32_0 : i32, i32, i32
  }
  func.func @transform_2(%arg0: i32) -> (i32, i32) {
    %c0_i32 = arith.constant 0 : i32
    %c0_i32_0 = arith.constant 0 : i32
    %c0_i32_1 = arith.constant 0 : i32
    return %c0_i32, %c0_i32_0 : i32, i32
  }
  func.func @transform_3(%arg0: i32) -> (i32, i32) {
    %c0_i32 = arith.constant 0 : i32
    %c0_i32_0 = arith.constant 0 : i32
    %c0_i32_1 = arith.constant 0 : i32
    return %c0_i32, %c0_i32_0 : i32, i32
  }
  func.func @transform_4(%arg0: i32) -> (i32, i32) {
    %c0_i32 = arith.constant 0 : i32
    %c0_i32_0 = arith.constant 0 : i32
    %c0_i32_1 = arith.constant 0 : i32
    return %c0_i32, %c0_i32_0 : i32, i32
  }
  func.func @transform_5(%arg0: i32) -> (i32, i32) {
    %c0_i32 = arith.constant 0 : i32
    %c0_i32_0 = arith.constant 0 : i32
    %c0_i32_1 = arith.constant 0 : i32
    return %c0_i32, %c0_i32_0 : i32, i32
  }
  func.func @transform_6(%arg0: i32) -> (i32, i32, i32, i32) {
    %c0_i32 = arith.constant 0 : i32
    %c0_i32_0 = arith.constant 0 : i32
    %c0_i32_1 = arith.constant 0 : i32
    %c0_i32_2 = arith.constant 0 : i32
    %c0_i32_3 = arith.constant 0 : i32
    return %c0_i32, %c0_i32_0, %c0_i32_1, %c0_i32_2 : i32, i32, i32, i32
  }
  func.func @transform_7(%arg0: i32) -> (i32, i32) {
    %c0_i32 = arith.constant 0 : i32
    %c0_i32_0 = arith.constant 0 : i32
    %c0_i32_1 = arith.constant 0 : i32
    return %c0_i32, %c0_i32_0 : i32, i32
  }
  func.func @transform_8(%arg0: i32) -> (i32, i32) {
    %c0_i32 = arith.constant 0 : i32
    %c0_i32_0 = arith.constant 0 : i32
    %c0_i32_1 = arith.constant 0 : i32
    return %c0_i32, %c0_i32_0 : i32, i32
  }
  func.func @transform_9(%arg0: i32) -> (i32, i32) {
    %c0_i32 = arith.constant 0 : i32
    %c0_i32_0 = arith.constant 0 : i32
    %c0_i32_1 = arith.constant 0 : i32
    return %c0_i32, %c0_i32_0 : i32, i32
  }
  func.func @transform_10(%arg0: i32) -> (i32, i32, i32) {
    %c0_i32 = arith.constant 0 : i32
    %c0_i32_0 = arith.constant 0 : i32
    %c0_i32_1 = arith.constant 0 : i32
    return %arg0, %c0_i32, %c0_i32_0 : i32, i32, i32
  }
}

</mosaic_0001>

<llo_original>
// kernel: tpu_custom_call.1
$region0: #{tpu_custom_call.1}
  #allocation0 [shape = 'u32[]', space=smem, size = 0x4, offset = 0x4, fixed_abs, tag = 'smem constant byte address 0x4 - core index']
  #allocation1 [shape = 'u32[144,128]{1,0:T(1,128)}', space=vmem, size = 0x12000, scoped, tag = 'internal scratch']
  #allocation2 [shape = 'f32[36,16,16]{2,1,0:T(8,128)}', space=vmem, size = 0x48000, scoped, tag = 'scratch operand']
  %s0 = inlined_call_operand.hbm [shape: bf16[2,32,8,8], index: 0, kind: input, shape index: {}]
  %s1 = inlined_call_operand.hbm [shape: bf16[2,64,8], index: 1, kind: input, shape index: {}]
  %s2 = inlined_call_operand.hbm [shape: f32[1,8], index: 2, kind: input, shape index: {}]
  %s3 = inlined_call_operand.hbm [shape: f32[1,8], index: 3, kind: input, shape index: {}]
  %s4 = inlined_call_operand.hbm [shape: bf16[8,16], index: 4, kind: input, shape index: {}]
  %s5 = inlined_call_operand.hbm [shape: f32[1,16], index: 5, kind: input, shape index: {}]
  %s6 = inlined_call_operand.hbm [shape: bf16[9,1,16,16], index: 6, kind: input, shape index: {}]
  %s7 = inlined_call_operand.hbm [shape: f32[1,16], index: 7, kind: input, shape index: {}]
  %s8 = inlined_call_operand.hbm [shape: bf16[16,16], index: 8, kind: input, shape index: {}]
  %s9 = inlined_call_operand.hbm [shape: bf16[8,16], index: 9, kind: input, shape index: {}]
  %s10 = inlined_call_operand.hbm [shape: f32[2,64,16], index: 10, kind: output, shape index: {}]
  %s11 = sld [smem:[#allocation0]]
  $region113: #{tpu_custom_call.1} parent=0
    _
  %s13 = ssub.s32 1, %s11
  %s14 = scalar_select 0, %s13, %s11
  $region1: #{tpu_custom_call.1} parent=0
    #allocation3 [shape = 'u8[131072]{0}', space=vmem, size = 0x20000, scoped, tag = 'input window, operand 0']
    #allocation4 [shape = 's32[2]{0}', space=sflag, size = 0x8, scoped, tag = 'scoped memory for tpu_custom_call.1']
    #allocation5 [shape = 's32[2]{0}', space=sflag, size = 0x8, scoped, tag = 'scoped memory for tpu_custom_call.1']
    #allocation6 [shape = 'u8[32768]{0}', space=vmem, size = 0x8000, scoped, tag = 'input window, operand 1']
    #allocation7 [shape = 's32[2]{0}', space=sflag, size = 0x8, scoped, tag = 'scoped memory for tpu_custom_call.1']
    #allocation8 [shape = 'u8[512]{0}', space=vmem, size = 0x400, scoped, tag = 'input window, operand 2, single buffered']
    #allocation9 [shape = 'u8[512]{0}', space=vmem, size = 0x400, scoped, tag = 'input window, operand 3, single buffered']
    #allocation10 [shape = 's32[1]{0}', space=sflag, size = 0x4, scoped, tag = 'scoped memory for tpu_custom_call.1']
    #allocation11 [shape = 'u8[2048]{0}', space=vmem, size = 0x800, scoped, tag = 'input window, operand 4, single buffered']
    #allocation12 [shape = 'u8[512]{0}', space=vmem, size = 0x400, scoped, tag = 'input window, operand 5, single buffered']
    #allocation13 [shape = 's32[1]{0}', space=sflag, size = 0x4, scoped, tag = 'scoped memory for tpu_custom_call.1']
    #allocation14 [shape = 'u8[36864]{0}', space=vmem, size = 0x9000, scoped, tag = 'input window, operand 6, single buffered']
    #allocation15 [shape = 'u8[512]{0}', space=vmem, size = 0x400, scoped, tag = 'input window, operand 7, single buffered']
    #allocation16 [shape = 's32[1]{0}', space=sflag, size = 0x4, scoped, tag = 'scoped memory for tpu_custom_call.1']
    #allocation17 [shape = 'u8[4096]{0}', space=vmem, size = 0x1000, scoped, tag = 'input window, operand 8, single buffered']
    #allocation18 [shape = 'u8[2048]{0}', space=vmem, size = 0x800, scoped, tag = 'input window, operand 9, single buffered']
    #allocation19 [shape = 's32[1]{0}', space=sflag, size = 0x4, scoped, tag = 'scoped memory for tpu_custom_call.1']
    #allocation20 [shape = 'u8[65536]{0}', space=vmem, size = 0x10000, scoped, tag = 'output window, operand 0']
    %15 = vsyncpa [#allocation4], 0
    %s16 = scalar_lea.sflag [#allocation4], 1
    %17 = vsyncpa %s16, 0
    %18 = vsyncpa [#allocation7], 0
    %s19 = scalar_lea.sflag [#allocation7], 1
    %20 = vsyncpa %s19, 0
    %21 = vsyncpa [#allocation10], 0
    %22 = vsyncpa [#allocation13], 0
    %23 = vsyncpa [#allocation16], 0
    %24 = vsyncpa [#allocation19], 0
    %25 = vsyncpa [#allocation5], 0
    %s26 = scalar_lea.sflag [#allocation5], 1
    %27 = vsyncpa %s26, 0
    loop: start=0, step=1, limit=4
    $region2: #{tpu_custom_call.1} parent=1 // loop_pre_header
      _
    $region3: #{tpu_custom_call.1} parent=1 // loop_header
      %s29 = sphi 0, %s33
      %p30 = scmp.ge.s32.totalorder %s29, 4
      %s39 = sphi 0, %s41
      %s42 = sphi 0, %s39
      %s43 = sphi 0, %s42
      %s59 = sphi 0, %s43
      %s65 = sphi 0, %s67
      %s68 = sphi 0, %s65
      %s69 = sphi 0, %s68
      %s85 = sphi 0, %s69
      %s89 = sphi 0, %s89
      %s91 = sphi 0, %s89
      %s92 = sphi 0, %s91
      %s106 = sphi 0, %s92
      %s110 = sphi 0, %s110
      %s112 = sphi 0, %s110
      %s113 = sphi 0, %s112
      %s127 = sphi 0, %s113
      %s131 = sphi 0, %s131
      %s133 = sphi 0, %s131
      %s134 = sphi 0, %s133
      %s148 = sphi 0, %s134
      %s152 = sphi 0, %s152
      %s154 = sphi 0, %s152
      %s155 = sphi 0, %s154
      %s169 = sphi 0, %s155
      %s173 = sphi 0, %s173
      %s175 = sphi 0, %s173
      %s176 = sphi 0, %s175
      %s190 = sphi 0, %s176
      %s194 = sphi 0, %s194
      %s196 = sphi 0, %s194
      %s197 = sphi 0, %s196
      %s211 = sphi 0, %s197
      %s215 = sphi 0, %s215
      %s217 = sphi 0, %s215
      %s218 = sphi 0, %s217
      %s232 = sphi 0, %s218
      %s236 = sphi 0, %s236
      %s238 = sphi 0, %s236
      %s239 = sphi 0, %s238
      %s253 = sphi 0, %s239
      %s259 = sphi 0, %s261
      %s262 = sphi 0, %s259
      %s263 = sphi 0, %s262
      %s279 = sphi 0, %s263
    $region4: #{tpu_custom_call.1} parent=1 // loop_header_branch
      %32 = sbr.rel (%p30) target = $region8
    $region5: #{tpu_custom_call.1} parent=1 // loop_body
      %s34 = ssub.s32 %s29, 1
      %s35 = ssub.s32 %s29, 2
      %s36 = sadd.s32 %s29, 1
      %s37 = ssub.s32 %s29, %s36
      %p38 = scmp.eq.s32.totalorder %s37, 0
      %s40 = sadd.s32 %s39, 1
      %s41 = scalar_select %p38, %s39, %s40
      %p44 = pneg %p38
      %p45 = scmp.eq.s32.totalorder %s29, 1
      %p46 = por %p44, %p45
      %p47 = scmp.ne.s32.totalorder %s39, %s42
      %p48 = scmp.eq.s32.totalorder %s29, 0
      %p49 = por %p47, %p48
      %p50 = scmp.ne.s32.totalorder %s39, %s42
      %p51 = scmp.eq.s32.totalorder %s34, 1
      %p52 = por %p50, %p51
      %p53 = scmp.ne.s32.totalorder %s42, %s43
      %p54 = scmp.eq.s32.totalorder %s34, 0
      %p55 = por %p53, %p54
      %p56 = scmp.ne.s32.totalorder %s42, %s43
      %p57 = scmp.eq.s32.totalorder %s35, 1
      %p58 = por %p56, %p57
      %p60 = scmp.ne.s32.totalorder %s43, %s59
      %p61 = scmp.eq.s32.totalorder %s35, 0
      %p62 = por %p60, %p61
      %s63 = ssub.s32 %s29, %s36
      %p64 = scmp.eq.s32.totalorder %s63, 0
      %s66 = sadd.s32 %s65, 1
      %s67 = scalar_select %p64, %s65, %s66
      %p70 = pneg %p64
      %p71 = scmp.eq.s32.totalorder %s29, 1
      %p72 = por %p70, %p71
      %p73 = scmp.ne.s32.totalorder %s65, %s68
      %p74 = scmp.eq.s32.totalorder %s29, 0
      %p75 = por %p73, %p74
      %p76 = scmp.ne.s32.totalorder %s65, %s68
      %p77 = scmp.eq.s32.totalorder %s34, 1
      %p78 = por %p76, %p77
      %p79 = scmp.ne.s32.totalorder %s68, %s69
      %p80 = scmp.eq.s32.totalorder %s34, 0
      %p81 = por %p79, %p80
      %p82 = scmp.ne.s32.totalorder %s68, %s69
      %p83 = scmp.eq.s32.totalorder %s35, 1
      %p84 = por %p82, %p83
      %p86 = scmp.ne.s32.totalorder %s69, %s85
      %p87 = scmp.eq.s32.totalorder %s35, 0
      %p88 = por %p86, %p87
      %s90 = sadd.s32 %s89, 1
      %p93 = scmp.eq.s32.totalorder %s29, 1
      %p94 = scmp.ne.s32.totalorder %s89, %s91
      %p95 = scmp.eq.s32.totalorder %s29, 0
      %p96 = por %p94, %p95
      %p97 = scmp.ne.s32.totalorder %s89, %s91
      %p98 = scmp.eq.s32.totalorder %s34, 1
      %p99 = por %p97, %p98
      %p100 = scmp.ne.s32.totalorder %s91, %s92
      %p101 = scmp.eq.s32.totalorder %s34, 0
      %p102 = por %p100, %p101
      %p103 = scmp.ne.s32.totalorder %s91, %s92
      %p104 = scmp.eq.s32.totalorder %s35, 1
      %p105 = por %p103, %p104
      %p107 = scmp.ne.s32.totalorder %s92, %s106
      %p108 = scmp.eq.s32.totalorder %s35, 0
      %p109 = por %p107, %p108
      %s111 = sadd.s32 %s110, 1
      %p114 = scmp.eq.s32.totalorder %s29, 1
      %p115 = scmp.ne.s32.totalorder %s110, %s112
      %p116 = scmp.eq.s32.totalorder %s29, 0
      %p117 = por %p115, %p116
      %p118 = scmp.ne.s32.totalorder %s110, %s112
      %p119 = scmp.eq.s32.totalorder %s34, 1
      %p120 = por %p118, %p119
      %p121 = scmp.ne.s32.totalorder %s112, %s113
      %p122 = scmp.eq.s32.totalorder %s34, 0
      %p123 = por %p121, %p122
      %p124 = scmp.ne.s32.totalorder %s112, %s113
      %p125 = scmp.eq.s32.totalorder %s35, 1
      %p126 = por %p124, %p125
      %p128 = scmp.ne.s32.totalorder %s113, %s127
      %p129 = scmp.eq.s32.totalorder %s35, 0
      %p130 = por %p128, %p129
      %s132 = sadd.s32 %s131, 1
      %p135 = scmp.eq.s32.totalorder %s29, 1
      %p136 = scmp.ne.s32.totalorder %s131, %s133
      %p137 = scmp.eq.s32.totalorder %s29, 0
      %p138 = por %p136, %p137
      %p139 = scmp.ne.s32.totalorder %s131, %s133
      %p140 = scmp.eq.s32.totalorder %s34, 1
      %p141 = por %p139, %p140
      %p142 = scmp.ne.s32.totalorder %s133, %s134
      %p143 = scmp.eq.s32.totalorder %s34, 0
      %p144 = por %p142, %p143
      %p145 = scmp.ne.s32.totalorder %s133, %s134
      %p146 = scmp.eq.s32.totalorder %s35, 1
      %p147 = por %p145, %p146
      %p149 = scmp.ne.s32.totalorder %s134, %s148
      %p150 = scmp.eq.s32.totalorder %s35, 0
      %p151 = por %p149, %p150
      %s153 = sadd.s32 %s152, 1
      %p156 = scmp.eq.s32.totalorder %s29, 1
      %p157 = scmp.ne.s32.totalorder %s152, %s154
      %p158 = scmp.eq.s32.totalorder %s29, 0
      %p159 = por %p157, %p158
      %p160 = scmp.ne.s32.totalorder %s152, %s154
      %p161 = scmp.eq.s32.totalorder %s34, 1
      %p162 = por %p160, %p161
      %p163 = scmp.ne.s32.totalorder %s154, %s155
      %p164 = scmp.eq.s32.totalorder %s34, 0
      %p165 = por %p163, %p164
      %p166 = scmp.ne.s32.totalorder %s154, %s155
      %p167 = scmp.eq.s32.totalorder %s35, 1
      %p168 = por %p166, %p167
      %p170 = scmp.ne.s32.totalorder %s155, %s169
      %p171 = scmp.eq.s32.totalorder %s35, 0
      %p172 = por %p170, %p171
      %s174 = sadd.s32 %s173, 1
      %p177 = scmp.eq.s32.totalorder %s29, 1
      %p178 = scmp.ne.s32.totalorder %s173, %s175
      %p179 = scmp.eq.s32.totalorder %s29, 0
      %p180 = por %p178, %p179
      %p181 = scmp.ne.s32.totalorder %s173, %s175
      %p182 = scmp.eq.s32.totalorder %s34, 1
      %p183 = por %p181, %p182
      %p184 = scmp.ne.s32.totalorder %s175, %s176
      %p185 = scmp.eq.s32.totalorder %s34, 0
      %p186 = por %p184, %p185
      %p187 = scmp.ne.s32.totalorder %s175, %s176
      %p188 = scmp.eq.s32.totalorder %s35, 1
      %p189 = por %p187, %p188
      %p191 = scmp.ne.s32.totalorder %s176, %s190
      %p192 = scmp.eq.s32.totalorder %s35, 0
      %p193 = por %p191, %p192
      %s195 = sadd.s32 %s194, 1
      %p198 = scmp.eq.s32.totalorder %s29, 1
      %p199 = scmp.ne.s32.totalorder %s194, %s196
      %p200 = scmp.eq.s32.totalorder %s29, 0
      %p201 = por %p199, %p200
      %p202 = scmp.ne.s32.totalorder %s194, %s196
      %p203 = scmp.eq.s32.totalorder %s34, 1
      %p204 = por %p202, %p203
      %p205 = scmp.ne.s32.totalorder %s196, %s197
      %p206 = scmp.eq.s32.totalorder %s34, 0
      %p207 = por %p205, %p206
      %p208 = scmp.ne.s32.totalorder %s196, %s197
      %p209 = scmp.eq.s32.totalorder %s35, 1
      %p210 = por %p208, %p209
      %p212 = scmp.ne.s32.totalorder %s197, %s211
      %p213 = scmp.eq.s32.totalorder %s35, 0
      %p214 = por %p212, %p213
      %s216 = sadd.s32 %s215, 1
      %p219 = scmp.eq.s32.totalorder %s29, 1
      %p220 = scmp.ne.s32.totalorder %s215, %s217
      %p221 = scmp.eq.s32.totalorder %s29, 0
      %p222 = por %p220, %p221
      %p223 = scmp.ne.s32.totalorder %s215, %s217
      %p224 = scmp.eq.s32.totalorder %s34, 1
      %p225 = por %p223, %p224
      %p226 = scmp.ne.s32.totalorder %s217, %s218
      %p227 = scmp.eq.s32.totalorder %s34, 0
      %p228 = por %p226, %p227
      %p229 = scmp.ne.s32.totalorder %s217, %s218
      %p230 = scmp.eq.s32.totalorder %s35, 1
      %p231 = por %p229, %p230
      %p233 = scmp.ne.s32.totalorder %s218, %s232
      %p234 = scmp.eq.s32.totalorder %s35, 0
      %p235 = por %p233, %p234
      %s237 = sadd.s32 %s236, 1
      %p240 = scmp.eq.s32.totalorder %s29, 1
      %p241 = scmp.ne.s32.totalorder %s236, %s238
      %p242 = scmp.eq.s32.totalorder %s29, 0
      %p243 = por %p241, %p242
      %p244 = scmp.ne.s32.totalorder %s236, %s238
      %p245 = scmp.eq.s32.totalorder %s34, 1
      %p246 = por %p244, %p245
      %p247 = scmp.ne.s32.totalorder %s238, %s239
      %p248 = scmp.eq.s32.totalorder %s34, 0
      %p249 = por %p247, %p248
      %p250 = scmp.ne.s32.totalorder %s238, %s239
      %p251 = scmp.eq.s32.totalorder %s35, 1
      %p252 = por %p250, %p251
      %p254 = scmp.ne.s32.totalorder %s239, %s253
      %p255 = scmp.eq.s32.totalorder %s35, 0
      %p256 = por %p254, %p255
      %s257 = ssub.s32 %s29, %s36
      %p258 = scmp.eq.s32.totalorder %s257, 0
      %s260 = sadd.s32 %s259, 1
      %s261 = scalar_select %p258, %s259, %s260
      %p264 = pneg %p258
      %p265 = scmp.eq.s32.totalorder %s29, 1
      %p266 = por %p264, %p265
      %p267 = scmp.ne.s32.totalorder %s259, %s262
      %p268 = scmp.eq.s32.totalorder %s29, 0
      %p269 = por %p267, %p268
      %p270 = scmp.ne.s32.totalorder %s259, %s262
      %p271 = scmp.eq.s32.totalorder %s34, 1
      %p272 = por %p270, %p271
      %p273 = scmp.ne.s32.totalorder %s262, %s263
      %p274 = scmp.eq.s32.totalorder %s34, 0
      %p275 = por %p273, %p274
      %p276 = scmp.ne.s32.totalorder %s262, %s263
      %p277 = scmp.eq.s32.totalorder %s35, 1
      %p278 = por %p276, %p277
      %p280 = scmp.ne.s32.totalorder %s263, %s279
      %p281 = scmp.eq.s32.totalorder %s35, 0
      %p282 = por %p280, %p281
      %p283 = scmp.le.s32.totalorder 1, %s29
      %p284 = scmp.lt.s32.totalorder %s29, 3
      %p285 = pnand %p283, %p284
      %p286 = pneg %p285
      // Predicated region
      $region9: #{tpu_custom_call.1} parent=5 // pred_check
        _
      $region10: #{tpu_custom_call.1} parent=5 // pred_check_branch
        %288 = sbr.rel (%p285) target = $region12
      $region11: #{tpu_custom_call.1} parent=5 // pred_region
        %s289 = ssub.s32 %s29, 1
        // Predicated region
        $region13: #{tpu_custom_call.1} parent=11 // pred_check
          %p290 = pneg %p102
        $region14: #{tpu_custom_call.1} parent=11 // pred_check_branch
          %292 = sbr.rel (%p290) target = $region16
        $region15: #{tpu_custom_call.1} parent=11 // pred_region
          %s294 = ssub.s32 16, 16
          %295 = vsyncadd [#allocation7], %s294
          %s297 = sshll.u32 [#allocation8], 4
          %s298 = int_to_ptr.vmem [resolvable:$true] %s297
          %300 = dma.hbm_to_vmem [thread:$0]  %s2, 16, %s298, [#allocation7]
        $region16: #{tpu_custom_call.1} parent=11 // pred_fallthru
          _
        // Predicated region
        $region17: #{tpu_custom_call.1} parent=11 // pred_check
          %p301 = pneg %p123
        $region18: #{tpu_custom_call.1} parent=11 // pred_check_branch
          %303 = sbr.rel (%p301) target = $region20
        $region19: #{tpu_custom_call.1} parent=11 // pred_region
          %s305 = ssub.s32 16, 16
          %306 = vsyncadd [#allocation10], %s305
          %s308 = sshll.u32 [#allocation9], 4
          %s309 = int_to_ptr.vmem [resolvable:$true] %s308
          %311 = dma.hbm_to_vmem [thread:$0]  %s3, 16, %s309, [#allocation10]
        $region20: #{tpu_custom_call.1} parent=11 // pred_fallthru
          _
        // Predicated region
        $region21: #{tpu_custom_call.1} parent=11 // pred_check
          %p312 = pneg %p144
        $region22: #{tpu_custom_call.1} parent=11 // pred_check_branch
          %314 = sbr.rel (%p312) target = $region24
        $region23: #{tpu_custom_call.1} parent=11 // pred_region
          %s316 = ssub.s32 64, 64
          %317 = vsyncadd [#allocation10], %s316
          %s319 = sshll.u32 [#allocation11], 4
          %s320 = int_to_ptr.vmem [resolvable:$true] %s319
          %322 = dma.hbm_to_vmem [thread:$0]  %s4, 64, %s320, [#allocation10]
        $region24: #{tpu_custom_call.1} parent=11 // pred_fallthru
          _
        // Predicated region
        $region25: #{tpu_custom_call.1} parent=11 // pred_check
          %p323 = pneg %p165
        $region26: #{tpu_custom_call.1} parent=11 // pred_check_branch
          %325 = sbr.rel (%p323) target = $region28
        $region27: #{tpu_custom_call.1} parent=11 // pred_region
          %s327 = ssub.s32 16, 16
          %328 = vsyncadd [#allocation13], %s327
          %s330 = sshll.u32 [#allocation12], 4
          %s331 = int_to_ptr.vmem [resolvable:$true] %s330
          %333 = dma.hbm_to_vmem [thread:$0]  %s5, 16, %s331, [#allocation13]
        $region28: #{tpu_custom_call.1} parent=11 // pred_fallthru
          _
        // Predicated region
        $region29: #{tpu_custom_call.1} parent=11 // pred_check
          %p334 = pneg %p186
        $region30: #{tpu_custom_call.1} parent=11 // pred_check_branch
          %336 = sbr.rel (%p334) target = $region32
        $region31: #{tpu_custom_call.1} parent=11 // pred_region
          %s338 = ssub.s32 1152, 1152
          %339 = vsyncadd [#allocation13], %s338
          %s340 = sshll.u32 [#allocation14], 4
          %s341 = int_to_ptr.vmem [resolvable:$true] %s340
          %346 = dma.hbm_to_vmem [thread:$0]  %s6, 1152, %s341, [#allocation13], 64, 64, 4
        $region32: #{tpu_custom_call.1} parent=11 // pred_fallthru
          _
        // Predicated region
        $region33: #{tpu_custom_call.1} parent=11 // pred_check
          %p347 = pneg %p207
        $region34: #{tpu_custom_call.1} parent=11 // pred_check_branch
          %349 = sbr.rel (%p347) target = $region36
        $region35: #{tpu_custom_call.1} parent=11 // pred_region
          %s351 = ssub.s32 16, 16
          %352 = vsyncadd [#allocation16], %s351
          %s354 = sshll.u32 [#allocation15], 4
          %s355 = int_to_ptr.vmem [resolvable:$true] %s354
          %357 = dma.hbm_to_vmem [thread:$0]  %s7, 16, %s355, [#allocation16]
        $region36: #{tpu_custom_call.1} parent=11 // pred_fallthru
          _
        // Predicated region
        $region37: #{tpu_custom_call.1} parent=11 // pred_check
          %p358 = pneg %p228
        $region38: #{tpu_custom_call.1} parent=11 // pred_check_branch
          %360 = sbr.rel (%p358) target = $region40
        $region39: #{tpu_custom_call.1} parent=11 // pred_region
          %s362 = ssub.s32 128, 128
          %363 = vsyncadd [#allocation16], %s362
          %s364 = sshll.u32 [#allocation17], 4
          %s365 = int_to_ptr.vmem [resolvable:$true] %s364
          %370 = dma.hbm_to_vmem [thread:$0]  %s8, 128, %s365, [#allocation16], 64, 64, 4
        $region40: #{tpu_custom_call.1} parent=11 // pred_fallthru
          _
        // Predicated region
        $region41: #{tpu_custom_call.1} parent=11 // pred_check
          %p371 = pneg %p249
        $region42: #{tpu_custom_call.1} parent=11 // pred_check_branch
          %373 = sbr.rel (%p371) target = $region44
        $region43: #{tpu_custom_call.1} parent=11 // pred_region
          %s375 = ssub.s32 64, 64
          %376 = vsyncadd [#allocation19], %s375
          %s378 = sshll.u32 [#allocation18], 4
          %s379 = int_to_ptr.vmem [resolvable:$true] %s378
          %381 = dma.hbm_to_vmem [thread:$0]  %s9, 64, %s379, [#allocation19]
        $region44: #{tpu_custom_call.1} parent=11 // pred_fallthru
          _
      $region12: #{tpu_custom_call.1} parent=5 // pred_fallthru
        _
      %p382 = scmp.lt.s32.totalorder %s29, 2
      // Predicated region
      $region45: #{tpu_custom_call.1} parent=5 // pred_check
        %p383 = pneg %p382
      $region46: #{tpu_custom_call.1} parent=5 // pred_check_branch
        %385 = sbr.rel (%p383) target = $region48
      $region47: #{tpu_custom_call.1} parent=5 // pred_region
        // Predicated region
        $region49: #{tpu_custom_call.1} parent=47 // pred_check
          %p386 = pneg %p49
        $region50: #{tpu_custom_call.1} parent=47 // pred_check_branch
          %388 = sbr.rel (%p386) target = $region52
        $region51: #{tpu_custom_call.1} parent=47 // pred_region
          %s389 = sand.u32 %s39, 1
          %s390 = scalar_lea.sflag [#allocation4], %s389
          %s391 = sand.u32 %s39, 1
          %s392 = smul.addr %s391, 128
          %s393 = scalar_lea.vmem [#allocation3], %s392
          %s395 = ssub.s32 2048, 2048
          %396 = vsyncadd %s390, %s395
          %s397 = smul.addr %s29, 32
          %s398 = smul.addr %s397, 64
          %s399 = scalar_lea.hbm %s0, %s398
          %s400 = sshll.u32 %s393, 4
          %s401 = int_to_ptr.vmem [resolvable:$true] %s400
          %406 = dma.hbm_to_vmem [thread:$0]  %s399, 2048, %s401, %s390, 64, 64, 4
        $region52: #{tpu_custom_call.1} parent=47 // pred_fallthru
          _
        // Predicated region
        $region53: #{tpu_custom_call.1} parent=47 // pred_check
          %p407 = pneg %p75
        $region54: #{tpu_custom_call.1} parent=47 // pred_check_branch
          %409 = sbr.rel (%p407) target = $region56
        $region55: #{tpu_custom_call.1} parent=47 // pred_region
          %s410 = sand.u32 %s29, 1
          %s411 = scalar_lea.sflag [#allocation7], %s410
          %s412 = sand.u32 %s65, 1
          %s413 = smul.addr %s412, 32
          %s414 = scalar_lea.vmem [#allocation6], %s413
          %s416 = ssub.s32 512, 512
          %417 = vsyncadd %s411, %s416
          %s418 = smul.addr %s29, 8
          %s419 = smul.addr %s418, 64
          %s420 = scalar_lea.hbm %s1, %s419
          %s421 = sshll.u32 %s414, 4
          %s422 = int_to_ptr.vmem [resolvable:$true] %s421
          %427 = dma.hbm_to_vmem [thread:$0]  %s420, 512, %s422, %s411, 64, 64, 4
        $region56: #{tpu_custom_call.1} parent=47 // pred_fallthru
          _
      $region48: #{tpu_custom_call.1} parent=5 // pred_fallthru
        _
      %p428 = scmp.le.s32.totalorder 1, %s29
      %p429 = scmp.lt.s32.totalorder %s29, 3
      %p430 = pnand %p428, %p429
      %p431 = pneg %p430
      // Predicated region
      $region57: #{tpu_custom_call.1} parent=5 // pred_check
        _
      $region58: #{tpu_custom_call.1} parent=5 // pred_check_branch
        %433 = sbr.rel (%p430) target = $region60
      $region59: #{tpu_custom_call.1} parent=5 // pred_region
        %s434 = ssub.s32 %s29, 1
        %s435 = sand.u32 %s42, 1
        %s436 = scalar_lea.sflag [#allocation4], %s435
        %s437 = sand.u32 %s42, 1
        %s438 = smul.addr %s437, 128
        %s439 = scalar_lea.vmem [#allocation3], %s438
        // Predicated region
        $region61: #{tpu_custom_call.1} parent=59 // pred_check
          %p440 = pneg %p55
        $region62: #{tpu_custom_call.1} parent=59 // pred_check_branch
          %442 = sbr.rel (%p440) target = $region64
        $region63: #{tpu_custom_call.1} parent=59 // pred_region
          %443 = dma.done %s436, 2048
        $region64: #{tpu_custom_call.1} parent=59 // pred_fallthru
          _
        %s444 = sand.u32 %s34, 1
        %s445 = scalar_lea.sflag [#allocation7], %s444
        %s446 = sand.u32 %s68, 1
        %s447 = smul.addr %s446, 32
        %s448 = scalar_lea.vmem [#allocation6], %s447
        // Predicated region
        $region65: #{tpu_custom_call.1} parent=59 // pred_check
          %p449 = pneg %p81
        $region66: #{tpu_custom_call.1} parent=59 // pred_check_branch
          %451 = sbr.rel (%p449) target = $region68
        $region67: #{tpu_custom_call.1} parent=59 // pred_region
          %452 = dma.done %s445, 512
        $region68: #{tpu_custom_call.1} parent=59 // pred_fallthru
          _
        // Predicated region
        $region69: #{tpu_custom_call.1} parent=59 // pred_check
          %p453 = pneg %p102
        $region70: #{tpu_custom_call.1} parent=59 // pred_check_branch
          %455 = sbr.rel (%p453) target = $region72
        $region71: #{tpu_custom_call.1} parent=59 // pred_region
          %456 = dma.done [#allocation7], 16
        $region72: #{tpu_custom_call.1} parent=59 // pred_fallthru
          _
        // Predicated region
        $region73: #{tpu_custom_call.1} parent=59 // pred_check
          %p457 = pneg %p123
        $region74: #{tpu_custom_call.1} parent=59 // pred_check_branch
          %459 = sbr.rel (%p457) target = $region76
        $region75: #{tpu_custom_call.1} parent=59 // pred_region
          %460 = dma.done [#allocation10], 16
        $region76: #{tpu_custom_call.1} parent=59 // pred_fallthru
          _
        // Predicated region
        $region77: #{tpu_custom_call.1} parent=59 // pred_check
          %p461 = pneg %p144
        $region78: #{tpu_custom_call.1} parent=59 // pred_check_branch
          %463 = sbr.rel (%p461) target = $region80
        $region79: #{tpu_custom_call.1} parent=59 // pred_region
          %464 = dma.done [#allocation10], 64
        $region80: #{tpu_custom_call.1} parent=59 // pred_fallthru
          _
        // Predicated region
        $region81: #{tpu_custom_call.1} parent=59 // pred_check
          %p465 = pneg %p165
        $region82: #{tpu_custom_call.1} parent=59 // pred_check_branch
          %467 = sbr.rel (%p465) target = $region84
        $region83: #{tpu_custom_call.1} parent=59 // pred_region
          %468 = dma.done [#allocation13], 16
        $region84: #{tpu_custom_call.1} parent=59 // pred_fallthru
          _
        // Predicated region
        $region85: #{tpu_custom_call.1} parent=59 // pred_check
          %p469 = pneg %p186
        $region86: #{tpu_custom_call.1} parent=59 // pred_check_branch
          %471 = sbr.rel (%p469) target = $region88
        $region87: #{tpu_custom_call.1} parent=59 // pred_region
          %472 = dma.done [#allocation13], 1152
        $region88: #{tpu_custom_call.1} parent=59 // pred_fallthru
          _
        // Predicated region
        $region89: #{tpu_custom_call.1} parent=59 // pred_check
          %p473 = pneg %p207
        $region90: #{tpu_custom_call.1} parent=59 // pred_check_branch
          %475 = sbr.rel (%p473) target = $region92
        $region91: #{tpu_custom_call.1} parent=59 // pred_region
          %476 = dma.done [#allocation16], 16
        $region92: #{tpu_custom_call.1} parent=59 // pred_fallthru
          _
        // Predicated region
        $region93: #{tpu_custom_call.1} parent=59 // pred_check
          %p477 = pneg %p228
        $region94: #{tpu_custom_call.1} parent=59 // pred_check_branch
          %479 = sbr.rel (%p477) target = $region96
        $region95: #{tpu_custom_call.1} parent=59 // pred_region
          %480 = dma.done [#allocation16], 128
        $region96: #{tpu_custom_call.1} parent=59 // pred_fallthru
          _
        // Predicated region
        $region97: #{tpu_custom_call.1} parent=59 // pred_check
          %p481 = pneg %p249
        $region98: #{tpu_custom_call.1} parent=59 // pred_check_branch
          %483 = sbr.rel (%p481) target = $region100
        $region99: #{tpu_custom_call.1} parent=59 // pred_region
          %484 = dma.done [#allocation19], 64
        $region100: #{tpu_custom_call.1} parent=59 // pred_fallthru
          _
        %s485 = sand.u32 %s42, 1
        %s486 = scalar_lea.sflag [#allocation4], %s485
        %s487 = sand.u32 %s42, 1
        %s488 = smul.addr %s487, 128
        %s489 = scalar_lea.vmem [#allocation3], %s488
        %p490 = pneg %p55
        %p491 = pneg %p52
        %s492 = sand.u32 %s34, 1
        %s493 = scalar_lea.sflag [#allocation7], %s492
        %s494 = sand.u32 %s68, 1
        %s495 = smul.addr %s494, 32
        %s496 = scalar_lea.vmem [#allocation6], %s495
        %p497 = pneg %p81
        %p498 = pneg %p78
        %p499 = pneg %p102
        %p500 = pneg %p99
        %p501 = pneg %p123
        %p502 = pneg %p120
        %p503 = pneg %p144
        %p504 = pneg %p141
        %p505 = pneg %p165
        %p506 = pneg %p162
        %p507 = pneg %p186
        %p508 = pneg %p183
        %p509 = pneg %p207
        %p510 = pneg %p204
        %p511 = pneg %p228
        %p512 = pneg %p225
        %p513 = pneg %p249
        %p514 = pneg %p246
        %p515 = pneg %p275
        %p516 = pneg %p272
        %s517 = sand.u32 %s262, 1
        %s518 = scalar_lea.sflag [#allocation5], %s517
        %s519 = sand.u32 %s262, 1
        %s520 = smul.addr %s519, 64
        %s521 = scalar_lea.vmem [#allocation20], %s520
        %v523 = vld [vmem:[#allocation8] sm:$0x1]
        %v524 = vld [vmem:[#allocation9] sm:$0x1]
        %v525 = vld [vmem:[#allocation11] sm:$0xf]
        %v526 = vld [vmem:[#allocation12] sm:$0x1]
        %vm527 = vcmask 130048
        %528 = vst.msk [vmem:[#allocation2] sm:$0xff] %vm527, 0.0
        %529 = vst.msk [vmem:[#allocation2 + $0x8] sm:$0xff] %vm527, 0.0
        %s530 = scalar_lea.vmem [#allocation2], 16
        %vm531 = vcmask 122880
        %532 = vst.msk [vmem:[%s530] sm:$0x1] %vm531, 0.0
        %533 = vst.msk [vmem:[%s530 + $0x10] sm:$0x1] %vm531, 0.0
        %534 = vst.msk [vmem:[%s530 + $0x20] sm:$0x1] %vm531, 0.0
        %535 = vst.msk [vmem:[%s530 + $0x30] sm:$0x1] %vm531, 0.0
        %536 = vst.msk [vmem:[%s530 + $0x40] sm:$0x1] %vm531, 0.0
        %537 = vst.msk [vmem:[%s530 + $0x50] sm:$0x1] %vm531, 0.0
        %538 = vst.msk [vmem:[%s530 + $0x60] sm:$0x1] %vm531, 0.0
        %539 = vst.msk [vmem:[%s530 + $0x70] sm:$0x1] %vm531, 0.0
        %vm540 = vcmask 129024
        %541 = vst.msk [vmem:[%s530 + $0x9] sm:$0x7f] %vm540, 0.0
        %542 = vst.msk [vmem:[%s530 + $0x19] sm:$0x7f] %vm540, 0.0
        %543 = vst.msk [vmem:[%s530 + $0x29] sm:$0x7f] %vm540, 0.0
        %544 = vst.msk [vmem:[%s530 + $0x39] sm:$0x7f] %vm540, 0.0
        %545 = vst.msk [vmem:[%s530 + $0x49] sm:$0x7f] %vm540, 0.0
        %546 = vst.msk [vmem:[%s530 + $0x59] sm:$0x7f] %vm540, 0.0
        %547 = vst.msk [vmem:[%s530 + $0x69] sm:$0x7f] %vm540, 0.0
        %548 = vst.msk [vmem:[%s530 + $0x79] sm:$0x7f] %vm540, 0.0
        %v549 = vld [vmem:[%s439] sm:$0xf]
        %v550 = vld [vmem:[%s439 + $0x4] sm:$0xf]
        %v551 = vld [vmem:[%s439 + $0x8] sm:$0xf]
        %v552 = vld [vmem:[%s439 + $0xc] sm:$0xf]
        %v553 = vld [vmem:[%s439 + $0x10] sm:$0xf]
        %v554 = vld [vmem:[%s439 + $0x14] sm:$0xf]
        %v555 = vld [vmem:[%s439 + $0x18] sm:$0xf]
        %v556 = vld [vmem:[%s439 + $0x1c] sm:$0xf]
        %v557 = vunpack.c.l.bf16 %v549
        %v558 = vunpack.c.l.bf16 %v550
        %v559 = vunpack.c.l.bf16 %v551
        %v560 = vunpack.c.l.bf16 %v552
        %v561 = vunpack.c.l.bf16 %v553
        %v562 = vunpack.c.l.bf16 %v554
        %v563 = vunpack.c.l.bf16 %v555
        %v564 = vunpack.c.l.bf16 %v556
        %v566 = vlaneseq
        %v567 = vshrl.u32 %v566, 7
        %v568 = vsub.s32 0, %v567
        %v569 = vrot.slane %v523, %v568
        %v571 = vmul.f32 %v557, %v569
        %v572 = vmul.f32 %v558, %v569
        %v573 = vmul.f32 %v559, %v569
        %v574 = vmul.f32 %v560, %v569
        %v575 = vmul.f32 %v561, %v569
        %v576 = vmul.f32 %v562, %v569
        %v577 = vmul.f32 %v563, %v569
        %v578 = vmul.f32 %v564, %v569
        %v580 = vlaneseq
        %v581 = vshrl.u32 %v580, 7
        %v582 = vsub.s32 0, %v581
        %v583 = vrot.slane %v524, %v582
        %v585 = vadd.f32 %v571, %v583
        %v586 = vadd.f32 %v572, %v583
        %v587 = vadd.f32 %v573, %v583
        %v588 = vadd.f32 %v574, %v583
        %v589 = vadd.f32 %v575, %v583
        %v590 = vadd.f32 %v576, %v583
        %v591 = vadd.f32 %v577, %v583
        %v592 = vadd.f32 %v578, %v583
        %v593 = vmax.f32 %v585, 0.0
        %v594 = vmax.f32 %v586, 0.0
        %v595 = vmax.f32 %v587, 0.0
        %v596 = vmax.f32 %v588, 0.0
        %v597 = vmax.f32 %v589, 0.0
        %v598 = vmax.f32 %v590, 0.0
        %v599 = vmax.f32 %v591, 0.0
        %v600 = vmax.f32 %v592, 0.0
        %v601 = vpack.c.bf16 %v594, %v593
        %v602 = vpack.c.bf16 %v596, %v595
        %v603 = vpack.c.bf16 %v598, %v597
        %v604 = vpack.c.bf16 %v600, %v599
        %v606 = vlaneseq
        %v607 = vshrl.u32 %v606, 7
        %v608 = vsub.s32 0, %v607
        %v609 = vrot.slane %v526, %v608
        %vm611 = vcmask 64512
        %v613 = vsel %vm611, %v601, 0
        %v616 = vsel %vm611, %v602, 0
        %v619 = vsel %vm611, %v603, 0
        %v622 = vsel %vm611, %v604, 0
        %vm624 = vcmask 1043456
        %v626 = vsel %vm624, %v525, 0
        %628 = vmatprep.subr.bf16.mxu0 0
        %629 = vmatpush1.bf16.msra.mxu0 %v626
        %630 = vmatprep.subr.bf16.mxu0 0
        %631 = vmatpush1.bf16.msra.mxu0 0
        %632 = vmatprep.subr.bf16.mxu0 0
        %633 = vmatpush1.bf16.msra.mxu0 0
        %634 = vmatprep.subr.bf16.mxu0 0
        %635 = vmatpush1.bf16.msra.mxu0 0
        %636 = vmatprep.subr.bf16.mxu0 0
        %637 = vmatpush1.bf16.msra.mxu0 0
        %638 = vmatprep.subr.bf16.mxu0 0
        %639 = vmatpush1.bf16.msra.mxu0 0
        %640 = vmatprep.subr.bf16.mxu0 0
        %641 = vmatpush1.bf16.msra.mxu0 0
        %642 = vmatprep.subr.bf16.mxu0 0
        %643 = vmatpush1.bf16.msra.mxu0 0
        %644 = vmatprep.subr.bf16.mxu0 0
        %645 = vmatpush1.bf16.msra.mxu0 0
        %646 = vmatprep.subr.bf16.mxu0 0
        %647 = vmatpush1.bf16.msra.mxu0 0
        %648 = vmatprep.subr.bf16.mxu0 0
        %649 = vmatpush1.bf16.msra.mxu0 0
        %650 = vmatprep.subr.bf16.mxu0 0
        %651 = vmatpush1.bf16.msra.mxu0 0
        %652 = vmatprep.subr.bf16.mxu0 0
        %653 = vmatpush1.bf16.msra.mxu0 0
        %654 = vmatprep.subr.bf16.mxu0 0
        %655 = vmatpush1.bf16.msra.mxu0 0
        %656 = vmatprep.subr.bf16.mxu0 0
        %657 = vmatpush1.bf16.msra.mxu0 0
        %658 = vmatprep.subr.bf16.mxu0 0
        %659 = vmatpush1.bf16.msra.mxu0 0
        %660 = vmatprep.mubr.bf16.mxu0 0
        %661 = vmatmul.mubr.bf16.gmra.mrb[0].mxu0 %v613
        %v662 = vpop.f32.mrb[0].mxu0
        %v663 = vadd.f32 %v609, %v662
        %v664 = vpop.f32.mrb[0].mxu0
        %v665 = vpop.f32.mrb[0].mxu0
        %v666 = vadd.f32 %v609, %v665
        %v667 = vpop.f32.mrb[0].mxu0
        %668 = vmatprep.mubr.bf16.mxu0 0
        %669 = vmatmul.mubr.bf16.gmra.mrb[0].mxu0 %v616
        %v670 = vpop.f32.mrb[0].mxu0
        %v671 = vadd.f32 %v609, %v670
        %v672 = vpop.f32.mrb[0].mxu0
        %v673 = vpop.f32.mrb[0].mxu0
        %v674 = vadd.f32 %v609, %v673
        %v675 = vpop.f32.mrb[0].mxu0
        %676 = vmatprep.mubr.bf16.mxu0 0
        %677 = vmatmul.mubr.bf16.gmra.mrb[0].mxu0 %v619
        %v678 = vpop.f32.mrb[0].mxu0
        %v679 = vadd.f32 %v609, %v678
        %v680 = vpop.f32.mrb[0].mxu0
        %v681 = vpop.f32.mrb[0].mxu0
        %v682 = vadd.f32 %v609, %v681
        %v683 = vpop.f32.mrb[0].mxu0
        %684 = vmatprep.mubr.bf16.mxu0 0
        %685 = vmatmul.mubr.bf16.gmra.mrb[0].mxu0 %v622
        %v686 = vpop.f32.mrb[0].mxu0
        %v687 = vadd.f32 %v609, %v686
        %v688 = vpop.f32.mrb[0].mxu0
        %v689 = vpop.f32.mrb[0].mxu0
        %v690 = vadd.f32 %v609, %v689
        %v691 = vpop.f32.mrb[0].mxu0
        %692 = vdwg.mxu0
        %v693 = vmax.f32 %v663, 0.0
        %v694 = vmax.f32 %v666, 0.0
        %v695 = vmax.f32 %v671, 0.0
        %v696 = vmax.f32 %v674, 0.0
        %v697 = vmax.f32 %v679, 0.0
        %v698 = vmax.f32 %v682, 0.0
        %v699 = vmax.f32 %v687, 0.0
        %v700 = vmax.f32 %v690, 0.0
        %701 = vst.msk [vmem:[%s530 + $0x1] sm:$0xff] %vm527, %v693
        %702 = vst.msk [vmem:[%s530 + $0x11] sm:$0xff] %vm527, %v694
        %703 = vst.msk [vmem:[%s530 + $0x21] sm:$0xff] %vm527, %v695
        %704 = vst.msk [vmem:[%s530 + $0x31] sm:$0xff] %vm527, %v696
        %705 = vst.msk [vmem:[%s530 + $0x41] sm:$0xff] %vm527, %v697
        %706 = vst.msk [vmem:[%s530 + $0x51] sm:$0xff] %vm527, %v698
        %707 = vst.msk [vmem:[%s530 + $0x61] sm:$0xff] %vm527, %v699
        %708 = vst.msk [vmem:[%s530 + $0x71] sm:$0xff] %vm527, %v700
        %s709 = scalar_lea.vmem [#allocation2], 144
        %710 = vst.msk [vmem:[%s709] sm:$0xff] %vm527, 0.0
        %711 = vst.msk [vmem:[%s709 + $0x8] sm:$0xff] %vm527, 0.0
        %s712 = scalar_lea.vmem [#allocation2], 160
        %713 = vst.msk [vmem:[%s712 + $0x8] sm:$0xff] %vm527, 0.0
        %714 = vst.msk [vmem:[%s712 + $0x18] sm:$0xff] %vm527, 0.0
        %715 = vst.msk [vmem:[%s712 + $0x28] sm:$0xff] %vm527, 0.0
        %716 = vst.msk [vmem:[%s712 + $0x38] sm:$0xff] %vm527, 0.0
        %717 = vst.msk [vmem:[%s712 + $0x48] sm:$0xff] %vm527, 0.0
        %718 = vst.msk [vmem:[%s712 + $0x58] sm:$0xff] %vm527, 0.0
        %719 = vst.msk [vmem:[%s712 + $0x68] sm:$0xff] %vm527, 0.0
        %720 = vst.msk [vmem:[%s712 + $0x78] sm:$0xff] %vm527, 0.0
        %s721 = scalar_lea.vmem %s439, 32 [#allocation3]
        %v722 = vld [vmem:[%s721] sm:$0xf]
        %v723 = vld [vmem:[%s721 + $0x4] sm:$0xf]
        %v724 = vld [vmem:[%s721 + $0x8] sm:$0xf]
        %v725 = vld [vmem:[%s721 + $0xc] sm:$0xf]
        %v726 = vld [vmem:[%s721 + $0x10] sm:$0xf]
        %v727 = vld [vmem:[%s721 + $0x14] sm:$0xf]
        %v728 = vld [vmem:[%s721 + $0x18] sm:$0xf]
        %v729 = vld [vmem:[%s721 + $0x1c] sm:$0xf]
        %v730 = vunpack.c.l.bf16 %v722
        %v731 = vunpack.c.l.bf16 %v723
        %v732 = vunpack.c.l.bf16 %v724
        %v733 = vunpack.c.l.bf16 %v725
        %v734 = vunpack.c.l.bf16 %v726
        %v735 = vunpack.c.l.bf16 %v727
        %v736 = vunpack.c.l.bf16 %v728
        %v737 = vunpack.c.l.bf16 %v729
        %v738 = vmul.f32 %v730, %v569
        %v739 = vmul.f32 %v731, %v569
        %v740 = vmul.f32 %v732, %v569
        %v741 = vmul.f32 %v733, %v569
        %v742 = vmul.f32 %v734, %v569
        %v743 = vmul.f32 %v735, %v569
        %v744 = vmul.f32 %v736, %v569
        %v745 = vmul.f32 %v737, %v569
        %v746 = vadd.f32 %v738, %v583
        %v747 = vadd.f32 %v739, %v583
        %v748 = vadd.f32 %v740, %v583
        %v749 = vadd.f32 %v741, %v583
        %v750 = vadd.f32 %v742, %v583
        %v751 = vadd.f32 %v743, %v583
        %v752 = vadd.f32 %v744, %v583
        %v753 = vadd.f32 %v745, %v583
        %v754 = vmax.f32 %v746, 0.0
        %v755 = vmax.f32 %v747, 0.0
        %v756 = vmax.f32 %v748, 0.0
        %v757 = vmax.f32 %v749, 0.0
        %v758 = vmax.f32 %v750, 0.0
        %v759 = vmax.f32 %v751, 0.0
        %v760 = vmax.f32 %v752, 0.0
        %v761 = vmax.f32 %v753, 0.0
        %v762 = vpack.c.bf16 %v755, %v754
        %v763 = vpack.c.bf16 %v757, %v756
        %v764 = vpack.c.bf16 %v759, %v758
        %v765 = vpack.c.bf16 %v761, %v760
        %v767 = vsel %vm611, %v762, 0
        %v770 = vsel %vm611, %v763, 0
        %v773 = vsel %vm611, %v764, 0
        %v776 = vsel %vm611, %v765, 0
        %778 = vmatprep.subr.bf16.mxu0 0
        %779 = vmatpush1.bf16.msra.mxu0 %v626
        %780 = vmatprep.subr.bf16.mxu0 0
        %781 = vmatpush1.bf16.msra.mxu0 0
        %782 = vmatprep.subr.bf16.mxu0 0
        %783 = vmatpush1.bf16.msra.mxu0 0
        %784 = vmatprep.subr.bf16.mxu0 0
        %785 = vmatpush1.bf16.msra.mxu0 0
        %786 = vmatprep.subr.bf16.mxu0 0
        %787 = vmatpush1.bf16.msra.mxu0 0
        %788 = vmatprep.subr.bf16.mxu0 0
        %789 = vmatpush1.bf16.msra.mxu0 0
        %790 = vmatprep.subr.bf16.mxu0 0
        %791 = vmatpush1.bf16.msra.mxu0 0
        %792 = vmatprep.subr.bf16.mxu0 0
        %793 = vmatpush1.bf16.msra.mxu0 0
        %794 = vmatprep.subr.bf16.mxu0 0
        %795 = vmatpush1.bf16.msra.mxu0 0
        %796 = vmatprep.subr.bf16.mxu0 0
        %797 = vmatpush1.bf16.msra.mxu0 0
        %798 = vmatprep.subr.bf16.mxu0 0
        %799 = vmatpush1.bf16.msra.mxu0 0
        %800 = vmatprep.subr.bf16.mxu0 0
        %801 = vmatpush1.bf16.msra.mxu0 0
        %802 = vmatprep.subr.bf16.mxu0 0
        %803 = vmatpush1.bf16.msra.mxu0 0
        %804 = vmatprep.subr.bf16.mxu0 0
        %805 = vmatpush1.bf16.msra.mxu0 0
        %806 = vmatprep.subr.bf16.mxu0 0
        %807 = vmatpush1.bf16.msra.mxu0 0
        %808 = vmatprep.subr.bf16.mxu0 0
        %809 = vmatpush1.bf16.msra.mxu0 0
        %810 = vmatprep.mubr.bf16.mxu0 0
        %811 = vmatmul.mubr.bf16.gmra.mrb[0].mxu0 %v767
        %v812 = vpop.f32.mrb[0].mxu0
        %v813 = vadd.f32 %v609, %v812
        %v814 = vpop.f32.mrb[0].mxu0
        %v815 = vpop.f32.mrb[0].mxu0
        %v816 = vadd.f32 %v609, %v815
        %v817 = vpop.f32.mrb[0].mxu0
        %818 = vmatprep.mubr.bf16.mxu0 0
        %819 = vmatmul.mubr.bf16.gmra.mrb[0].mxu0 %v770
        %v820 = vpop.f32.mrb[0].mxu0
        %v821 = vadd.f32 %v609, %v820
        %v822 = vpop.f32.mrb[0].mxu0
        %v823 = vpop.f32.mrb[0].mxu0
        %v824 = vadd.f32 %v609, %v823
        %v825 = vpop.f32.mrb[0].mxu0
        %826 = vmatprep.mubr.bf16.mxu0 0
        %827 = vmatmul.mubr.bf16.gmra.mrb[0].mxu0 %v773
        %v828 = vpop.f32.mrb[0].mxu0
        %v829 = vadd.f32 %v609, %v828
        %v830 = vpop.f32.mrb[0].mxu0
        %v831 = vpop.f32.mrb[0].mxu0
        %v832 = vadd.f32 %v609, %v831
        %v833 = vpop.f32.mrb[0].mxu0
        %834 = vmatprep.mubr.bf16.mxu0 0
        %835 = vmatmul.mubr.bf16.gmra.mrb[0].mxu0 %v776
        %v836 = vpop.f32.mrb[0].mxu0
        %v837 = vadd.f32 %v609, %v836
        %v838 = vpop.f32.mrb[0].mxu0
        %v839 = vpop.f32.mrb[0].mxu0
        %v840 = vadd.f32 %v609, %v839
        %v841 = vpop.f32.mrb[0].mxu0
        %842 = vdwg.mxu0
        %v843 = vmax.f32 %v813, 0.0
        %v844 = vmax.f32 %v816, 0.0
        %v845 = vmax.f32 %v821, 0.0
        %v846 = vmax.f32 %v824, 0.0
        %v847 = vmax.f32 %v829, 0.0
        %v848 = vmax.f32 %v832, 0.0
        %v849 = vmax.f32 %v837, 0.0
        %v850 = vmax.f32 %v840, 0.0
        %851 = vst.msk [vmem:[%s712] sm:$0xff] %vm527, %v843
        %852 = vst.msk [vmem:[%s712 + $0x10] sm:$0xff] %vm527, %v844
        %853 = vst.msk [vmem:[%s712 + $0x20] sm:$0xff] %vm527, %v845
        %854 = vst.msk [vmem:[%s712 + $0x30] sm:$0xff] %vm527, %v846
        %855 = vst.msk [vmem:[%s712 + $0x40] sm:$0xff] %vm527, %v847
        %856 = vst.msk [vmem:[%s712 + $0x50] sm:$0xff] %vm527, %v848
        %857 = vst.msk [vmem:[%s712 + $0x60] sm:$0xff] %vm527, %v849
        %858 = vst.msk [vmem:[%s712 + $0x70] sm:$0xff] %vm527, %v850
        %s859 = scalar_lea.vmem [#allocation2], 416
        %860 = vst.msk [vmem:[%s859] sm:$0xff] %vm527, 0.0
        %861 = vst.msk [vmem:[%s859 + $0x8] sm:$0xff] %vm527, 0.0
        %s862 = scalar_lea.vmem [#allocation2], 288
        %863 = vst.msk [vmem:[%s862] sm:$0x1] %vm531, 0.0
        %864 = vst.msk [vmem:[%s862 + $0x10] sm:$0x1] %vm531, 0.0
        %865 = vst.msk [vmem:[%s862 + $0x20] sm:$0x1] %vm531, 0.0
        %866 = vst.msk [vmem:[%s862 + $0x30] sm:$0x1] %vm531, 0.0
        %867 = vst.msk [vmem:[%s862 + $0x40] sm:$0x1] %vm531, 0.0
        %868 = vst.msk [vmem:[%s862 + $0x50] sm:$0x1] %vm531, 0.0
        %869 = vst.msk [vmem:[%s862 + $0x60] sm:$0x1] %vm531, 0.0
        %870 = vst.msk [vmem:[%s862 + $0x70] sm:$0x1] %vm531, 0.0
        %871 = vst.msk [vmem:[%s862 + $0x9] sm:$0x7f] %vm540, 0.0
        %872 = vst.msk [vmem:[%s862 + $0x19] sm:$0x7f] %vm540, 0.0
        %873 = vst.msk [vmem:[%s862 + $0x29] sm:$0x7f] %vm540, 0.0
        %874 = vst.msk [vmem:[%s862 + $0x39] sm:$0x7f] %vm540, 0.0
        %875 = vst.msk [vmem:[%s862 + $0x49] sm:$0x7f] %vm540, 0.0
        %876 = vst.msk [vmem:[%s862 + $0x59] sm:$0x7f] %vm540, 0.0
        %877 = vst.msk [vmem:[%s862 + $0x69] sm:$0x7f] %vm540, 0.0
        %878 = vst.msk [vmem:[%s862 + $0x79] sm:$0x7f] %vm540, 0.0
        %s879 = scalar_lea.vmem %s439, 64 [#allocation3]
        %v880 = vld [vmem:[%s879] sm:$0xf]
        %v881 = vld [vmem:[%s879 + $0x4] sm:$0xf]
        %v882 = vld [vmem:[%s879 + $0x8] sm:$0xf]
        %v883 = vld [vmem:[%s879 + $0xc] sm:$0xf]
        %v884 = vld [vmem:[%s879 + $0x10] sm:$0xf]
        %v885 = vld [vmem:[%s879 + $0x14] sm:$0xf]
        %v886 = vld [vmem:[%s879 + $0x18] sm:$0xf]
        %v887 = vld [vmem:[%s879 + $0x1c] sm:$0xf]
        %v888 = vunpack.c.l.bf16 %v880
        %v889 = vunpack.c.l.bf16 %v881
        %v890 = vunpack.c.l.bf16 %v882
        %v891 = vunpack.c.l.bf16 %v883
        %v892 = vunpack.c.l.bf16 %v884
        %v893 = vunpack.c.l.bf16 %v885
        %v894 = vunpack.c.l.bf16 %v886
        %v895 = vunpack.c.l.bf16 %v887
        %v896 = vmul.f32 %v888, %v569
        %v897 = vmul.f32 %v889, %v569
        %v898 = vmul.f32 %v890, %v569
        %v899 = vmul.f32 %v891, %v569
        %v900 = vmul.f32 %v892, %v569
        %v901 = vmul.f32 %v893, %v569
        %v902 = vmul.f32 %v894, %v569
        %v903 = vmul.f32 %v895, %v569
        %v904 = vadd.f32 %v896, %v583
        %v905 = vadd.f32 %v897, %v583
        %v906 = vadd.f32 %v898, %v583
        %v907 = vadd.f32 %v899, %v583
        %v908 = vadd.f32 %v900, %v583
        %v909 = vadd.f32 %v901, %v583
        %v910 = vadd.f32 %v902, %v583
        %v911 = vadd.f32 %v903, %v583
        %v912 = vmax.f32 %v904, 0.0
        %v913 = vmax.f32 %v905, 0.0
        %v914 = vmax.f32 %v906, 0.0
        %v915 = vmax.f32 %v907, 0.0
        %v916 = vmax.f32 %v908, 0.0
        %v917 = vmax.f32 %v909, 0.0
        %v918 = vmax.f32 %v910, 0.0
        %v919 = vmax.f32 %v911, 0.0
        %v920 = vpack.c.bf16 %v913, %v912
        %v921 = vpack.c.bf16 %v915, %v914
        %v922 = vpack.c.bf16 %v917, %v916
        %v923 = vpack.c.bf16 %v919, %v918
        %v925 = vsel %vm611, %v920, 0
        %v928 = vsel %vm611, %v921, 0
        %v931 = vsel %vm611, %v922, 0
        %v934 = vsel %vm611, %v923, 0
        %936 = vmatprep.subr.bf16.mxu0 0
        %937 = vmatpush1.bf16.msra.mxu0 %v626
        %938 = vmatprep.subr.bf16.mxu0 0
        %939 = vmatpush1.bf16.msra.mxu0 0
        %940 = vmatprep.subr.bf16.mxu0 0
        %941 = vmatpush1.bf16.msra.mxu0 0
        %942 = vmatprep.subr.bf16.mxu0 0
        %943 = vmatpush1.bf16.msra.mxu0 0
        %944 = vmatprep.subr.bf16.mxu0 0
        %945 = vmatpush1.bf16.msra.mxu0 0
        %946 = vmatprep.subr.bf16.mxu0 0
        %947 = vmatpush1.bf16.msra.mxu0 0
        %948 = vmatprep.subr.bf16.mxu0 0
        %949 = vmatpush1.bf16.msra.mxu0 0
        %950 = vmatprep.subr.bf16.mxu0 0
        %951 = vmatpush1.bf16.msra.mxu0 0
        %952 = vmatprep.subr.bf16.mxu0 0
        %953 = vmatpush1.bf16.msra.mxu0 0
        %954 = vmatprep.subr.bf16.mxu0 0
        %955 = vmatpush1.bf16.msra.mxu0 0
        %956 = vmatprep.subr.bf16.mxu0 0
        %957 = vmatpush1.bf16.msra.mxu0 0
        %958 = vmatprep.subr.bf16.mxu0 0
        %959 = vmatpush1.bf16.msra.mxu0 0
        %960 = vmatprep.subr.bf16.mxu0 0
        %961 = vmatpush1.bf16.msra.mxu0 0
        %962 = vmatprep.subr.bf16.mxu0 0
        %963 = vmatpush1.bf16.msra.mxu0 0
        %964 = vmatprep.subr.bf16.mxu0 0
        %965 = vmatpush1.bf16.msra.mxu0 0
        %966 = vmatprep.subr.bf16.mxu0 0
        %967 = vmatpush1.bf16.msra.mxu0 0
        %968 = vmatprep.mubr.bf16.mxu0 0
        %969 = vmatmul.mubr.bf16.gmra.mrb[0].mxu0 %v925
        %v970 = vpop.f32.mrb[0].mxu0
        %v971 = vadd.f32 %v609, %v970
        %v972 = vpop.f32.mrb[0].mxu0
        %v973 = vpop.f32.mrb[0].mxu0
        %v974 = vadd.f32 %v609, %v973
        %v975 = vpop.f32.mrb[0].mxu0
        %976 = vmatprep.mubr.bf16.mxu0 0
        %977 = vmatmul.mubr.bf16.gmra.mrb[0].mxu0 %v928
        %v978 = vpop.f32.mrb[0].mxu0
        %v979 = vadd.f32 %v609, %v978
        %v980 = vpop.f32.mrb[0].mxu0
        %v981 = vpop.f32.mrb[0].mxu0
        %v982 = vadd.f32 %v609, %v981
        %v983 = vpop.f32.mrb[0].mxu0
        %984 = vmatprep.mubr.bf16.mxu0 0
        %985 = vmatmul.mubr.bf16.gmra.mrb[0].mxu0 %v931
        %v986 = vpop.f32.mrb[0].mxu0
        %v987 = vadd.f32 %v609, %v986
        %v988 = vpop.f32.mrb[0].mxu0
        %v989 = vpop.f32.mrb[0].mxu0
        %v990 = vadd.f32 %v609, %v989
        %v991 = vpop.f32.mrb[0].mxu0
        %992 = vmatprep.mubr.bf16.mxu0 0
        %993 = vmatmul.mubr.bf16.gmra.mrb[0].mxu0 %v934
        %v994 = vpop.f32.mrb[0].mxu0
        %v995 = vadd.f32 %v609, %v994
        %v996 = vpop.f32.mrb[0].mxu0
        %v997 = vpop.f32.mrb[0].mxu0
        %v998 = vadd.f32 %v609, %v997
        %v999 = vpop.f32.mrb[0].mxu0
        %1000 = vdwg.mxu0
        %v1001 = vmax.f32 %v971, 0.0
        %v1002 = vmax.f32 %v974, 0.0
        %v1003 = vmax.f32 %v979, 0.0
        %v1004 = vmax.f32 %v982, 0.0
        %v1005 = vmax.f32 %v987, 0.0
        %v1006 = vmax.f32 %v990, 0.0
        %v1007 = vmax.f32 %v995, 0.0
        %v1008 = vmax.f32 %v998, 0.0
        %1009 = vst.msk [vmem:[%s862 + $0x1] sm:$0xff] %vm527, %v1001
        %1010 = vst.msk [vmem:[%s862 + $0x11] sm:$0xff] %vm527, %v1002
        %1011 = vst.msk [vmem:[%s862 + $0x21] sm:$0xff] %vm527, %v1003
        %1012 = vst.msk [vmem:[%s862 + $0x31] sm:$0xff] %vm527, %v1004
        %1013 = vst.msk [vmem:[%s862 + $0x41] sm:$0xff] %vm527, %v1005
        %1014 = vst.msk [vmem:[%s862 + $0x51] sm:$0xff] %vm527, %v1006
        %1015 = vst.msk [vmem:[%s862 + $0x61] sm:$0xff] %vm527, %v1007
        %1016 = vst.msk [vmem:[%s862 + $0x71] sm:$0xff] %vm527, %v1008
        %s1017 = scalar_lea.vmem [#allocation2], 560
        %1018 = vst.msk [vmem:[%s1017] sm:$0xff] %vm527, 0.0
        %1019 = vst.msk [vmem:[%s1017 + $0x8] sm:$0xff] %vm527, 0.0
        %s1020 = scalar_lea.vmem [#allocation2], 432
        %1021 = vst.msk [vmem:[%s1020 + $0x8] sm:$0xff] %vm527, 0.0
        %1022 = vst.msk [vmem:[%s1020 + $0x18] sm:$0xff] %vm527, 0.0
        %1023 = vst.msk [vmem:[%s1020 + $0x28] sm:$0xff] %vm527, 0.0
        %1024 = vst.msk [vmem:[%s1020 + $0x38] sm:$0xff] %vm527, 0.0
        %1025 = vst.msk [vmem:[%s1020 + $0x48] sm:$0xff] %vm527, 0.0
        %1026 = vst.msk [vmem:[%s1020 + $0x58] sm:$0xff] %vm527, 0.0
        %1027 = vst.msk [vmem:[%s1020 + $0x68] sm:$0xff] %vm527, 0.0
        %1028 = vst.msk [vmem:[%s1020 + $0x78] sm:$0xff] %vm527, 0.0
        %s1029 = scalar_lea.vmem %s439, 96 [#allocation3]
        %v1030 = vld [vmem:[%s1029] sm:$0xf]
        %v1031 = vld [vmem:[%s1029 + $0x4] sm:$0xf]
        %v1032 = vld [vmem:[%s1029 + $0x8] sm:$0xf]
        %v1033 = vld [vmem:[%s1029 + $0xc] sm:$0xf]
        %v1034 = vld [vmem:[%s1029 + $0x10] sm:$0xf]
        %v1035 = vld [vmem:[%s1029 + $0x14] sm:$0xf]
        %v1036 = vld [vmem:[%s1029 + $0x18] sm:$0xf]
        %v1037 = vld [vmem:[%s1029 + $0x1c] sm:$0xf]
        %v1038 = vunpack.c.l.bf16 %v1030
        %v1039 = vunpack.c.l.bf16 %v1031
        %v1040 = vunpack.c.l.bf16 %v1032
        %v1041 = vunpack.c.l.bf16 %v1033
        %v1042 = vunpack.c.l.bf16 %v1034
        %v1043 = vunpack.c.l.bf16 %v1035
        %v1044 = vunpack.c.l.bf16 %v1036
        %v1045 = vunpack.c.l.bf16 %v1037
        %v1046 = vmul.f32 %v1038, %v569
        %v1047 = vmul.f32 %v1039, %v569
        %v1048 = vmul.f32 %v1040, %v569
        %v1049 = vmul.f32 %v1041, %v569
        %v1050 = vmul.f32 %v1042, %v569
        %v1051 = vmul.f32 %v1043, %v569
        %v1052 = vmul.f32 %v1044, %v569
        %v1053 = vmul.f32 %v1045, %v569
        %v1054 = vadd.f32 %v1046, %v583
        %v1055 = vadd.f32 %v1047, %v583
        %v1056 = vadd.f32 %v1048, %v583
        %v1057 = vadd.f32 %v1049, %v583
        %v1058 = vadd.f32 %v1050, %v583
        %v1059 = vadd.f32 %v1051, %v583
        %v1060 = vadd.f32 %v1052, %v583
        %v1061 = vadd.f32 %v1053, %v583
        %v1062 = vmax.f32 %v1054, 0.0
        %v1063 = vmax.f32 %v1055, 0.0
        %v1064 = vmax.f32 %v1056, 0.0
        %v1065 = vmax.f32 %v1057, 0.0
        %v1066 = vmax.f32 %v1058, 0.0
        %v1067 = vmax.f32 %v1059, 0.0
        %v1068 = vmax.f32 %v1060, 0.0
        %v1069 = vmax.f32 %v1061, 0.0
        %v1070 = vpack.c.bf16 %v1063, %v1062
        %v1071 = vpack.c.bf16 %v1065, %v1064
        %v1072 = vpack.c.bf16 %v1067, %v1066
        %v1073 = vpack.c.bf16 %v1069, %v1068
        %v1075 = vsel %vm611, %v1070, 0
        %v1078 = vsel %vm611, %v1071, 0
        %v1081 = vsel %vm611, %v1072, 0
        %v1084 = vsel %vm611, %v1073, 0
        %1086 = vmatprep.subr.bf16.mxu0 0
        %1087 = vmatpush1.bf16.msra.mxu0 %v626
        %1088 = vmatprep.subr.bf16.mxu0 0
        %1089 = vmatpush1.bf16.msra.mxu0 0
        %1090 = vmatprep.subr.bf16.mxu0 0
        %1091 = vmatpush1.bf16.msra.mxu0 0
        %1092 = vmatprep.subr.bf16.mxu0 0
        %1093 = vmatpush1.bf16.msra.mxu0 0
        %1094 = vmatprep.subr.bf16.mxu0 0
        %1095 = vmatpush1.bf16.msra.mxu0 0
        %1096 = vmatprep.subr.bf16.mxu0 0
        %1097 = vmatpush1.bf16.msra.mxu0 0
        %1098 = vmatprep.subr.bf16.mxu0 0
        %1099 = vmatpush1.bf16.msra.mxu0 0
        %1100 = vmatprep.subr.bf16.mxu0 0
        %1101 = vmatpush1.bf16.msra.mxu0 0
        %1102 = vmatprep.subr.bf16.mxu0 0
        %1103 = vmatpush1.bf16.msra.mxu0 0
        %1104 = vmatprep.subr.bf16.mxu0 0
        %1105 = vmatpush1.bf16.msra.mxu0 0
        %1106 = vmatprep.subr.bf16.mxu0 0
        %1107 = vmatpush1.bf16.msra.mxu0 0
        %1108 = vmatprep.subr.bf16.mxu0 0
        %1109 = vmatpush1.bf16.msra.mxu0 0
        %1110 = vmatprep.subr.bf16.mxu0 0
        %1111 = vmatpush1.bf16.msra.mxu0 0
        %1112 = vmatprep.subr.bf16.mxu0 0
        %1113 = vmatpush1.bf16.msra.mxu0 0
        %1114 = vmatprep.subr.bf16.mxu0 0
        %1115 = vmatpush1.bf16.msra.mxu0 0
        %1116 = vmatprep.subr.bf16.mxu0 0
        %1117 = vmatpush1.bf16.msra.mxu0 0
        %1118 = vmatprep.mubr.bf16.mxu0 0
        %1119 = vmatmul.mubr.bf16.gmra.mrb[0].mxu0 %v1075
        %v1120 = vpop.f32.mrb[0].mxu0
        %v1121 = vadd.f32 %v609, %v1120
        %v1122 = vpop.f32.mrb[0].mxu0
        %v1123 = vpop.f32.mrb[0].mxu0
        %v1124 = vadd.f32 %v609, %v1123
        %v1125 = vpop.f32.mrb[0].mxu0
        %1126 = vmatprep.mubr.bf16.mxu0 0
        %1127 = vmatmul.mubr.bf16.gmra.mrb[0].mxu0 %v1078
        %v1128 = vpop.f32.mrb[0].mxu0
        %v1129 = vadd.f32 %v609, %v1128
        %v1130 = vpop.f32.mrb[0].mxu0
        %v1131 = vpop.f32.mrb[0].mxu0
        %v1132 = vadd.f32 %v609, %v1131
        %v1133 = vpop.f32.mrb[0].mxu0
        %1134 = vmatprep.mubr.bf16.mxu0 0
        %1135 = vmatmul.mubr.bf16.gmra.mrb[0].mxu0 %v1081
        %v1136 = vpop.f32.mrb[0].mxu0
        %v1137 = vadd.f32 %v609, %v1136
        %v1138 = vpop.f32.mrb[0].mxu0
        %v1139 = vpop.f32.mrb[0].mxu0
        %v1140 = vadd.f32 %v609, %v1139
        %v1141 = vpop.f32.mrb[0].mxu0
        %1142 = vmatprep.mubr.bf16.mxu0 0
        %1143 = vmatmul.mubr.bf16.gmra.mrb[0].mxu0 %v1084
        %v1144 = vpop.f32.mrb[0].mxu0
        %v1145 = vadd.f32 %v609, %v1144
        %v1146 = vpop.f32.mrb[0].mxu0
        %v1147 = vpop.f32.mrb[0].mxu0
        %v1148 = vadd.f32 %v609, %v1147
        %v1149 = vpop.f32.mrb[0].mxu0
        %1150 = vdwg.mxu0
        %v1151 = vmax.f32 %v1121, 0.0
        %v1152 = vmax.f32 %v1124, 0.0
        %v1153 = vmax.f32 %v1129, 0.0
        %v1154 = vmax.f32 %v1132, 0.0
        %v1155 = vmax.f32 %v1137, 0.0
        %v1156 = vmax.f32 %v1140, 0.0
        %v1157 = vmax.f32 %v1145, 0.0
        %v1158 = vmax.f32 %v1148, 0.0
        %1159 = vst.msk [vmem:[%s1020] sm:$0xff] %vm527, %v1151
        %1160 = vst.msk [vmem:[%s1020 + $0x10] sm:$0xff] %vm527, %v1152
        %1161 = vst.msk [vmem:[%s1020 + $0x20] sm:$0xff] %vm527, %v1153
        %1162 = vst.msk [vmem:[%s1020 + $0x30] sm:$0xff] %vm527, %v1154
        %1163 = vst.msk [vmem:[%s1020 + $0x40] sm:$0xff] %vm527, %v1155
        %1164 = vst.msk [vmem:[%s1020 + $0x50] sm:$0xff] %vm527, %v1156
        %1165 = vst.msk [vmem:[%s1020 + $0x60] sm:$0xff] %vm527, %v1157
        %1166 = vst.msk [vmem:[%s1020 + $0x70] sm:$0xff] %vm527, %v1158
        %v1167 = vld [vmem:[#allocation2] sm:$0xff]
        %v1168 = vld [vmem:[#allocation2 + $0x10] sm:$0xff]
        %v1169 = vld [vmem:[#allocation2 + $0x20] sm:$0xff]
        %v1170 = vld [vmem:[#allocation2 + $0x30] sm:$0xff]
        %v1171 = vld [vmem:[#allocation2 + $0x40] sm:$0xff]
        %v1172 = vld [vmem:[#allocation2 + $0x50] sm:$0xff]
        %v1173 = vld [vmem:[#allocation2 + $0x60] sm:$0xff]
        %v1174 = vld [vmem:[#allocation2 + $0x70] sm:$0xff]
        %v1175 = vpack.c.bf16 %v1168, %v1167
        %v1176 = vpack.c.bf16 %v1170, %v1169
        %v1177 = vpack.c.bf16 %v1172, %v1171
        %v1178 = vpack.c.bf16 %v1174, %v1173
        %v1179 = vld [vmem:[#allocation14] sm:$0xf]
        %v1180 = vld [vmem:[#allocation14 + $0x4] sm:$0xf]
        %v1181 = vld [vmem:[%s709] sm:$0xff]
        %v1182 = vld [vmem:[%s709 + $0x10] sm:$0xff]
        %v1183 = vld [vmem:[%s709 + $0x20] sm:$0xff]
        %v1184 = vld [vmem:[%s709 + $0x30] sm:$0xff]
        %v1185 = vld [vmem:[%s709 + $0x40] sm:$0xff]
        %v1186 = vld [vmem:[%s709 + $0x50] sm:$0xff]
        %v1187 = vld [vmem:[%s709 + $0x60] sm:$0xff]
        %v1188 = vld [vmem:[%s709 + $0x70] sm:$0xff]
        %v1189 = vpack.c.bf16 %v1182, %v1181
        %v1190 = vpack.c.bf16 %v1184, %v1183
        %v1191 = vpack.c.bf16 %v1186, %v1185
        %v1192 = vpack.c.bf16 %v1188, %v1187
        %s1193 = scalar_lea.vmem [#allocation14], 8
        %v1194 = vld [vmem:[%s1193] sm:$0xf]
        %v1195 = vld [vmem:[%s1193 + $0x4] sm:$0xf]
        %v1198 = vunpack.c.l.b16 %v1194
        %v1199 = vunpack.c.l.b16 %v1195
        %v1200 = vpack.c.b16 %v1199, %v1198
        %v1203 = vsel %vm527, %v1189, 0
        %v1206 = vsel %vm527, %v1190, 0
        %v1209 = vsel %vm527, %v1191, 0
        %v1212 = vsel %vm527, %v1192, 0
        %1214 = vmatprep.subr.bf16.mxu0 0
        %1215 = vmatpush1.bf16.msra.mxu0 %v1200
        %1216 = vmatprep.subr.bf16.mxu0 0
        %1217 = vmatpush1.bf16.msra.mxu0 0
        %1218 = vmatprep.subr.bf16.mxu0 0
        %1219 = vmatpush1.bf16.msra.mxu0 0
        %1220 = vmatprep.subr.bf16.mxu0 0
        %1221 = vmatpush1.bf16.msra.mxu0 0
        %1222 = vmatprep.subr.bf16.mxu0 0
        %1223 = vmatpush1.bf16.msra.mxu0 0
        %1224 = vmatprep.subr.bf16.mxu0 0
        %1225 = vmatpush1.bf16.msra.mxu0 0
        %1226 = vmatprep.subr.bf16.mxu0 0
        %1227 = vmatpush1.bf16.msra.mxu0 0
        %1228 = vmatprep.subr.bf16.mxu0 0
        %1229 = vmatpush1.bf16.msra.mxu0 0
        %1230 = vmatprep.subr.bf16.mxu0 0
        %1231 = vmatpush1.bf16.msra.mxu0 0
        %1232 = vmatprep.subr.bf16.mxu0 0
        %1233 = vmatpush1.bf16.msra.mxu0 0
        %1234 = vmatprep.subr.bf16.mxu0 0
        %1235 = vmatpush1.bf16.msra.mxu0 0
        %1236 = vmatprep.subr.bf16.mxu0 0
        %1237 = vmatpush1.bf16.msra.mxu0 0
        %1238 = vmatprep.subr.bf16.mxu0 0
        %1239 = vmatpush1.bf16.msra.mxu0 0
        %1240 = vmatprep.subr.bf16.mxu0 0
        %1241 = vmatpush1.bf16.msra.mxu0 0
        %1242 = vmatprep.subr.bf16.mxu0 0
        %1243 = vmatpush1.bf16.msra.mxu0 0
        %1244 = vmatprep.subr.bf16.mxu0 0
        %1245 = vmatpush1.bf16.msra.mxu0 0
        %1246 = vmatprep.mubr.bf16.mxu0 0
        %1247 = vmatmul.mubr.bf16.gmra.mrb[0].mxu0 %v1203
        %v1248 = vpop.f32.mrb[0].mxu0
        %v1249 = vadd.f32 0.0, %v1248
        %v1250 = vpop.f32.mrb[0].mxu0
        %v1251 = vpop.f32.mrb[0].mxu0
        %v1252 = vadd.f32 0.0, %v1251
        %v1253 = vpop.f32.mrb[0].mxu0
        %1254 = vmatprep.mubr.bf16.mxu0 0
        %1255 = vmatmul.mubr.bf16.gmra.mrb[0].mxu0 %v1206
        %v1256 = vpop.f32.mrb[0].mxu0
        %v1257 = vadd.f32 0.0, %v1256
        %v1258 = vpop.f32.mrb[0].mxu0
        %v1259 = vpop.f32.mrb[0].mxu0
        %v1260 = vadd.f32 0.0, %v1259
        %v1261 = vpop.f32.mrb[0].mxu0
        %1262 = vmatprep.mubr.bf16.mxu0 0
        %1263 = vmatmul.mubr.bf16.gmra.mrb[0].mxu0 %v1209
        %v1264 = vpop.f32.mrb[0].mxu0
        %v1265 = vadd.f32 0.0, %v1264
        %v1266 = vpop.f32.mrb[0].mxu0
        %v1267 = vpop.f32.mrb[0].mxu0
        %v1268 = vadd.f32 0.0, %v1267
        %v1269 = vpop.f32.mrb[0].mxu0
        %1270 = vmatprep.mubr.bf16.mxu0 0
        %1271 = vmatmul.mubr.bf16.gmra.mrb[0].mxu0 %v1212
        %v1272 = vpop.f32.mrb[0].mxu0
        %v1273 = vadd.f32 0.0, %v1272
        %v1274 = vpop.f32.mrb[0].mxu0
        %v1275 = vpop.f32.mrb[0].mxu0
        %v1276 = vadd.f32 0.0, %v1275
        %v1277 = vpop.f32.mrb[0].mxu0
        %1278 = vdwg.mxu0
        %v1281 = vunpack.c.l.b16 %v1179
        %v1282 = vunpack.c.l.b16 %v1180
        %v1283 = vpack.c.b16 %v1282, %v1281
        %v1286 = vsel %vm527, %v1175, 0
        %v1289 = vsel %vm527, %v1176, 0
        %v1292 = vsel %vm527, %v1177, 0
        %v1295 = vsel %vm527, %v1178, 0
        %1297 = vmatprep.subr.bf16.mxu0 0
        %1298 = vmatpush1.bf16.msra.mxu0 %v1283
        %1299 = vmatprep.subr.bf16.mxu0 0
        %1300 = vmatpush1.bf16.msra.mxu0 0
        %1301 = vmatprep.subr.bf16.mxu0 0
        %1302 = vmatpush1.bf16.msra.mxu0 0
        %1303 = vmatprep.subr.bf16.mxu0 0
        %1304 = vmatpush1.bf16.msra.mxu0 0
        %1305 = vmatprep.subr.bf16.mxu0 0
        %1306 = vmatpush1.bf16.msra.mxu0 0
        %1307 = vmatprep.subr.bf16.mxu0 0
        %1308 = vmatpush1.bf16.msra.mxu0 0
        %1309 = vmatprep.subr.bf16.mxu0 0
        %1310 = vmatpush1.bf16.msra.mxu0 0
        %1311 = vmatprep.subr.bf16.mxu0 0
        %1312 = vmatpush1.bf16.msra.mxu0 0
        %1313 = vmatprep.subr.bf16.mxu0 0
        %1314 = vmatpush1.bf16.msra.mxu0 0
        %1315 = vmatprep.subr.bf16.mxu0 0
        %1316 = vmatpush1.bf16.msra.mxu0 0
        %1317 = vmatprep.subr.bf16.mxu0 0
        %1318 = vmatpush1.bf16.msra.mxu0 0
        %1319 = vmatprep.subr.bf16.mxu0 0
        %1320 = vmatpush1.bf16.msra.mxu0 0
        %1321 = vmatprep.subr.bf16.mxu0 0
        %1322 = vmatpush1.bf16.msra.mxu0 0
        %1323 = vmatprep.subr.bf16.mxu0 0
        %1324 = vmatpush1.bf16.msra.mxu0 0
        %1325 = vmatprep.subr.bf16.mxu0 0
        %1326 = vmatpush1.bf16.msra.mxu0 0
        %1327 = vmatprep.subr.bf16.mxu0 0
        %1328 = vmatpush1.bf16.msra.mxu0 0
        %1329 = vmatprep.mubr.bf16.mxu0 0
        %1330 = vmatmul.mubr.bf16.gmra.mrb[0].mxu0 %v1286
        %v1331 = vpop.f32.mrb[0].mxu0
        %v1332 = vadd.f32 %v1249, %v1331
        %v1333 = vpop.f32.mrb[0].mxu0
        %v1334 = vpop.f32.mrb[0].mxu0
        %v1335 = vadd.f32 %v1252, %v1334
        %v1336 = vpop.f32.mrb[0].mxu0
        %1337 = vmatprep.mubr.bf16.mxu0 0
        %1338 = vmatmul.mubr.bf16.gmra.mrb[0].mxu0 %v1289
        %v1339 = vpop.f32.mrb[0].mxu0
        %v1340 = vadd.f32 %v1257, %v1339
        %v1341 = vpop.f32.mrb[0].mxu0
        %v1342 = vpop.f32.mrb[0].mxu0
        %v1343 = vadd.f32 %v1260, %v1342
        %v1344 = vpop.f32.mrb[0].mxu0
        %1345 = vmatprep.mubr.bf16.mxu0 0
        %1346 = vmatmul.mubr.bf16.gmra.mrb[0].mxu0 %v1292
        %v1347 = vpop.f32.mrb[0].mxu0
        %v1348 = vadd.f32 %v1265, %v1347
        %v1349 = vpop.f32.mrb[0].mxu0
        %v1350 = vpop.f32.mrb[0].mxu0
        %v1351 = vadd.f32 %v1268, %v1350
        %v1352 = vpop.f32.mrb[0].mxu0
        %1353 = vmatprep.mubr.bf16.mxu0 0
        %1354 = vmatmul.mubr.bf16.gmra.mrb[0].mxu0 %v1295
        %v1355 = vpop.f32.mrb[0].mxu0
        %v1356 = vadd.f32 %v1273, %v1355
        %v1357 = vpop.f32.mrb[0].mxu0
        %v1358 = vpop.f32.mrb[0].mxu0
        %v1359 = vadd.f32 %v1276, %v1358
        %v1360 = vpop.f32.mrb[0].mxu0
        %1361 = vdwg.mxu0
        %v1362 = vld [vmem:[#allocation2 + $0x1] sm:$0xff]
        %v1363 = vld [vmem:[#allocation2 + $0x11] sm:$0xff]
        %v1364 = vld [vmem:[#allocation2 + $0x21] sm:$0xff]
        %v1365 = vld [vmem:[#allocation2 + $0x31] sm:$0xff]
        %v1366 = vld [vmem:[#allocation2 + $0x41] sm:$0xff]
        %v1367 = vld [vmem:[#allocation2 + $0x51] sm:$0xff]
        %v1368 = vld [vmem:[#allocation2 + $0x61] sm:$0xff]
        %v1369 = vld [vmem:[#allocation2 + $0x71] sm:$0xff]
        %v1370 = vpack.c.bf16 %v1363, %v1362
        %v1371 = vpack.c.bf16 %v1365, %v1364
        %v1372 = vpack.c.bf16 %v1367, %v1366
        %v1373 = vpack.c.bf16 %v1369, %v1368
        %s1374 = scalar_lea.vmem [#allocation14], 16
        %v1375 = vld [vmem:[%s1374] sm:$0xf]
        %v1376 = vld [vmem:[%s1374 + $0x4] sm:$0xf]
        %v1379 = vunpack.c.l.b16 %v1375
        %v1380 = vunpack.c.l.b16 %v1376
        %v1381 = vpack.c.b16 %v1380, %v1379
        %v1384 = vsel %vm527, %v1370, 0
        %v1387 = vsel %vm527, %v1371, 0
        %v1390 = vsel %vm527, %v1372, 0
        %v1393 = vsel %vm527, %v1373, 0
        %1395 = vmatprep.subr.bf16.mxu0 0
        %1396 = vmatpush1.bf16.msra.mxu0 %v1381
        %1397 = vmatprep.subr.bf16.mxu0 0
        %1398 = vmatpush1.bf16.msra.mxu0 0
        %1399 = vmatprep.subr.bf16.mxu0 0
        %1400 = vmatpush1.bf16.msra.mxu0 0
        %1401 = vmatprep.subr.bf16.mxu0 0
        %1402 = vmatpush1.bf16.msra.mxu0 0
        %1403 = vmatprep.subr.bf16.mxu0 0
        %1404 = vmatpush1.bf16.msra.mxu0 0
        %1405 = vmatprep.subr.bf16.mxu0 0
        %1406 = vmatpush1.bf16.msra.mxu0 0
        %1407 = vmatprep.subr.bf16.mxu0 0
        %1408 = vmatpush1.bf16.msra.mxu0 0
        %1409 = vmatprep.subr.bf16.mxu0 0
        %1410 = vmatpush1.bf16.msra.mxu0 0
        %1411 = vmatprep.subr.bf16.mxu0 0
        %1412 = vmatpush1.bf16.msra.mxu0 0
        %1413 = vmatprep.subr.bf16.mxu0 0
        %1414 = vmatpush1.bf16.msra.mxu0 0
        %1415 = vmatprep.subr.bf16.mxu0 0
        %1416 = vmatpush1.bf16.msra.mxu0 0
        %1417 = vmatprep.subr.bf16.mxu0 0
        %1418 = vmatpush1.bf16.msra.mxu0 0
        %1419 = vmatprep.subr.bf16.mxu0 0
        %1420 = vmatpush1.bf16.msra.mxu0 0
        %1421 = vmatprep.subr.bf16.mxu0 0
        %1422 = vmatpush1.bf16.msra.mxu0 0
        %1423 = vmatprep.subr.bf16.mxu0 0
        %1424 = vmatpush1.bf16.msra.mxu0 0
        %1425 = vmatprep.subr.bf16.mxu0 0
        %1426 = vmatpush1.bf16.msra.mxu0 0
        %1427 = vmatprep.mubr.bf16.mxu0 0
        %1428 = vmatmul.mubr.bf16.gmra.mrb[0].mxu0 %v1384
        %v1429 = vpop.f32.mrb[0].mxu0
        %v1430 = vadd.f32 0.0, %v1429
        %v1431 = vpop.f32.mrb[0].mxu0
        %v1432 = vpop.f32.mrb[0].mxu0
        %v1433 = vadd.f32 0.0, %v1432
        %v1434 = vpop.f32.mrb[0].mxu0
        %1435 = vmatprep.mubr.bf16.mxu0 0
        %1436 = vmatmul.mubr.bf16.gmra.mrb[0].mxu0 %v1387
        %v1437 = vpop.f32.mrb[0].mxu0
        %v1438 = vadd.f32 0.0, %v1437
        %v1439 = vpop.f32.mrb[0].mxu0
        %v1440 = vpop.f32.mrb[0].mxu0
        %v1441 = vadd.f32 0.0, %v1440
        %v1442 = vpop.f32.mrb[0].mxu0
        %1443 = vmatprep.mubr.bf16.mxu0 0
        %1444 = vmatmul.mubr.bf16.gmra.mrb[0].mxu0 %v1390
        %v1445 = vpop.f32.mrb[0].mxu0
        %v1446 = vadd.f32 0.0, %v1445
        %v1447 = vpop.f32.mrb[0].mxu0
        %v1448 = vpop.f32.mrb[0].mxu0
        %v1449 = vadd.f32 0.0, %v1448
        %v1450 = vpop.f32.mrb[0].mxu0
        %1451 = vmatprep.mubr.bf16.mxu0 0
        %1452 = vmatmul.mubr.bf16.gmra.mrb[0].mxu0 %v1393
        %v1453 = vpop.f32.mrb[0].mxu0
        %v1454 = vadd.f32 0.0, %v1453
        %v1455 = vpop.f32.mrb[0].mxu0
        %v1456 = vpop.f32.mrb[0].mxu0
        %v1457 = vadd.f32 0.0, %v1456
        %v1458 = vpop.f32.mrb[0].mxu0
        %1459 = vdwg.mxu0
        %v1460 = vadd.f32 %v1332, %v1430
        %v1461 = vadd.f32 %v1335, %v1433
        %v1462 = vadd.f32 %v1340, %v1438
        %v1463 = vadd.f32 %v1343, %v1441
        %v1464 = vadd.f32 %v1348, %v1446
        %v1465 = vadd.f32 %v1351, %v1449
        %v1466 = vadd.f32 %v1356, %v1454
        %v1467 = vadd.f32 %v1359, %v1457
        %v1468 = vld [vmem:[%s862] sm:$0xff]
        %v1469 = vld [vmem:[%s862 + $0x10] sm:$0xff]
        %v1470 = vld [vmem:[%s862 + $0x20] sm:$0xff]
        %v1471 = vld [vmem:[%s862 + $0x30] sm:$0xff]
        %v1472 = vld [vmem:[%s862 + $0x40] sm:$0xff]
        %v1473 = vld [vmem:[%s862 + $0x50] sm:$0xff]
        %v1474 = vld [vmem:[%s862 + $0x60] sm:$0xff]
        %v1475 = vld [vmem:[%s862 + $0x70] sm:$0xff]
        %v1476 = vpack.c.bf16 %v1469, %v1468
        %v1477 = vpack.c.bf16 %v1471, %v1470
        %v1478 = vpack.c.bf16 %v1473, %v1472
        %v1479 = vpack.c.bf16 %v1475, %v1474
        %s1480 = scalar_lea.vmem [#allocation14], 24
        %v1481 = vld [vmem:[%s1480] sm:$0xf]
        %v1482 = vld [vmem:[%s1480 + $0x4] sm:$0xf]
        %v1485 = vunpack.c.l.b16 %v1481
        %v1486 = vunpack.c.l.b16 %v1482
        %v1487 = vpack.c.b16 %v1486, %v1485
        %v1490 = vsel %vm527, %v1476, 0
        %v1493 = vsel %vm527, %v1477, 0
        %v1496 = vsel %vm527, %v1478, 0
        %v1499 = vsel %vm527, %v1479, 0
        %1501 = vmatprep.subr.bf16.mxu0 0
        %1502 = vmatpush1.bf16.msra.mxu0 %v1487
        %1503 = vmatprep.subr.bf16.mxu0 0
        %1504 = vmatpush1.bf16.msra.mxu0 0
        %1505 = vmatprep.subr.bf16.mxu0 0
        %1506 = vmatpush1.bf16.msra.mxu0 0
        %1507 = vmatprep.subr.bf16.mxu0 0
        %1508 = vmatpush1.bf16.msra.mxu0 0
        %1509 = vmatprep.subr.bf16.mxu0 0
        %1510 = vmatpush1.bf16.msra.mxu0 0
        %1511 = vmatprep.subr.bf16.mxu0 0
        %1512 = vmatpush1.bf16.msra.mxu0 0
        %1513 = vmatprep.subr.bf16.mxu0 0
        %1514 = vmatpush1.bf16.msra.mxu0 0
        %1515 = vmatprep.subr.bf16.mxu0 0
        %1516 = vmatpush1.bf16.msra.mxu0 0
        %1517 = vmatprep.subr.bf16.mxu0 0
        %1518 = vmatpush1.bf16.msra.mxu0 0
        %1519 = vmatprep.subr.bf16.mxu0 0
        %1520 = vmatpush1.bf16.msra.mxu0 0
        %1521 = vmatprep.subr.bf16.mxu0 0
        %1522 = vmatpush1.bf16.msra.mxu0 0
        %1523 = vmatprep.subr.bf16.mxu0 0
        %1524 = vmatpush1.bf16.msra.mxu0 0
        %1525 = vmatprep.subr.bf16.mxu0 0
        %1526 = vmatpush1.bf16.msra.mxu0 0
        %1527 = vmatprep.subr.bf16.mxu0 0
        %1528 = vmatpush1.bf16.msra.mxu0 0
        %1529 = vmatprep.subr.bf16.mxu0 0
        %1530 = vmatpush1.bf16.msra.mxu0 0
        %1531 = vmatprep.subr.bf16.mxu0 0
        %1532 = vmatpush1.bf16.msra.mxu0 0
        %1533 = vmatprep.mubr.bf16.mxu0 0
        %1534 = vmatmul.mubr.bf16.gmra.mrb[0].mxu0 %v1490
        %v1535 = vpop.f32.mrb[0].mxu0
        %v1536 = vadd.f32 0.0, %v1535
        %v1537 = vpop.f32.mrb[0].mxu0
        %v1538 = vpop.f32.mrb[0].mxu0
        %v1539 = vadd.f32 0.0, %v1538
        %v1540 = vpop.f32.mrb[0].mxu0
        %1541 = vmatprep.mubr.bf16.mxu0 0
        %1542 = vmatmul.mubr.bf16.gmra.mrb[0].mxu0 %v1493
        %v1543 = vpop.f32.mrb[0].mxu0
        %v1544 = vadd.f32 0.0, %v1543
        %v1545 = vpop.f32.mrb[0].mxu0
        %v1546 = vpop.f32.mrb[0].mxu0
        %v1547 = vadd.f32 0.0, %v1546
        %v1548 = vpop.f32.mrb[0].mxu0
        %1549 = vmatprep.mubr.bf16.mxu0 0
        %1550 = vmatmul.mubr.bf16.gmra.mrb[0].mxu0 %v1496
        %v1551 = vpop.f32.mrb[0].mxu0
        %v1552 = vadd.f32 0.0, %v1551
        %v1553 = vpop.f32.mrb[0].mxu0
        %v1554 = vpop.f32.mrb[0].mxu0
        %v1555 = vadd.f32 0.0, %v1554
        %v1556 = vpop.f32.mrb[0].mxu0
        %1557 = vmatprep.mubr.bf16.mxu0 0
        %1558 = vmatmul.mubr.bf16.gmra.mrb[0].mxu0 %v1499
        %v1559 = vpop.f32.mrb[0].mxu0
        %v1560 = vadd.f32 0.0, %v1559
        %v1561 = vpop.f32.mrb[0].mxu0
        %v1562 = vpop.f32.mrb[0].mxu0
        %v1563 = vadd.f32 0.0, %v1562
        %v1564 = vpop.f32.mrb[0].mxu0
        %1565 = vdwg.mxu0
        %v1566 = vadd.f32 %v1460, %v1536
        %v1567 = vadd.f32 %v1461, %v1539
        %v1568 = vadd.f32 %v1462, %v1544
        %v1569 = vadd.f32 %v1463, %v1547
        %v1570 = vadd.f32 %v1464, %v1552
        %v1571 = vadd.f32 %v1465, %v1555
        %v1572 = vadd.f32 %v1466, %v1560
        %v1573 = vadd.f32 %v1467, %v1563
        %v1574 = vld [vmem:[%s1020] sm:$0xff]
        %v1575 = vld [vmem:[%s1020 + $0x10] sm:$0xff]
        %v1576 = vld [vmem:[%s1020 + $0x20] sm:$0xff]
        %v1577 = vld [vmem:[%s1020 + $0x30] sm:$0xff]
        %v1578 = vld [vmem:[%s1020 + $0x40] sm:$0xff]
        %v1579 = vld [vmem:[%s1020 + $0x50] sm:$0xff]
        %v1580 = vld [vmem:[%s1020 + $0x60] sm:$0xff]
        %v1581 = vld [vmem:[%s1020 + $0x70] sm:$0xff]
        %v1582 = vpack.c.bf16 %v1575, %v1574
        %v1583 = vpack.c.bf16 %v1577, %v1576
        %v1584 = vpack.c.bf16 %v1579, %v1578
        %v1585 = vpack.c.bf16 %v1581, %v1580
        %s1586 = scalar_lea.vmem [#allocation14], 32
        %v1587 = vld [vmem:[%s1586] sm:$0xf]
        %v1588 = vld [vmem:[%s1586 + $0x4] sm:$0xf]
        %v1591 = vunpack.c.l.b16 %v1587
        %v1592 = vunpack.c.l.b16 %v1588
        %v1593 = vpack.c.b16 %v1592, %v1591
        %v1596 = vsel %vm527, %v1582, 0
        %v1599 = vsel %vm527, %v1583, 0
        %v1602 = vsel %vm527, %v1584, 0
        %v1605 = vsel %vm527, %v1585, 0
        %1607 = vmatprep.subr.bf16.mxu0 0
        %1608 = vmatpush1.bf16.msra.mxu0 %v1593
        %1609 = vmatprep.subr.bf16.mxu0 0
        %1610 = vmatpush1.bf16.msra.mxu0 0
        %1611 = vmatprep.subr.bf16.mxu0 0
        %1612 = vmatpush1.bf16.msra.mxu0 0
        %1613 = vmatprep.subr.bf16.mxu0 0
        %1614 = vmatpush1.bf16.msra.mxu0 0
        %1615 = vmatprep.subr.bf16.mxu0 0
        %1616 = vmatpush1.bf16.msra.mxu0 0
        %1617 = vmatprep.subr.bf16.mxu0 0
        %1618 = vmatpush1.bf16.msra.mxu0 0
        %1619 = vmatprep.subr.bf16.mxu0 0
        %1620 = vmatpush1.bf16.msra.mxu0 0
        %1621 = vmatprep.subr.bf16.mxu0 0
        %1622 = vmatpush1.bf16.msra.mxu0 0
        %1623 = vmatprep.subr.bf16.mxu0 0
        %1624 = vmatpush1.bf16.msra.mxu0 0
        %1625 = vmatprep.subr.bf16.mxu0 0
        %1626 = vmatpush1.bf16.msra.mxu0 0
        %1627 = vmatprep.subr.bf16.mxu0 0
        %1628 = vmatpush1.bf16.msra.mxu0 0
        %1629 = vmatprep.subr.bf16.mxu0 0
        %1630 = vmatpush1.bf16.msra.mxu0 0
        %1631 = vmatprep.subr.bf16.mxu0 0
        %1632 = vmatpush1.bf16.msra.mxu0 0
        %1633 = vmatprep.subr.bf16.mxu0 0
        %1634 = vmatpush1.bf16.msra.mxu0 0
        %1635 = vmatprep.subr.bf16.mxu0 0
        %1636 = vmatpush1.bf16.msra.mxu0 0
        %1637 = vmatprep.subr.bf16.mxu0 0
        %1638 = vmatpush1.bf16.msra.mxu0 0
        %1639 = vmatprep.mubr.bf16.mxu0 0
        %1640 = vmatmul.mubr.bf16.gmra.mrb[0].mxu0 %v1596
        %v1641 = vpop.f32.mrb[0].mxu0
        %v1642 = vadd.f32 0.0, %v1641
        %v1643 = vpop.f32.mrb[0].mxu0
        %v1644 = vpop.f32.mrb[0].mxu0
        %v1645 = vadd.f32 0.0, %v1644
        %v1646 = vpop.f32.mrb[0].mxu0
        %1647 = vmatprep.mubr.bf16.mxu0 0
        %1648 = vmatmul.mubr.bf16.gmra.mrb[0].mxu0 %v1599
        %v1649 = vpop.f32.mrb[0].mxu0
        %v1650 = vadd.f32 0.0, %v1649
        %v1651 = vpop.f32.mrb[0].mxu0
        %v1652 = vpop.f32.mrb[0].mxu0
        %v1653 = vadd.f32 0.0, %v1652
        %v1654 = vpop.f32.mrb[0].mxu0
        %1655 = vmatprep.mubr.bf16.mxu0 0
        %1656 = vmatmul.mubr.bf16.gmra.mrb[0].mxu0 %v1602
        %v1657 = vpop.f32.mrb[0].mxu0
        %v1658 = vadd.f32 0.0, %v1657
        %v1659 = vpop.f32.mrb[0].mxu0
        %v1660 = vpop.f32.mrb[0].mxu0
        %v1661 = vadd.f32 0.0, %v1660
        %v1662 = vpop.f32.mrb[0].mxu0
        %1663 = vmatprep.mubr.bf16.mxu0 0
        %1664 = vmatmul.mubr.bf16.gmra.mrb[0].mxu0 %v1605
        %v1665 = vpop.f32.mrb[0].mxu0
        %v1666 = vadd.f32 0.0, %v1665
        %v1667 = vpop.f32.mrb[0].mxu0
        %v1668 = vpop.f32.mrb[0].mxu0
        %v1669 = vadd.f32 0.0, %v1668
        %v1670 = vpop.f32.mrb[0].mxu0
        %1671 = vdwg.mxu0
        %v1672 = vadd.f32 %v1566, %v1642
        %v1673 = vadd.f32 %v1567, %v1645
        %v1674 = vadd.f32 %v1568, %v1650
        %v1675 = vadd.f32 %v1569, %v1653
        %v1676 = vadd.f32 %v1570, %v1658
        %v1677 = vadd.f32 %v1571, %v1661
        %v1678 = vadd.f32 %v1572, %v1666
        %v1679 = vadd.f32 %v1573, %v1669
        %v1680 = vld [vmem:[%s862 + $0x1] sm:$0xff]
        %v1681 = vld [vmem:[%s862 + $0x11] sm:$0xff]
        %v1682 = vld [vmem:[%s862 + $0x21] sm:$0xff]
        %v1683 = vld [vmem:[%s862 + $0x31] sm:$0xff]
        %v1684 = vld [vmem:[%s862 + $0x41] sm:$0xff]
        %v1685 = vld [vmem:[%s862 + $0x51] sm:$0xff]
        %v1686 = vld [vmem:[%s862 + $0x61] sm:$0xff]
        %v1687 = vld [vmem:[%s862 + $0x71] sm:$0xff]
        %v1688 = vpack.c.bf16 %v1681, %v1680
        %v1689 = vpack.c.bf16 %v1683, %v1682
        %v1690 = vpack.c.bf16 %v1685, %v1684
        %v1691 = vpack.c.bf16 %v1687, %v1686
        %s1692 = scalar_lea.vmem [#allocation14], 40
        %v1693 = vld [vmem:[%s1692] sm:$0xf]
        %v1694 = vld [vmem:[%s1692 + $0x4] sm:$0xf]
        %v1697 = vunpack.c.l.b16 %v1693
        %v1698 = vunpack.c.l.b16 %v1694
        %v1699 = vpack.c.b16 %v1698, %v1697
        %v1702 = vsel %vm527, %v1688, 0
        %v1705 = vsel %vm527, %v1689, 0
        %v1708 = vsel %vm527, %v1690, 0
        %v1711 = vsel %vm527, %v1691, 0
        %1713 = vmatprep.subr.bf16.mxu0 0
        %1714 = vmatpush1.bf16.msra.mxu0 %v1699
        %1715 = vmatprep.subr.bf16.mxu0 0
        %1716 = vmatpush1.bf16.msra.mxu0 0
        %1717 = vmatprep.subr.bf16.mxu0 0
        %1718 = vmatpush1.bf16.msra.mxu0 0
        %1719 = vmatprep.subr.bf16.mxu0 0
        %1720 = vmatpush1.bf16.msra.mxu0 0
        %1721 = vmatprep.subr.bf16.mxu0 0
        %1722 = vmatpush1.bf16.msra.mxu0 0
        %1723 = vmatprep.subr.bf16.mxu0 0
        %1724 = vmatpush1.bf16.msra.mxu0 0
        %1725 = vmatprep.subr.bf16.mxu0 0
        %1726 = vmatpush1.bf16.msra.mxu0 0
        %1727 = vmatprep.subr.bf16.mxu0 0
        %1728 = vmatpush1.bf16.msra.mxu0 0
        %1729 = vmatprep.subr.bf16.mxu0 0
        %1730 = vmatpush1.bf16.msra.mxu0 0
        %1731 = vmatprep.subr.bf16.mxu0 0
        %1732 = vmatpush1.bf16.msra.mxu0 0
        %1733 = vmatprep.subr.bf16.mxu0 0
        %1734 = vmatpush1.bf16.msra.mxu0 0
        %1735 = vmatprep.subr.bf16.mxu0 0
        %1736 = vmatpush1.bf16.msra.mxu0 0
        %1737 = vmatprep.subr.bf16.mxu0 0
        %1738 = vmatpush1.bf16.msra.mxu0 0
        %1739 = vmatprep.subr.bf16.mxu0 0
        %1740 = vmatpush1.bf16.msra.mxu0 0
        %1741 = vmatprep.subr.bf16.mxu0 0
        %1742 = vmatpush1.bf16.msra.mxu0 0
        %1743 = vmatprep.subr.bf16.mxu0 0
        %1744 = vmatpush1.bf16.msra.mxu0 0
        %1745 = vmatprep.mubr.bf16.mxu0 0
        %1746 = vmatmul.mubr.bf16.gmra.mrb[0].mxu0 %v1702
        %v1747 = vpop.f32.mrb[0].mxu0
        %v1748 = vadd.f32 0.0, %v1747
        %v1749 = vpop.f32.mrb[0].mxu0
        %v1750 = vpop.f32.mrb[0].mxu0
        %v1751 = vadd.f32 0.0, %v1750
        %v1752 = vpop.f32.mrb[0].mxu0
        %1753 = vmatprep.mubr.bf16.mxu0 0
        %1754 = vmatmul.mubr.bf16.gmra.mrb[0].mxu0 %v1705
        %v1755 = vpop.f32.mrb[0].mxu0
        %v1756 = vadd.f32 0.0, %v1755
        %v1757 = vpop.f32.mrb[0].mxu0
        %v1758 = vpop.f32.mrb[0].mxu0
        %v1759 = vadd.f32 0.0, %v1758
        %v1760 = vpop.f32.mrb[0].mxu0
        %1761 = vmatprep.mubr.bf16.mxu0 0
        %1762 = vmatmul.mubr.bf16.gmra.mrb[0].mxu0 %v1708
        %v1763 = vpop.f32.mrb[0].mxu0
        %v1764 = vadd.f32 0.0, %v1763
        %v1765 = vpop.f32.mrb[0].mxu0
        %v1766 = vpop.f32.mrb[0].mxu0
        %v1767 = vadd.f32 0.0, %v1766
        %v1768 = vpop.f32.mrb[0].mxu0
        %1769 = vmatprep.mubr.bf16.mxu0 0
        %1770 = vmatmul.mubr.bf16.gmra.mrb[0].mxu0 %v1711
        %v1771 = vpop.f32.mrb[0].mxu0
        %v1772 = vadd.f32 0.0, %v1771
        %v1773 = vpop.f32.mrb[0].mxu0
        %v1774 = vpop.f32.mrb[0].mxu0
        %v1775 = vadd.f32 0.0, %v1774
        %v1776 = vpop.f32.mrb[0].mxu0
        %1777 = vdwg.mxu0
        %v1778 = vadd.f32 %v1672, %v1748
        %v1779 = vadd.f32 %v1673, %v1751
        %v1780 = vadd.f32 %v1674, %v1756
        %v1781 = vadd.f32 %v1675, %v1759
        %v1782 = vadd.f32 %v1676, %v1764
        %v1783 = vadd.f32 %v1677, %v1767
        %v1784 = vadd.f32 %v1678, %v1772
        %v1785 = vadd.f32 %v1679, %v1775
        %v1786 = vld [vmem:[%s530] sm:$0xff]
        %v1787 = vld [vmem:[%s530 + $0x10] sm:$0xff]
        %v1788 = vld [vmem:[%s530 + $0x20] sm:$0xff]
        %v1789 = vld [vmem:[%s530 + $0x30] sm:$0xff]
        %v1790 = vld [vmem:[%s530 + $0x40] sm:$0xff]
        %v1791 = vld [vmem:[%s530 + $0x50] sm:$0xff]
        %v1792 = vld [vmem:[%s530 + $0x60] sm:$0xff]
        %v1793 = vld [vmem:[%s530 + $0x70] sm:$0xff]
        %v1794 = vpack.c.bf16 %v1787, %v1786
        %v1795 = vpack.c.bf16 %v1789, %v1788
        %v1796 = vpack.c.bf16 %v1791, %v1790
        %v1797 = vpack.c.bf16 %v1793, %v1792
        %s1798 = scalar_lea.vmem [#allocation14], 48
        %v1799 = vld [vmem:[%s1798] sm:$0xf]
        %v1800 = vld [vmem:[%s1798 + $0x4] sm:$0xf]
        %v1803 = vunpack.c.l.b16 %v1799
        %v1804 = vunpack.c.l.b16 %v1800
        %v1805 = vpack.c.b16 %v1804, %v1803
        %v1808 = vsel %vm527, %v1794, 0
        %v1811 = vsel %vm527, %v1795, 0
        %v1814 = vsel %vm527, %v1796, 0
        %v1817 = vsel %vm527, %v1797, 0
        %1819 = vmatprep.subr.bf16.mxu0 0
        %1820 = vmatpush1.bf16.msra.mxu0 %v1805
        %1821 = vmatprep.subr.bf16.mxu0 0
        %1822 = vmatpush1.bf16.msra.mxu0 0
        %1823 = vmatprep.subr.bf16.mxu0 0
        %1824 = vmatpush1.bf16.msra.mxu0 0
        %1825 = vmatprep.subr.bf16.mxu0 0
        %1826 = vmatpush1.bf16.msra.mxu0 0
        %1827 = vmatprep.subr.bf16.mxu0 0
        %1828 = vmatpush1.bf16.msra.mxu0 0
        %1829 = vmatprep.subr.bf16.mxu0 0
        %1830 = vmatpush1.bf16.msra.mxu0 0
        %1831 = vmatprep.subr.bf16.mxu0 0
        %1832 = vmatpush1.bf16.msra.mxu0 0
        %1833 = vmatprep.subr.bf16.mxu0 0
        %1834 = vmatpush1.bf16.msra.mxu0 0
        %1835 = vmatprep.subr.bf16.mxu0 0
        %1836 = vmatpush1.bf16.msra.mxu0 0
        %1837 = vmatprep.subr.bf16.mxu0 0
        %1838 = vmatpush1.bf16.msra.mxu0 0
        %1839 = vmatprep.subr.bf16.mxu0 0
        %1840 = vmatpush1.bf16.msra.mxu0 0
        %1841 = vmatprep.subr.bf16.mxu0 0
        %1842 = vmatpush1.bf16.msra.mxu0 0
        %1843 = vmatprep.subr.bf16.mxu0 0
        %1844 = vmatpush1.bf16.msra.mxu0 0
        %1845 = vmatprep.subr.bf16.mxu0 0
        %1846 = vmatpush1.bf16.msra.mxu0 0
        %1847 = vmatprep.subr.bf16.mxu0 0
        %1848 = vmatpush1.bf16.msra.mxu0 0
        %1849 = vmatprep.subr.bf16.mxu0 0
        %1850 = vmatpush1.bf16.msra.mxu0 0
        %1851 = vmatprep.mubr.bf16.mxu0 0
        %1852 = vmatmul.mubr.bf16.gmra.mrb[0].mxu0 %v1808
        %v1853 = vpop.f32.mrb[0].mxu0
        %v1854 = vadd.f32 0.0, %v1853
        %v1855 = vpop.f32.mrb[0].mxu0
        %v1856 = vpop.f32.mrb[0].mxu0
        %v1857 = vadd.f32 0.0, %v1856
        %v1858 = vpop.f32.mrb[0].mxu0
        %1859 = vmatprep.mubr.bf16.mxu0 0
        %1860 = vmatmul.mubr.bf16.gmra.mrb[0].mxu0 %v1811
        %v1861 = vpop.f32.mrb[0].mxu0
        %v1862 = vadd.f32 0.0, %v1861
        %v1863 = vpop.f32.mrb[0].mxu0
        %v1864 = vpop.f32.mrb[0].mxu0
        %v1865 = vadd.f32 0.0, %v1864
        %v1866 = vpop.f32.mrb[0].mxu0
        %1867 = vmatprep.mubr.bf16.mxu0 0
        %1868 = vmatmul.mubr.bf16.gmra.mrb[0].mxu0 %v1814
        %v1869 = vpop.f32.mrb[0].mxu0
        %v1870 = vadd.f32 0.0, %v1869
        %v1871 = vpop.f32.mrb[0].mxu0
        %v1872 = vpop.f32.mrb[0].mxu0
        %v1873 = vadd.f32 0.0, %v1872
        %v1874 = vpop.f32.mrb[0].mxu0
        %1875 = vmatprep.mubr.bf16.mxu0 0
        %1876 = vmatmul.mubr.bf16.gmra.mrb[0].mxu0 %v1817
        %v1877 = vpop.f32.mrb[0].mxu0
        %v1878 = vadd.f32 0.0, %v1877
        %v1879 = vpop.f32.mrb[0].mxu0
        %v1880 = vpop.f32.mrb[0].mxu0
        %v1881 = vadd.f32 0.0, %v1880
        %v1882 = vpop.f32.mrb[0].mxu0
        %1883 = vdwg.mxu0
        %v1884 = vadd.f32 %v1778, %v1854
        %v1885 = vadd.f32 %v1779, %v1857
        %v1886 = vadd.f32 %v1780, %v1862
        %v1887 = vadd.f32 %v1781, %v1865
        %v1888 = vadd.f32 %v1782, %v1870
        %v1889 = vadd.f32 %v1783, %v1873
        %v1890 = vadd.f32 %v1784, %v1878
        %v1891 = vadd.f32 %v1785, %v1881
        %v1892 = vld [vmem:[%s712] sm:$0xff]
        %v1893 = vld [vmem:[%s712 + $0x10] sm:$0xff]
        %v1894 = vld [vmem:[%s712 + $0x20] sm:$0xff]
        %v1895 = vld [vmem:[%s712 + $0x30] sm:$0xff]
        %v1896 = vld [vmem:[%s712 + $0x40] sm:$0xff]
        %v1897 = vld [vmem:[%s712 + $0x50] sm:$0xff]
        %v1898 = vld [vmem:[%s712 + $0x60] sm:$0xff]
        %v1899 = vld [vmem:[%s712 + $0x70] sm:$0xff]
        %v1900 = vpack.c.bf16 %v1893, %v1892
        %v1901 = vpack.c.bf16 %v1895, %v1894
        %v1902 = vpack.c.bf16 %v1897, %v1896
        %v1903 = vpack.c.bf16 %v1899, %v1898
        %s1904 = scalar_lea.vmem [#allocation14], 56
        %v1905 = vld [vmem:[%s1904] sm:$0xf]
        %v1906 = vld [vmem:[%s1904 + $0x4] sm:$0xf]
        %v1909 = vunpack.c.l.b16 %v1905
        %v1910 = vunpack.c.l.b16 %v1906
        %v1911 = vpack.c.b16 %v1910, %v1909
        %v1914 = vsel %vm527, %v1900, 0
        %v1917 = vsel %vm527, %v1901, 0
        %v1920 = vsel %vm527, %v1902, 0
        %v1923 = vsel %vm527, %v1903, 0
        %1925 = vmatprep.subr.bf16.mxu0 0
        %1926 = vmatpush1.bf16.msra.mxu0 %v1911
        %1927 = vmatprep.subr.bf16.mxu0 0
        %1928 = vmatpush1.bf16.msra.mxu0 0
        %1929 = vmatprep.subr.bf16.mxu0 0
        %1930 = vmatpush1.bf16.msra.mxu0 0
        %1931 = vmatprep.subr.bf16.mxu0 0
        %1932 = vmatpush1.bf16.msra.mxu0 0
        %1933 = vmatprep.subr.bf16.mxu0 0
        %1934 = vmatpush1.bf16.msra.mxu0 0
        %1935 = vmatprep.subr.bf16.mxu0 0
        %1936 = vmatpush1.bf16.msra.mxu0 0
        %1937 = vmatprep.subr.bf16.mxu0 0
        %1938 = vmatpush1.bf16.msra.mxu0 0
        %1939 = vmatprep.subr.bf16.mxu0 0
        %1940 = vmatpush1.bf16.msra.mxu0 0
        %1941 = vmatprep.subr.bf16.mxu0 0
        %1942 = vmatpush1.bf16.msra.mxu0 0
        %1943 = vmatprep.subr.bf16.mxu0 0
        %1944 = vmatpush1.bf16.msra.mxu0 0
        %1945 = vmatprep.subr.bf16.mxu0 0
        %1946 = vmatpush1.bf16.msra.mxu0 0
        %1947 = vmatprep.subr.bf16.mxu0 0
        %1948 = vmatpush1.bf16.msra.mxu0 0
        %1949 = vmatprep.subr.bf16.mxu0 0
        %1950 = vmatpush1.bf16.msra.mxu0 0
        %1951 = vmatprep.subr.bf16.mxu0 0
        %1952 = vmatpush1.bf16.msra.mxu0 0
        %1953 = vmatprep.subr.bf16.mxu0 0
        %1954 = vmatpush1.bf16.msra.mxu0 0
        %1955 = vmatprep.subr.bf16.mxu0 0
        %1956 = vmatpush1.bf16.msra.mxu0 0
        %1957 = vmatprep.mubr.bf16.mxu0 0
        %1958 = vmatmul.mubr.bf16.gmra.mrb[0].mxu0 %v1914
        %v1959 = vpop.f32.mrb[0].mxu0
        %v1960 = vadd.f32 0.0, %v1959
        %v1961 = vpop.f32.mrb[0].mxu0
        %v1962 = vpop.f32.mrb[0].mxu0
        %v1963 = vadd.f32 0.0, %v1962
        %v1964 = vpop.f32.mrb[0].mxu0
        %1965 = vmatprep.mubr.bf16.mxu0 0
        %1966 = vmatmul.mubr.bf16.gmra.mrb[0].mxu0 %v1917
        %v1967 = vpop.f32.mrb[0].mxu0
        %v1968 = vadd.f32 0.0, %v1967
        %v1969 = vpop.f32.mrb[0].mxu0
        %v1970 = vpop.f32.mrb[0].mxu0
        %v1971 = vadd.f32 0.0, %v1970
        %v1972 = vpop.f32.mrb[0].mxu0
        %1973 = vmatprep.mubr.bf16.mxu0 0
        %1974 = vmatmul.mubr.bf16.gmra.mrb[0].mxu0 %v1920
        %v1975 = vpop.f32.mrb[0].mxu0
        %v1976 = vadd.f32 0.0, %v1975
        %v1977 = vpop.f32.mrb[0].mxu0
        %v1978 = vpop.f32.mrb[0].mxu0
        %v1979 = vadd.f32 0.0, %v1978
        %v1980 = vpop.f32.mrb[0].mxu0
        %1981 = vmatprep.mubr.bf16.mxu0 0
        %1982 = vmatmul.mubr.bf16.gmra.mrb[0].mxu0 %v1923
        %v1983 = vpop.f32.mrb[0].mxu0
        %v1984 = vadd.f32 0.0, %v1983
        %v1985 = vpop.f32.mrb[0].mxu0
        %v1986 = vpop.f32.mrb[0].mxu0
        %v1987 = vadd.f32 0.0, %v1986
        %v1988 = vpop.f32.mrb[0].mxu0
        %1989 = vdwg.mxu0
        %v1990 = vadd.f32 %v1884, %v1960
        %v1991 = vadd.f32 %v1885, %v1963
        %v1992 = vadd.f32 %v1886, %v1968
        %v1993 = vadd.f32 %v1887, %v1971
        %v1994 = vadd.f32 %v1888, %v1976
        %v1995 = vadd.f32 %v1889, %v1979
        %v1996 = vadd.f32 %v1890, %v1984
        %v1997 = vadd.f32 %v1891, %v1987
        %v1998 = vld [vmem:[%s530 + $0x1] sm:$0xff]
        %v1999 = vld [vmem:[%s530 + $0x11] sm:$0xff]
        %v2000 = vld [vmem:[%s530 + $0x21] sm:$0xff]
        %v2001 = vld [vmem:[%s530 + $0x31] sm:$0xff]
        %v2002 = vld [vmem:[%s530 + $0x41] sm:$0xff]
        %v2003 = vld [vmem:[%s530 + $0x51] sm:$0xff]
        %v2004 = vld [vmem:[%s530 + $0x61] sm:$0xff]
        %v2005 = vld [vmem:[%s530 + $0x71] sm:$0xff]
        %v2006 = vpack.c.bf16 %v1999, %v1998
        %v2007 = vpack.c.bf16 %v2001, %v2000
        %v2008 = vpack.c.bf16 %v2003, %v2002
        %v2009 = vpack.c.bf16 %v2005, %v2004
        %s2010 = scalar_lea.vmem [#allocation14], 64
        %v2011 = vld [vmem:[%s2010] sm:$0xf]
        %v2012 = vld [vmem:[%s2010 + $0x4] sm:$0xf]
        %v2015 = vunpack.c.l.b16 %v2011
        %v2016 = vunpack.c.l.b16 %v2012
        %v2017 = vpack.c.b16 %v2016, %v2015
        %v2020 = vsel %vm527, %v2006, 0
        %v2023 = vsel %vm527, %v2007, 0
        %v2026 = vsel %vm527, %v2008, 0
        %v2029 = vsel %vm527, %v2009, 0
        %2031 = vmatprep.subr.bf16.mxu0 0
        %2032 = vmatpush1.bf16.msra.mxu0 %v2017
        %2033 = vmatprep.subr.bf16.mxu0 0
        %2034 = vmatpush1.bf16.msra.mxu0 0
        %2035 = vmatprep.subr.bf16.mxu0 0
        %2036 = vmatpush1.bf16.msra.mxu0 0
        %2037 = vmatprep.subr.bf16.mxu0 0
        %2038 = vmatpush1.bf16.msra.mxu0 0
        %2039 = vmatprep.subr.bf16.mxu0 0
        %2040 = vmatpush1.bf16.msra.mxu0 0
        %2041 = vmatprep.subr.bf16.mxu0 0
        %2042 = vmatpush1.bf16.msra.mxu0 0
        %2043 = vmatprep.subr.bf16.mxu0 0
        %2044 = vmatpush1.bf16.msra.mxu0 0
        %2045 = vmatprep.subr.bf16.mxu0 0
        %2046 = vmatpush1.bf16.msra.mxu0 0
        %2047 = vmatprep.subr.bf16.mxu0 0
        %2048 = vmatpush1.bf16.msra.mxu0 0
        %2049 = vmatprep.subr.bf16.mxu0 0
        %2050 = vmatpush1.bf16.msra.mxu0 0
        %2051 = vmatprep.subr.bf16.mxu0 0
        %2052 = vmatpush1.bf16.msra.mxu0 0
        %2053 = vmatprep.subr.bf16.mxu0 0
        %2054 = vmatpush1.bf16.msra.mxu0 0
        %2055 = vmatprep.subr.bf16.mxu0 0
        %2056 = vmatpush1.bf16.msra.mxu0 0
        %2057 = vmatprep.subr.bf16.mxu0 0
        %2058 = vmatpush1.bf16.msra.mxu0 0
        %2059 = vmatprep.subr.bf16.mxu0 0
        %2060 = vmatpush1.bf16.msra.mxu0 0
        %2061 = vmatprep.subr.bf16.mxu0 0
        %2062 = vmatpush1.bf16.msra.mxu0 0
        %2063 = vmatprep.mubr.bf16.mxu0 0
        %2064 = vmatmul.mubr.bf16.gmra.mrb[0].mxu0 %v2020
        %v2065 = vpop.f32.mrb[0].mxu0
        %v2066 = vadd.f32 0.0, %v2065
        %v2067 = vpop.f32.mrb[0].mxu0
        %v2068 = vpop.f32.mrb[0].mxu0
        %v2069 = vadd.f32 0.0, %v2068
        %v2070 = vpop.f32.mrb[0].mxu0
        %2071 = vmatprep.mubr.bf16.mxu0 0
        %2072 = vmatmul.mubr.bf16.gmra.mrb[0].mxu0 %v2023
        %v2073 = vpop.f32.mrb[0].mxu0
        %v2074 = vadd.f32 0.0, %v2073
        %v2075 = vpop.f32.mrb[0].mxu0
        %v2076 = vpop.f32.mrb[0].mxu0
        %v2077 = vadd.f32 0.0, %v2076
        %v2078 = vpop.f32.mrb[0].mxu0
        %2079 = vmatprep.mubr.bf16.mxu0 0
        %2080 = vmatmul.mubr.bf16.gmra.mrb[0].mxu0 %v2026
        %v2081 = vpop.f32.mrb[0].mxu0
        %v2082 = vadd.f32 0.0, %v2081
        %v2083 = vpop.f32.mrb[0].mxu0
        %v2084 = vpop.f32.mrb[0].mxu0
        %v2085 = vadd.f32 0.0, %v2084
        %v2086 = vpop.f32.mrb[0].mxu0
        %2087 = vmatprep.mubr.bf16.mxu0 0
        %2088 = vmatmul.mubr.bf16.gmra.mrb[0].mxu0 %v2029
        %v2089 = vpop.f32.mrb[0].mxu0
        %v2090 = vadd.f32 0.0, %v2089
        %v2091 = vpop.f32.mrb[0].mxu0
        %v2092 = vpop.f32.mrb[0].mxu0
        %v2093 = vadd.f32 0.0, %v2092
        %v2094 = vpop.f32.mrb[0].mxu0
        %2095 = vdwg.mxu0
        %v2096 = vadd.f32 %v1990, %v2066
        %v2097 = vadd.f32 %v1991, %v2069
        %v2098 = vadd.f32 %v1992, %v2074
        %v2099 = vadd.f32 %v1993, %v2077
        %v2100 = vadd.f32 %v1994, %v2082
        %v2101 = vadd.f32 %v1995, %v2085
        %v2102 = vadd.f32 %v1996, %v2090
        %v2103 = vadd.f32 %v1997, %v2093
        %v2104 = vld [vmem:[#allocation15] sm:$0x1]
        %v2106 = vlaneseq
        %v2107 = vshrl.u32 %v2106, 7
        %v2108 = vsub.s32 0, %v2107
        %v2109 = vrot.slane %v2104, %v2108
        %v2111 = vadd.f32 %v2096, %v2109
        %v2112 = vadd.f32 %v2097, %v2109
        %v2113 = vadd.f32 %v2098, %v2109
        %v2114 = vadd.f32 %v2099, %v2109
        %v2115 = vadd.f32 %v2100, %v2109
        %v2116 = vadd.f32 %v2101, %v2109
        %v2117 = vadd.f32 %v2102, %v2109
        %v2118 = vadd.f32 %v2103, %v2109
        %v2119 = vmax.f32 %v2111, 0.0
        %v2120 = vmax.f32 %v2112, 0.0
        %v2121 = vmax.f32 %v2113, 0.0
        %v2122 = vmax.f32 %v2114, 0.0
        %v2123 = vmax.f32 %v2115, 0.0
        %v2124 = vmax.f32 %v2116, 0.0
        %v2125 = vmax.f32 %v2117, 0.0
        %v2126 = vmax.f32 %v2118, 0.0
        %v2127 = vpack.c.bf16 %v2120, %v2119
        %v2128 = vpack.c.bf16 %v2122, %v2121
        %v2129 = vpack.c.bf16 %v2124, %v2123
        %v2130 = vpack.c.bf16 %v2126, %v2125
        %v2131 = vld [vmem:[#allocation17] sm:$0xf]
        %v2132 = vld [vmem:[#allocation17 + $0x4] sm:$0xf]
        %v2135 = vunpack.c.l.b16 %v2131
        %v2136 = vunpack.c.l.b16 %v2132
        %v2137 = vpack.c.b16 %v2136, %v2135
        %v2140 = vsel %vm527, %v2127, 0
        %v2143 = vsel %vm527, %v2128, 0
        %v2146 = vsel %vm527, %v2129, 0
        %v2149 = vsel %vm527, %v2130, 0
        %2151 = vmatprep.subr.bf16.mxu0 0
        %2152 = vmatpush1.bf16.msra.mxu0 %v2137
        %2153 = vmatprep.subr.bf16.mxu0 0
        %2154 = vmatpush1.bf16.msra.mxu0 0
        %2155 = vmatprep.subr.bf16.mxu0 0
        %2156 = vmatpush1.bf16.msra.mxu0 0
        %2157 = vmatprep.subr.bf16.mxu0 0
        %2158 = vmatpush1.bf16.msra.mxu0 0
        %2159 = vmatprep.subr.bf16.mxu0 0
        %2160 = vmatpush1.bf16.msra.mxu0 0
        %2161 = vmatprep.subr.bf16.mxu0 0
        %2162 = vmatpush1.bf16.msra.mxu0 0
        %2163 = vmatprep.subr.bf16.mxu0 0
        %2164 = vmatpush1.bf16.msra.mxu0 0
        %2165 = vmatprep.subr.bf16.mxu0 0
        %2166 = vmatpush1.bf16.msra.mxu0 0
        %2167 = vmatprep.subr.bf16.mxu0 0
        %2168 = vmatpush1.bf16.msra.mxu0 0
        %2169 = vmatprep.subr.bf16.mxu0 0
        %2170 = vmatpush1.bf16.msra.mxu0 0
        %2171 = vmatprep.subr.bf16.mxu0 0
        %2172 = vmatpush1.bf16.msra.mxu0 0
        %2173 = vmatprep.subr.bf16.mxu0 0
        %2174 = vmatpush1.bf16.msra.mxu0 0
        %2175 = vmatprep.subr.bf16.mxu0 0
        %2176 = vmatpush1.bf16.msra.mxu0 0
        %2177 = vmatprep.subr.bf16.mxu0 0
        %2178 = vmatpush1.bf16.msra.mxu0 0
        %2179 = vmatprep.subr.bf16.mxu0 0
        %2180 = vmatpush1.bf16.msra.mxu0 0
        %2181 = vmatprep.subr.bf16.mxu0 0
        %2182 = vmatpush1.bf16.msra.mxu0 0
        %2183 = vmatprep.mubr.bf16.mxu0 0
        %2184 = vmatmul.mubr.bf16.gmra.mrb[0].mxu0 %v2140
        %v2185 = vpop.f32.mrb[0].mxu0
        %v2186 = vadd.f32 0.0, %v2185
        %v2187 = vpop.f32.mrb[0].mxu0
        %v2188 = vpop.f32.mrb[0].mxu0
        %v2189 = vadd.f32 0.0, %v2188
        %v2190 = vpop.f32.mrb[0].mxu0
        %2191 = vmatprep.mubr.bf16.mxu0 0
        %2192 = vmatmul.mubr.bf16.gmra.mrb[0].mxu0 %v2143
        %v2193 = vpop.f32.mrb[0].mxu0
        %v2194 = vadd.f32 0.0, %v2193
        %v2195 = vpop.f32.mrb[0].mxu0
        %v2196 = vpop.f32.mrb[0].mxu0
        %v2197 = vadd.f32 0.0, %v2196
        %v2198 = vpop.f32.mrb[0].mxu0
        %2199 = vmatprep.mubr.bf16.mxu0 0
        %2200 = vmatmul.mubr.bf16.gmra.mrb[0].mxu0 %v2146
        %v2201 = vpop.f32.mrb[0].mxu0
        %v2202 = vadd.f32 0.0, %v2201
        %v2203 = vpop.f32.mrb[0].mxu0
        %v2204 = vpop.f32.mrb[0].mxu0
        %v2205 = vadd.f32 0.0, %v2204
        %v2206 = vpop.f32.mrb[0].mxu0
        %2207 = vmatprep.mubr.bf16.mxu0 0
        %2208 = vmatmul.mubr.bf16.gmra.mrb[0].mxu0 %v2149
        %v2209 = vpop.f32.mrb[0].mxu0
        %v2210 = vadd.f32 0.0, %v2209
        %v2211 = vpop.f32.mrb[0].mxu0
        %v2212 = vpop.f32.mrb[0].mxu0
        %v2213 = vadd.f32 0.0, %v2212
        %v2214 = vpop.f32.mrb[0].mxu0
        %2215 = vdwg.mxu0
        %v2216 = vld [vmem:[%s448] sm:$0xf]
        %v2217 = vld [vmem:[%s448 + $0x4] sm:$0xf]
        %v2218 = vld [vmem:[%s448 + $0x8] sm:$0xf]
        %v2219 = vld [vmem:[%s448 + $0xc] sm:$0xf]
        %v2220 = vld [vmem:[%s448 + $0x10] sm:$0xf]
        %v2221 = vld [vmem:[%s448 + $0x14] sm:$0xf]
        %v2222 = vld [vmem:[%s448 + $0x18] sm:$0xf]
        %v2223 = vld [vmem:[%s448 + $0x1c] sm:$0xf]
        %v2224 = vld [vmem:[#allocation18] sm:$0xf]
        %v2233 = vunpack.c.l.b16 %v2216
        %v2234 = vunpack.c.l.b16 %v2217
        %v2235 = vunpack.c.l.b16 %v2218
        %v2236 = vunpack.c.l.b16 %v2219
        %v2237 = vunpack.c.l.b16 %v2220
        %v2238 = vunpack.c.l.b16 %v2221
        %v2239 = vunpack.c.l.b16 %v2222
        %v2240 = vunpack.c.l.b16 %v2223
        %v2241 = vpack.c.b16 %v2234, %v2233
        %v2242 = vpack.c.b16 %v2236, %v2235
        %v2243 = vpack.c.b16 %v2238, %v2237
        %v2244 = vpack.c.b16 %v2240, %v2239
        %v2246 = vsel %vm611, %v2241, 0
        %v2249 = vsel %vm611, %v2242, 0
        %v2252 = vsel %vm611, %v2243, 0
        %v2255 = vsel %vm611, %v2244, 0
        %v2258 = vsel %vm624, %v2224, 0
        %2260 = vmatprep.subr.bf16.mxu0 0
        %2261 = vmatpush1.bf16.msra.mxu0 %v2258
        %2262 = vmatprep.subr.bf16.mxu0 0
        %2263 = vmatpush1.bf16.msra.mxu0 0
        %2264 = vmatprep.subr.bf16.mxu0 0
        %2265 = vmatpush1.bf16.msra.mxu0 0
        %2266 = vmatprep.subr.bf16.mxu0 0
        %2267 = vmatpush1.bf16.msra.mxu0 0
        %2268 = vmatprep.subr.bf16.mxu0 0
        %2269 = vmatpush1.bf16.msra.mxu0 0
        %2270 = vmatprep.subr.bf16.mxu0 0
        %2271 = vmatpush1.bf16.msra.mxu0 0
        %2272 = vmatprep.subr.bf16.mxu0 0
        %2273 = vmatpush1.bf16.msra.mxu0 0
        %2274 = vmatprep.subr.bf16.mxu0 0
        %2275 = vmatpush1.bf16.msra.mxu0 0
        %2276 = vmatprep.subr.bf16.mxu0 0
        %2277 = vmatpush1.bf16.msra.mxu0 0
        %2278 = vmatprep.subr.bf16.mxu0 0
        %2279 = vmatpush1.bf16.msra.mxu0 0
        %2280 = vmatprep.subr.bf16.mxu0 0
        %2281 = vmatpush1.bf16.msra.mxu0 0
        %2282 = vmatprep.subr.bf16.mxu0 0
        %2283 = vmatpush1.bf16.msra.mxu0 0
        %2284 = vmatprep.subr.bf16.mxu0 0
        %2285 = vmatpush1.bf16.msra.mxu0 0
        %2286 = vmatprep.subr.bf16.mxu0 0
        %2287 = vmatpush1.bf16.msra.mxu0 0
        %2288 = vmatprep.subr.bf16.mxu0 0
        %2289 = vmatpush1.bf16.msra.mxu0 0
        %2290 = vmatprep.subr.bf16.mxu0 0
        %2291 = vmatpush1.bf16.msra.mxu0 0
        %2292 = vmatprep.mubr.bf16.mxu0 0
        %2293 = vmatmul.mubr.bf16.gmra.mrb[0].mxu0 %v2246
        %v2294 = vpop.f32.mrb[0].mxu0
        %v2295 = vadd.f32 %v2186, %v2294
        %v2296 = vpop.f32.mrb[0].mxu0
        %v2297 = vpop.f32.mrb[0].mxu0
        %v2298 = vadd.f32 %v2189, %v2297
        %v2299 = vpop.f32.mrb[0].mxu0
        %2300 = vmatprep.mubr.bf16.mxu0 0
        %2301 = vmatmul.mubr.bf16.gmra.mrb[0].mxu0 %v2249
        %v2302 = vpop.f32.mrb[0].mxu0
        %v2303 = vadd.f32 %v2194, %v2302
        %v2304 = vpop.f32.mrb[0].mxu0
        %v2305 = vpop.f32.mrb[0].mxu0
        %v2306 = vadd.f32 %v2197, %v2305
        %v2307 = vpop.f32.mrb[0].mxu0
        %2308 = vmatprep.mubr.bf16.mxu0 0
        %2309 = vmatmul.mubr.bf16.gmra.mrb[0].mxu0 %v2252
        %v2310 = vpop.f32.mrb[0].mxu0
        %v2311 = vadd.f32 %v2202, %v2310
        %v2312 = vpop.f32.mrb[0].mxu0
        %v2313 = vpop.f32.mrb[0].mxu0
        %v2314 = vadd.f32 %v2205, %v2313
        %v2315 = vpop.f32.mrb[0].mxu0
        %2316 = vmatprep.mubr.bf16.mxu0 0
        %2317 = vmatmul.mubr.bf16.gmra.mrb[0].mxu0 %v2255
        %v2318 = vpop.f32.mrb[0].mxu0
        %v2319 = vadd.f32 %v2210, %v2318
        %v2320 = vpop.f32.mrb[0].mxu0
        %v2321 = vpop.f32.mrb[0].mxu0
        %v2322 = vadd.f32 %v2213, %v2321
        %v2323 = vpop.f32.mrb[0].mxu0
        %2324 = vdwg.mxu0
        %2325 = vst.msk [vmem:[%s521] sm:$0xff] %vm527, %v2295
        %2326 = vst.msk [vmem:[%s521 + $0x8] sm:$0xff] %vm527, %v2298
        %2327 = vst.msk [vmem:[%s521 + $0x10] sm:$0xff] %vm527, %v2303
        %2328 = vst.msk [vmem:[%s521 + $0x18] sm:$0xff] %vm527, %v2306
        %2329 = vst.msk [vmem:[%s521 + $0x20] sm:$0xff] %vm527, %v2311
        %2330 = vst.msk [vmem:[%s521 + $0x28] sm:$0xff] %vm527, %v2314
        %2331 = vst.msk [vmem:[%s521 + $0x30] sm:$0xff] %vm527, %v2319
        %2332 = vst.msk [vmem:[%s521 + $0x38] sm:$0xff] %vm527, %v2322
        %s2333 = sand.u32 %s262, 1
        %s2334 = scalar_lea.sflag [#allocation5], %s2333
        %s2335 = sand.u32 %s262, 1
        %s2336 = smul.addr %s2335, 64
        %s2337 = scalar_lea.vmem [#allocation20], %s2336
        // Predicated region
        $region101: #{tpu_custom_call.1} parent=59 // pred_check
          %p2338 = pneg %p272
        $region102: #{tpu_custom_call.1} parent=59 // pred_check_branch
          %2340 = sbr.rel (%p2338) target = $region104
        $region103: #{tpu_custom_call.1} parent=59 // pred_region
          %s2342 = ssub.s32 1024, 1024
          %2343 = vsyncadd %s2334, %s2342
          %s2344 = smul.addr %s34, 8
          %s2345 = smul.addr %s2344, 128
          %s2346 = scalar_lea.hbm %s10, %s2345
          %s2347 = sshll.u32 %s2337, 4
          %s2348 = int_to_ptr.vmem [resolvable:$true] %s2347
          %2353 = dma.vmem_to_hbm [thread:$0]  %s2348, 1024, %s2346, %s2334, 128, 128, 8
        $region104: #{tpu_custom_call.1} parent=59 // pred_fallthru
          _
      $region60: #{tpu_custom_call.1} parent=5 // pred_fallthru
        _
      %p2354 = scmp.le.s32.totalorder 2, %s29
      // Predicated region
      $region105: #{tpu_custom_call.1} parent=5 // pred_check
        %p2355 = pneg %p2354
      $region106: #{tpu_custom_call.1} parent=5 // pred_check_branch
        %2357 = sbr.rel (%p2355) target = $region108
      $region107: #{tpu_custom_call.1} parent=5 // pred_region
        %s2358 = ssub.s32 %s29, 2
        // Predicated region
        $region109: #{tpu_custom_call.1} parent=107 // pred_check
          %p2359 = pneg %p278
        $region110: #{tpu_custom_call.1} parent=107 // pred_check_branch
          %2361 = sbr.rel (%p2359) target = $region112
        $region111: #{tpu_custom_call.1} parent=107 // pred_region
          %s2362 = sand.u32 %s263, 1
          %s2363 = scalar_lea.sflag [#allocation5], %s2362
          %s2364 = sand.u32 %s263, 1
          %s2365 = smul.addr %s2364, 64
          %s2366 = scalar_lea.vmem [#allocation20], %s2365
          %2367 = dma.done %s2363, 1024
        $region112: #{tpu_custom_call.1} parent=107 // pred_fallthru
          _
      $region108: #{tpu_custom_call.1} parent=5 // pred_fallthru
        _
    $region6: #{tpu_custom_call.1} parent=1 // loop_footer
      %s33 = sadd.s32 1, %s29
    $region7: #{tpu_custom_call.1} parent=1 // loop_footer_branch
      %28 = sbr.rel target = $region3
    $region8: #{tpu_custom_call.1} parent=1 // loop_exit
      _
    %2368 = vsyncpa [#allocation4], 1
    %s2369 = scalar_lea.sflag [#allocation4], 1
    %2370 = vsyncpa %s2369, 1
    %2371 = vsyncpa [#allocation7], 1
    %s2372 = scalar_lea.sflag [#allocation7], 1
    %2373 = vsyncpa %s2372, 1
    %2374 = vsyncpa [#allocation10], 1
    %2375 = vsyncpa [#allocation13], 1
    %2376 = vsyncpa [#allocation16], 1
    %2377 = vsyncpa [#allocation19], 1
    %2378 = vsyncpa [#allocation5], 1
    %s2379 = scalar_lea.sflag [#allocation5], 1
    %2380 = vsyncpa %s2379, 1

</llo_original>
